<compile_context>
chip_gen: v5e
topology: v5e:2x2
jax: 0.10.0
libtpu: 0.0.40
codegen_flags: <defaults>
</compile_context>

<pallas_src>
import jax
import jax.numpy as jnp
from jax.experimental import pallas as pl
from jax.experimental.pallas import tpu as pltpu

# ---- hyperparameters (mirror LSTMnetwork.__init__ arguments) -----------------
INPUT_SIZE    = 8
HIDDEN_SIZE   = 32
NUM_LAYERS    = 2
OUTPUT_SIZE   = 4
BIDIRECTIONAL = True
DROPOUT_PROB  = 0.1      # eval-mode -> identity


# ---------------------------------------------------------------------------
# Single fused kernel: all LSTM layers (both directions) + FC head.
# Gate-major column layout over 8H: [i_f, i_r, f_f, f_r, g_f, g_r, o_f, o_r].
# ---------------------------------------------------------------------------
def _make_fused_kernel(num_layers, hidden_size, T, B):
    H = hidden_size
    G = 8 * H            # 2 directions x 4 gates, gate-major

    def kernel(*refs):
        # refs[0]                      : x2d          (T*B, D_in0) time-major flat
        # refs[1+4l : 5+4l], l=0..L-1  : wxf (D_l,G), wxr (D_l,G), whh (2H,G), b (1,G)
        # refs[1+4L], refs[2+4L]       : fc_w (2H,O), fc_b (1,O)
        # refs[3+4L]                   : out          (B, O)
        # refs[4+4L]                   : xproj scratch (T*B, G)
        # refs[5+4L]                   : inter-layer seq scratch (2, T*B, H)
        x_ref      = refs[0]
        layer_refs = [refs[1 + 4 * l: 5 + 4 * l] for l in range(num_layers)]
        fcw_ref    = refs[1 + 4 * num_layers]
        fcb_ref    = refs[2 + 4 * num_layers]
        out_ref    = refs[3 + 4 * num_layers]
        xproj_ref  = refs[4 + 4 * num_layers]
        seq_ref    = refs[5 + 4 * num_layers]

        def project(pieces, wxf_ref, wxr_ref, b_ref):
            # Batched input projection, hoisted out of the recurrence.
            # After this, xproj[s*B:(s+1)*B] holds gate pre-activations whose
            # fwd columns come from input time s and rev columns from time
            # T-1-s, so each recurrence step reads one contiguous row block.
            fp = None
            rp = None
            for val, r0 in pieces:
                k = val.shape[1]
                wf = wxf_ref[r0:r0 + k, :]
                wr = wxr_ref[r0:r0 + k, :]
                af = jnp.dot(val, wf, preferred_element_type=jnp.float32)
                ar = jnp.dot(val, wr, preferred_element_type=jnp.float32)
                fp = af if fp is None else fp + af
                rp = ar if rp is None else rp + ar
            fp = fp + b_ref[...]                     # bias folded once
            for s in range(T):                       # static: time-reverse rev half
                rs = T - 1 - s
                xproj_ref[s * B:(s + 1) * B, :] = (
                    fp[s * B:(s + 1) * B, :] + rp[rs * B:(rs + 1) * B, :])

        def recurrence(whh_ref, write_seq):
            # Both directions advanced together: one (B,2H)x(2H,8H) MXU op,
            # one full-width sigmoid and one tanh(c) EUP push per step.
            whh = whh_ref[...]                               # (2H, G), resident
            h = jnp.zeros((B, 2 * H), jnp.float32)           # [h_fwd | h_rev]
            c = jnp.zeros((B, 2 * H), jnp.float32)
            for s in range(T):                               # static unroll (T=8)
                xp = xproj_ref[s * B:(s + 1) * B, :]
                gates = xp + jnp.dot(h, whh, preferred_element_type=jnp.float32)
                sg = jax.nn.sigmoid(gates)                   # single EUP pass (B, 8H)
                i = sg[:, 0 * H:2 * H]
                f = sg[:, 2 * H:4 * H]
                g = 2.0 * sg[:, 4 * H:6 * H] - 1.0           # tanh(x) = 2*sigmoid(2x)-1
                o = sg[:, 6 * H:8 * H]
                c = f * c + i * g
                h = o * jnp.tanh(c)                          # single EUP pass (B, 2H)
                if write_seq:
                    seq_ref[0, s * B:(s + 1) * B, :] = h[:, :H]
                    seq_ref[1, (T - 1 - s) * B:(T - s) * B, :] = h[:, H:]
            return h

        # ---- layer 0 --------------------------------------------------------
        wxf, wxr, whh, b = layer_refs[0]
        project([(x_ref[...], 0)], wxf, wxr, b)
        h_last = recurrence(whh, write_seq=(num_layers > 1))

        # ---- layers 1.. -----------------------------------------------------
        for l in range(1, num_layers):
            wxf, wxr, whh, b = layer_refs[l]
            # Layer input = previous layer's (fwd, rev) sequences, direction-major.
            project([(seq_ref[0], 0), (seq_ref[1], H)], wxf, wxr, b)
            h_last = recurrence(whh, write_seq=(l < num_layers - 1))
            # TODO(synk): inter-layer nn.LSTM dropout omitted (eval-mode identity).

        # ---- FC head --------------------------------------------------------
        # torch.cat((out[:, -1, :H], out[:, 0, H:]), 1) == final [h_fwd | h_rev].
        # TODO(synk): nn.Dropout before fc omitted (eval-mode identity).
        out_ref[...] = (jnp.dot(h_last, fcw_ref[...],
                                preferred_element_type=jnp.float32)
                        + fcb_ref[...])

    return kernel


# ---------------------------------------------------------------------------
# One-time weight packing (kept out of the per-forward path).
# ---------------------------------------------------------------------------
def pack_params(params):
    H = HIDDEN_SIZE

    def scale_g(w):                       # fold factor 2 into the g-gate block
        return jnp.concatenate(
            [w[:, :2 * H], 2.0 * w[:, 2 * H:3 * H], w[:, 3 * H:]], axis=1)

    def scatter(w, d):                    # (rows, 4H) -> (rows, 8H) gate-major
        out = jnp.zeros((w.shape[0], 8 * H), w.dtype)
        for g in range(4):
            out = out.at[:, (2 * g + d) * H:(2 * g + d + 1) * H].set(
                w[:, g * H:(g + 1) * H])
        return out

    layers = []
    for l in range(NUM_LAYERS):
        pf = params["lstm"][(l, 0)]
        pr = params["lstm"][(l, 1)]
        wxf = scatter(scale_g(pf["w_ih"]), 0)                       # (D_in, 8H)
        wxr = scatter(scale_g(pr["w_ih"]), 1)                       # (D_in, 8H)
        whh = jnp.concatenate([scatter(scale_g(pf["w_hh"]), 0),     # (2H, 8H)
                               scatter(scale_g(pr["w_hh"]), 1)], axis=0)
        bias = scatter(scale_g(pf["b"]), 0) + scatter(scale_g(pr["b"]), 1)  # (1, 8H)
        layers.append((wxf, wxr, whh, bias))
    return {"layers": tuple(layers),
            "fc_w": params["fc"]["w"], "fc_b": params["fc"]["b"]}


# ---------------------------------------------------------------------------
# Wrapper: single pallas_call, no grid (serial recurrence, fully VMEM resident).
# ---------------------------------------------------------------------------
@jax.jit
def lstm_network_forward(x, packed):
    # TODO(synk): kernel is specialized to the bidirectional configuration
    # (BIDIRECTIONAL=True) the module is instantiated with.
    B, T, _ = x.shape
    x2d = jnp.transpose(x, (1, 0, 2)).reshape(T * B, -1).astype(jnp.float32)

    args = [x2d]
    for wxf, wxr, whh, bias in packed["layers"]:
        args += [wxf, wxr, whh, bias]
    args += [packed["fc_w"], packed["fc_b"]]

    kernel = _make_fused_kernel(NUM_LAYERS, HIDDEN_SIZE, T, B)
    return pl.pallas_call(
        kernel,
        out_shape=jax.ShapeDtypeStruct((B, OUTPUT_SIZE), jnp.float32),
        scratch_shapes=[
            pltpu.VMEM((T * B, 8 * HIDDEN_SIZE), jnp.float32),   # xproj scratch
            pltpu.VMEM((2, T * B, HIDDEN_SIZE), jnp.float32),    # inter-layer seq
        ],
    )(*args)


# ---------------------------------------------------------------------------
# Pure-JAX reference (for a correctness check of the Pallas kernel).
# ---------------------------------------------------------------------------
def _ref_lstm_dir(x_tbd, w_ih, w_hh, b, reverse):
    T, B, _ = x_tbd.shape
    H = w_hh.shape[0]
    h = jnp.zeros((B, H), jnp.float32)
    c = jnp.zeros((B, H), jnp.float32)
    order = range(T - 1, -1, -1) if reverse else range(T)
    out = [None] * T
    for t in order:
        gates = x_tbd[t] @ w_ih + h @ w_hh + b
        i = jax.nn.sigmoid(gates[:, :H])
        f = jax.nn.sigmoid(gates[:, H:2 * H])
        g = jnp.tanh(gates[:, 2 * H:3 * H])
        o = jax.nn.sigmoid(gates[:, 3 * H:])
        c = f * c + i * g
        h = o * jnp.tanh(c)
        out[t] = h
    return jnp.stack(out, 0)


def _ref_forward(x, params):
    seq = jnp.transpose(x, (1, 0, 2))
    num_dir = 2 if BIDIRECTIONAL else 1
    for layer in range(NUM_LAYERS):
        outs = [_ref_lstm_dir(seq, params["lstm"][(layer, d)]["w_ih"],
                              params["lstm"][(layer, d)]["w_hh"],
                              params["lstm"][(layer, d)]["b"],
                              reverse=(d == 1)) for d in range(num_dir)]
        seq = jnp.concatenate(outs, axis=-1)
    out_btd = jnp.transpose(seq, (1, 0, 2))
    if BIDIRECTIONAL:
        feat = jnp.concatenate([out_btd[:, -1, :HIDDEN_SIZE],
                                out_btd[:, 0, HIDDEN_SIZE:]], axis=1)
    else:
        feat = out_btd[:, -1, :]
    return feat @ params["fc"]["w"] + params["fc"]["b"]


# ---------------------------------------------------------------------------
# Deterministic parameter initialisation (PyTorch-style uniform(-k, k)).
# ---------------------------------------------------------------------------
def init_params(key):
    num_dir = 2 if BIDIRECTIONAL else 1
    k_lstm = 1.0 / jnp.sqrt(jnp.float32(HIDDEN_SIZE))
    params = {"lstm": {}}
    for layer in range(NUM_LAYERS):
        d_in = INPUT_SIZE if layer == 0 else HIDDEN_SIZE * num_dir
        for d in range(num_dir):
            key, k1, k2, k3, k4 = jax.random.split(key, 5)
            w_ih = jax.random.uniform(k1, (d_in, 4 * HIDDEN_SIZE),
                                      jnp.float32, -k_lstm, k_lstm)
            w_hh = jax.random.uniform(k2, (HIDDEN_SIZE, 4 * HIDDEN_SIZE),
                                      jnp.float32, -k_lstm, k_lstm)
            b_ih = jax.random.uniform(k3, (1, 4 * HIDDEN_SIZE),
                                      jnp.float32, -k_lstm, k_lstm)
            b_hh = jax.random.uniform(k4, (1, 4 * HIDDEN_SIZE),
                                      jnp.float32, -k_lstm, k_lstm)
            params["lstm"][(layer, d)] = {"w_ih": w_ih, "w_hh": w_hh,
                                          "b": b_ih + b_hh}
    fc_in = HIDDEN_SIZE * num_dir
    k_fc = 1.0 / jnp.sqrt(jnp.float32(fc_in))
    key, k1, k2 = jax.random.split(key, 3)
    params["fc"] = {
        "w": jax.random.uniform(k1, (fc_in, OUTPUT_SIZE), jnp.float32, -k_fc, k_fc),
        "b": jax.random.uniform(k2, (1, OUTPUT_SIZE), jnp.float32, -k_fc, k_fc),
    }
    return params


if __name__ == "__main__":
    key = jax.random.PRNGKey(0)
    key, kx = jax.random.split(key)
    B, T = 2, 8
    x = jax.random.normal(kx, (B, T, INPUT_SIZE), jnp.float32)
    params = init_params(key)
    packed = pack_params(params)          # one-time packing, off the call path

    out = lstm_network_forward(x, packed)
    out = jax.block_until_ready(out)

    ref = _ref_forward(x, params)
    assert out.shape == (B, OUTPUT_SIZE)
    assert float(jnp.max(jnp.abs(out - ref))) < 5e-4

    print("KERNEL_OK")
</pallas_src>

<mosaic_0001>
module attributes {stable_mosaic.version = 11 : i64} {
  func.func @kernel(%arg0: memref<16x8xf32, #tpu.memory_space<vmem>>, %arg1: memref<8x256xf32, #tpu.memory_space<vmem>>, %arg2: memref<8x256xf32, #tpu.memory_space<vmem>>, %arg3: memref<64x256xf32, #tpu.memory_space<vmem>>, %arg4: memref<1x256xf32, #tpu.memory_space<vmem>>, %arg5: memref<64x256xf32, #tpu.memory_space<vmem>>, %arg6: memref<64x256xf32, #tpu.memory_space<vmem>>, %arg7: memref<64x256xf32, #tpu.memory_space<vmem>>, %arg8: memref<1x256xf32, #tpu.memory_space<vmem>>, %arg9: memref<64x4xf32, #tpu.memory_space<vmem>>, %arg10: memref<1x4xf32, #tpu.memory_space<vmem>>, %arg11: memref<2x4xf32, #tpu.memory_space<vmem>>, %arg12: memref<16x256xf32, #tpu.memory_space<vmem>>, %arg13: memref<2x16x32xf32, #tpu.memory_space<vmem>>) attributes {dimension_semantics = [], scalar_prefetch = 0 : i64, scratch_operands = 2 : i64, tpu.core_type = #tpu.core_type<tc>} {
    %c0 = arith.constant 0 : index
    %c0_0 = arith.constant 0 : index
    %0 = vector.load %arg0[%c0, %c0_0] : memref<16x8xf32, #tpu.memory_space<vmem>>, vector<16x8xf32>
    %c0_1 = arith.constant 0 : index
    %c0_2 = arith.constant 0 : index
    %1 = vector.load %arg1[%c0_1, %c0_2] : memref<8x256xf32, #tpu.memory_space<vmem>>, vector<8x256xf32>
    %c0_3 = arith.constant 0 : index
    %c0_4 = arith.constant 0 : index
    %2 = vector.load %arg2[%c0_3, %c0_4] : memref<8x256xf32, #tpu.memory_space<vmem>>, vector<8x256xf32>
    %cst = arith.constant dense<0.000000e+00> : vector<16x256xf32>
    %3 = tpu.matmul %0, %1, %cst {dimension_numbers = #tpu.dot_dimension_numbers<[1], [0], [0], [1], [0, 0, 1, 1], [], []>} : vector<16x8xf32>, vector<8x256xf32>, vector<16x256xf32> -> vector<16x256xf32>
    %cst_5 = arith.constant dense<0.000000e+00> : vector<16x256xf32>
    %4 = tpu.matmul %0, %2, %cst_5 {dimension_numbers = #tpu.dot_dimension_numbers<[1], [0], [0], [1], [0, 0, 1, 1], [], []>} : vector<16x8xf32>, vector<8x256xf32>, vector<16x256xf32> -> vector<16x256xf32>
    %c0_6 = arith.constant 0 : index
    %c0_7 = arith.constant 0 : index
    %5 = vector.load %arg4[%c0_6, %c0_7] : memref<1x256xf32, #tpu.memory_space<vmem>>, vector<1x256xf32>
    %6 = vector.broadcast %5 : vector<1x256xf32> to vector<16x256xf32>
    %7 = arith.addf %3, %6 : vector<16x256xf32>
    %8 = vector.extract_strided_slice %7 {offsets = [0, 0], sizes = [2, 256], strides = [1, 1]} : vector<16x256xf32> to vector<2x256xf32>
    %9 = vector.extract_strided_slice %4 {offsets = [14, 0], sizes = [2, 256], strides = [1, 1]} : vector<16x256xf32> to vector<2x256xf32>
    %10 = arith.addf %8, %9 : vector<2x256xf32>
    %c0_8 = arith.constant 0 : index
    %c0_9 = arith.constant 0 : index
    %11 = vector.load %arg12[%c0_8, %c0_9] : memref<16x256xf32, #tpu.memory_space<vmem>>, vector<2x256xf32>
    tpu.vector_store %arg12[%c0_8, %c0_9], %10 {strides = array<i32>} : memref<16x256xf32, #tpu.memory_space<vmem>>, vector<2x256xf32>,
    %12 = vector.extract_strided_slice %7 {offsets = [2, 0], sizes = [2, 256], strides = [1, 1]} : vector<16x256xf32> to vector<2x256xf32>
    %13 = vector.extract_strided_slice %4 {offsets = [12, 0], sizes = [2, 256], strides = [1, 1]} : vector<16x256xf32> to vector<2x256xf32>
    %14 = arith.addf %12, %13 : vector<2x256xf32>
    %c2 = arith.constant 2 : index
    %c0_10 = arith.constant 0 : index
    %15 = vector.load %arg12[%c2, %c0_10] : memref<16x256xf32, #tpu.memory_space<vmem>>, vector<2x256xf32>
    tpu.vector_store %arg12[%c2, %c0_10], %14 {strides = array<i32>} : memref<16x256xf32, #tpu.memory_space<vmem>>, vector<2x256xf32>,
    %16 = vector.extract_strided_slice %7 {offsets = [4, 0], sizes = [2, 256], strides = [1, 1]} : vector<16x256xf32> to vector<2x256xf32>
    %17 = vector.extract_strided_slice %4 {offsets = [10, 0], sizes = [2, 256], strides = [1, 1]} : vector<16x256xf32> to vector<2x256xf32>
    %18 = arith.addf %16, %17 : vector<2x256xf32>
    %c4 = arith.constant 4 : index
    %c0_11 = arith.constant 0 : index
    %19 = vector.load %arg12[%c4, %c0_11] : memref<16x256xf32, #tpu.memory_space<vmem>>, vector<2x256xf32>
    tpu.vector_store %arg12[%c4, %c0_11], %18 {strides = array<i32>} : memref<16x256xf32, #tpu.memory_space<vmem>>, vector<2x256xf32>,
    %20 = vector.extract_strided_slice %7 {offsets = [6, 0], sizes = [2, 256], strides = [1, 1]} : vector<16x256xf32> to vector<2x256xf32>
    %21 = vector.extract_strided_slice %4 {offsets = [8, 0], sizes = [2, 256], strides = [1, 1]} : vector<16x256xf32> to vector<2x256xf32>
    %22 = arith.addf %20, %21 : vector<2x256xf32>
    %c6 = arith.constant 6 : index
    %c0_12 = arith.constant 0 : index
    %23 = vector.load %arg12[%c6, %c0_12] : memref<16x256xf32, #tpu.memory_space<vmem>>, vector<2x256xf32>
    tpu.vector_store %arg12[%c6, %c0_12], %22 {strides = array<i32>} : memref<16x256xf32, #tpu.memory_space<vmem>>, vector<2x256xf32>,
    %24 = vector.extract_strided_slice %7 {offsets = [8, 0], sizes = [2, 256], strides = [1, 1]} : vector<16x256xf32> to vector<2x256xf32>
    %25 = vector.extract_strided_slice %4 {offsets = [6, 0], sizes = [2, 256], strides = [1, 1]} : vector<16x256xf32> to vector<2x256xf32>
    %26 = arith.addf %24, %25 : vector<2x256xf32>
    %c8 = arith.constant 8 : index
    %c0_13 = arith.constant 0 : index
    %27 = vector.load %arg12[%c8, %c0_13] : memref<16x256xf32, #tpu.memory_space<vmem>>, vector<2x256xf32>
    tpu.vector_store %arg12[%c8, %c0_13], %26 {strides = array<i32>} : memref<16x256xf32, #tpu.memory_space<vmem>>, vector<2x256xf32>,
    %28 = vector.extract_strided_slice %7 {offsets = [10, 0], sizes = [2, 256], strides = [1, 1]} : vector<16x256xf32> to vector<2x256xf32>
    %29 = vector.extract_strided_slice %4 {offsets = [4, 0], sizes = [2, 256], strides = [1, 1]} : vector<16x256xf32> to vector<2x256xf32>
    %30 = arith.addf %28, %29 : vector<2x256xf32>
    %c10 = arith.constant 10 : index
    %c0_14 = arith.constant 0 : index
    %31 = vector.load %arg12[%c10, %c0_14] : memref<16x256xf32, #tpu.memory_space<vmem>>, vector<2x256xf32>
    tpu.vector_store %arg12[%c10, %c0_14], %30 {strides = array<i32>} : memref<16x256xf32, #tpu.memory_space<vmem>>, vector<2x256xf32>,
    %32 = vector.extract_strided_slice %7 {offsets = [12, 0], sizes = [2, 256], strides = [1, 1]} : vector<16x256xf32> to vector<2x256xf32>
    %33 = vector.extract_strided_slice %4 {offsets = [2, 0], sizes = [2, 256], strides = [1, 1]} : vector<16x256xf32> to vector<2x256xf32>
    %34 = arith.addf %32, %33 : vector<2x256xf32>
    %c12 = arith.constant 12 : index
    %c0_15 = arith.constant 0 : index
    %35 = vector.load %arg12[%c12, %c0_15] : memref<16x256xf32, #tpu.memory_space<vmem>>, vector<2x256xf32>
    tpu.vector_store %arg12[%c12, %c0_15], %34 {strides = array<i32>} : memref<16x256xf32, #tpu.memory_space<vmem>>, vector<2x256xf32>,
    %36 = vector.extract_strided_slice %7 {offsets = [14, 0], sizes = [2, 256], strides = [1, 1]} : vector<16x256xf32> to vector<2x256xf32>
    %37 = vector.extract_strided_slice %4 {offsets = [0, 0], sizes = [2, 256], strides = [1, 1]} : vector<16x256xf32> to vector<2x256xf32>
    %38 = arith.addf %36, %37 : vector<2x256xf32>
    %c14 = arith.constant 14 : index
    %c0_16 = arith.constant 0 : index
    %39 = vector.load %arg12[%c14, %c0_16] : memref<16x256xf32, #tpu.memory_space<vmem>>, vector<2x256xf32>
    tpu.vector_store %arg12[%c14, %c0_16], %38 {strides = array<i32>} : memref<16x256xf32, #tpu.memory_space<vmem>>, vector<2x256xf32>,
    %c0_17 = arith.constant 0 : index
    %c0_18 = arith.constant 0 : index
    %40 = vector.load %arg3[%c0_17, %c0_18] : memref<64x256xf32, #tpu.memory_space<vmem>>, vector<64x256xf32>
    %cst_19 = arith.constant 0.000000e+00 : f32
    %41 = vector.broadcast %cst_19 : f32 to vector<2x64xf32>
    %cst_20 = arith.constant 0.000000e+00 : f32
    %42 = vector.broadcast %cst_20 : f32 to vector<2x64xf32>
    %c0_21 = arith.constant 0 : index
    %c0_22 = arith.constant 0 : index
    %43 = vector.load %arg12[%c0_21, %c0_22] : memref<16x256xf32, #tpu.memory_space<vmem>>, vector<2x256xf32>
    %cst_23 = arith.constant dense<0.000000e+00> : vector<2x256xf32>
    %44 = tpu.matmul %41, %40, %cst_23 {dimension_numbers = #tpu.dot_dimension_numbers<[1], [0], [0], [1], [0, 0, 1, 1], [], []>} : vector<2x64xf32>, vector<64x256xf32>, vector<2x256xf32> -> vector<2x256xf32>
    %45 = arith.addf %43, %44 : vector<2x256xf32>
    %46 = arith.negf %45 : vector<2x256xf32>
    %47 = math.exp %46 : vector<2x256xf32>
    %cst_24 = arith.constant 1.000000e+00 : f32
    %48 = vector.broadcast %cst_24 : f32 to vector<2x256xf32>
    %49 = arith.addf %48, %47 : vector<2x256xf32>
    %50 = arith.divf %48, %49 : vector<2x256xf32>
    %51 = vector.extract_strided_slice %50 {offsets = [0, 0], sizes = [2, 64], strides = [1, 1]} : vector<2x256xf32> to vector<2x64xf32>
    %52 = vector.extract_strided_slice %50 {offsets = [0, 64], sizes = [2, 64], strides = [1, 1]} : vector<2x256xf32> to vector<2x64xf32>
    %53 = vector.extract_strided_slice %50 {offsets = [0, 128], sizes = [2, 64], strides = [1, 1]} : vector<2x256xf32> to vector<2x64xf32>
    %cst_25 = arith.constant 2.000000e+00 : f32
    %54 = vector.broadcast %cst_25 : f32 to vector<2x64xf32>
    %55 = arith.mulf %54, %53 : vector<2x64xf32>
    %cst_26 = arith.constant 1.000000e+00 : f32
    %56 = vector.broadcast %cst_26 : f32 to vector<2x64xf32>
    %57 = arith.subf %55, %56 : vector<2x64xf32>
    %58 = vector.extract_strided_slice %50 {offsets = [0, 192], sizes = [2, 64], strides = [1, 1]} : vector<2x256xf32> to vector<2x64xf32>
    %59 = arith.mulf %52, %42 : vector<2x64xf32>
    %60 = arith.mulf %51, %57 : vector<2x64xf32>
    %61 = arith.addf %59, %60 : vector<2x64xf32>
    %62 = math.tanh %61 : vector<2x64xf32>
    %63 = arith.mulf %58, %62 : vector<2x64xf32>
    %64 = vector.extract_strided_slice %63 {offsets = [0, 0], sizes = [2, 32], strides = [1, 1]} : vector<2x64xf32> to vector<2x32xf32>
    %c0_27 = arith.constant 0 : index
    %c0_28 = arith.constant 0 : index
    %c0_29 = arith.constant 0 : index
    %65 = vector.load %arg13[%c0_27, %c0_28, %c0_29] : memref<2x16x32xf32, #tpu.memory_space<vmem>>, vector<1x2x32xf32>
    %66 = vector.shape_cast %65 : vector<1x2x32xf32> to vector<2x32xf32>
    %67 = vector.shape_cast %64 : vector<2x32xf32> to vector<1x2x32xf32>
    tpu.vector_store %arg13[%c0_27, %c0_28, %c0_29], %67 {strides = array<i32>} : memref<2x16x32xf32, #tpu.memory_space<vmem>>, vector<1x2x32xf32>,
    %68 = vector.extract_strided_slice %63 {offsets = [0, 32], sizes = [2, 32], strides = [1, 1]} : vector<2x64xf32> to vector<2x32xf32>
    %c1 = arith.constant 1 : index
    %c14_30 = arith.constant 14 : index
    %c0_31 = arith.constant 0 : index
    %69 = vector.load %arg13[%c1, %c14_30, %c0_31] : memref<2x16x32xf32, #tpu.memory_space<vmem>>, vector<1x2x32xf32>
    %70 = vector.shape_cast %69 : vector<1x2x32xf32> to vector<2x32xf32>
    %71 = vector.shape_cast %68 : vector<2x32xf32> to vector<1x2x32xf32>
    tpu.vector_store %arg13[%c1, %c14_30, %c0_31], %71 {strides = array<i32>} : memref<2x16x32xf32, #tpu.memory_space<vmem>>, vector<1x2x32xf32>,
    %c2_32 = arith.constant 2 : index
    %c0_33 = arith.constant 0 : index
    %72 = vector.load %arg12[%c2_32, %c0_33] : memref<16x256xf32, #tpu.memory_space<vmem>>, vector<2x256xf32>
    %cst_34 = arith.constant dense<0.000000e+00> : vector<2x256xf32>
    %73 = tpu.matmul %63, %40, %cst_34 {dimension_numbers = #tpu.dot_dimension_numbers<[1], [0], [0], [1], [0, 0, 1, 1], [], []>} : vector<2x64xf32>, vector<64x256xf32>, vector<2x256xf32> -> vector<2x256xf32>
    %74 = arith.addf %72, %73 : vector<2x256xf32>
    %75 = arith.negf %74 : vector<2x256xf32>
    %76 = math.exp %75 : vector<2x256xf32>
    %cst_35 = arith.constant 1.000000e+00 : f32
    %77 = vector.broadcast %cst_35 : f32 to vector<2x256xf32>
    %78 = arith.addf %77, %76 : vector<2x256xf32>
    %79 = arith.divf %77, %78 : vector<2x256xf32>
    %80 = vector.extract_strided_slice %79 {offsets = [0, 0], sizes = [2, 64], strides = [1, 1]} : vector<2x256xf32> to vector<2x64xf32>
    %81 = vector.extract_strided_slice %79 {offsets = [0, 64], sizes = [2, 64], strides = [1, 1]} : vector<2x256xf32> to vector<2x64xf32>
    %82 = vector.extract_strided_slice %79 {offsets = [0, 128], sizes = [2, 64], strides = [1, 1]} : vector<2x256xf32> to vector<2x64xf32>
    %cst_36 = arith.constant 2.000000e+00 : f32
    %83 = vector.broadcast %cst_36 : f32 to vector<2x64xf32>
    %84 = arith.mulf %83, %82 : vector<2x64xf32>
    %cst_37 = arith.constant 1.000000e+00 : f32
    %85 = vector.broadcast %cst_37 : f32 to vector<2x64xf32>
    %86 = arith.subf %84, %85 : vector<2x64xf32>
    %87 = vector.extract_strided_slice %79 {offsets = [0, 192], sizes = [2, 64], strides = [1, 1]} : vector<2x256xf32> to vector<2x64xf32>
    %88 = arith.mulf %81, %61 : vector<2x64xf32>
    %89 = arith.mulf %80, %86 : vector<2x64xf32>
    %90 = arith.addf %88, %89 : vector<2x64xf32>
    %91 = math.tanh %90 : vector<2x64xf32>
    %92 = arith.mulf %87, %91 : vector<2x64xf32>
    %93 = vector.extract_strided_slice %92 {offsets = [0, 0], sizes = [2, 32], strides = [1, 1]} : vector<2x64xf32> to vector<2x32xf32>
    %c0_38 = arith.constant 0 : index
    %c2_39 = arith.constant 2 : index
    %c0_40 = arith.constant 0 : index
    %94 = vector.load %arg13[%c0_38, %c2_39, %c0_40] : memref<2x16x32xf32, #tpu.memory_space<vmem>>, vector<1x2x32xf32>
    %95 = vector.shape_cast %94 : vector<1x2x32xf32> to vector<2x32xf32>
    %96 = vector.shape_cast %93 : vector<2x32xf32> to vector<1x2x32xf32>
    tpu.vector_store %arg13[%c0_38, %c2_39, %c0_40], %96 {strides = array<i32>} : memref<2x16x32xf32, #tpu.memory_space<vmem>>, vector<1x2x32xf32>,
    %97 = vector.extract_strided_slice %92 {offsets = [0, 32], sizes = [2, 32], strides = [1, 1]} : vector<2x64xf32> to vector<2x32xf32>
    %c1_41 = arith.constant 1 : index
    %c12_42 = arith.constant 12 : index
    %c0_43 = arith.constant 0 : index
    %98 = vector.load %arg13[%c1_41, %c12_42, %c0_43] : memref<2x16x32xf32, #tpu.memory_space<vmem>>, vector<1x2x32xf32>
    %99 = vector.shape_cast %98 : vector<1x2x32xf32> to vector<2x32xf32>
    %100 = vector.shape_cast %97 : vector<2x32xf32> to vector<1x2x32xf32>
    tpu.vector_store %arg13[%c1_41, %c12_42, %c0_43], %100 {strides = array<i32>} : memref<2x16x32xf32, #tpu.memory_space<vmem>>, vector<1x2x32xf32>,
    %c4_44 = arith.constant 4 : index
    %c0_45 = arith.constant 0 : index
    %101 = vector.load %arg12[%c4_44, %c0_45] : memref<16x256xf32, #tpu.memory_space<vmem>>, vector<2x256xf32>
    %cst_46 = arith.constant dense<0.000000e+00> : vector<2x256xf32>
    %102 = tpu.matmul %92, %40, %cst_46 {dimension_numbers = #tpu.dot_dimension_numbers<[1], [0], [0], [1], [0, 0, 1, 1], [], []>} : vector<2x64xf32>, vector<64x256xf32>, vector<2x256xf32> -> vector<2x256xf32>
    %103 = arith.addf %101, %102 : vector<2x256xf32>
    %104 = arith.negf %103 : vector<2x256xf32>
    %105 = math.exp %104 : vector<2x256xf32>
    %cst_47 = arith.constant 1.000000e+00 : f32
    %106 = vector.broadcast %cst_47 : f32 to vector<2x256xf32>
    %107 = arith.addf %106, %105 : vector<2x256xf32>
    %108 = arith.divf %106, %107 : vector<2x256xf32>
    %109 = vector.extract_strided_slice %108 {offsets = [0, 0], sizes = [2, 64], strides = [1, 1]} : vector<2x256xf32> to vector<2x64xf32>
    %110 = vector.extract_strided_slice %108 {offsets = [0, 64], sizes = [2, 64], strides = [1, 1]} : vector<2x256xf32> to vector<2x64xf32>
    %111 = vector.extract_strided_slice %108 {offsets = [0, 128], sizes = [2, 64], strides = [1, 1]} : vector<2x256xf32> to vector<2x64xf32>
    %cst_48 = arith.constant 2.000000e+00 : f32
    %112 = vector.broadcast %cst_48 : f32 to vector<2x64xf32>
    %113 = arith.mulf %112, %111 : vector<2x64xf32>
    %cst_49 = arith.constant 1.000000e+00 : f32
    %114 = vector.broadcast %cst_49 : f32 to vector<2x64xf32>
    %115 = arith.subf %113, %114 : vector<2x64xf32>
    %116 = vector.extract_strided_slice %108 {offsets = [0, 192], sizes = [2, 64], strides = [1, 1]} : vector<2x256xf32> to vector<2x64xf32>
    %117 = arith.mulf %110, %90 : vector<2x64xf32>
    %118 = arith.mulf %109, %115 : vector<2x64xf32>
    %119 = arith.addf %117, %118 : vector<2x64xf32>
    %120 = math.tanh %119 : vector<2x64xf32>
    %121 = arith.mulf %116, %120 : vector<2x64xf32>
    %122 = vector.extract_strided_slice %121 {offsets = [0, 0], sizes = [2, 32], strides = [1, 1]} : vector<2x64xf32> to vector<2x32xf32>
    %c0_50 = arith.constant 0 : index
    %c4_51 = arith.constant 4 : index
    %c0_52 = arith.constant 0 : index
    %123 = vector.load %arg13[%c0_50, %c4_51, %c0_52] : memref<2x16x32xf32, #tpu.memory_space<vmem>>, vector<1x2x32xf32>
    %124 = vector.shape_cast %123 : vector<1x2x32xf32> to vector<2x32xf32>
    %125 = vector.shape_cast %122 : vector<2x32xf32> to vector<1x2x32xf32>
    tpu.vector_store %arg13[%c0_50, %c4_51, %c0_52], %125 {strides = array<i32>} : memref<2x16x32xf32, #tpu.memory_space<vmem>>, vector<1x2x32xf32>,
    %126 = vector.extract_strided_slice %121 {offsets = [0, 32], sizes = [2, 32], strides = [1, 1]} : vector<2x64xf32> to vector<2x32xf32>
    %c1_53 = arith.constant 1 : index
    %c10_54 = arith.constant 10 : index
    %c0_55 = arith.constant 0 : index
    %127 = vector.load %arg13[%c1_53, %c10_54, %c0_55] : memref<2x16x32xf32, #tpu.memory_space<vmem>>, vector<1x2x32xf32>
    %128 = vector.shape_cast %127 : vector<1x2x32xf32> to vector<2x32xf32>
    %129 = vector.shape_cast %126 : vector<2x32xf32> to vector<1x2x32xf32>
    tpu.vector_store %arg13[%c1_53, %c10_54, %c0_55], %129 {strides = array<i32>} : memref<2x16x32xf32, #tpu.memory_space<vmem>>, vector<1x2x32xf32>,
    %c6_56 = arith.constant 6 : index
    %c0_57 = arith.constant 0 : index
    %130 = vector.load %arg12[%c6_56, %c0_57] : memref<16x256xf32, #tpu.memory_space<vmem>>, vector<2x256xf32>
    %cst_58 = arith.constant dense<0.000000e+00> : vector<2x256xf32>
    %131 = tpu.matmul %121, %40, %cst_58 {dimension_numbers = #tpu.dot_dimension_numbers<[1], [0], [0], [1], [0, 0, 1, 1], [], []>} : vector<2x64xf32>, vector<64x256xf32>, vector<2x256xf32> -> vector<2x256xf32>
    %132 = arith.addf %130, %131 : vector<2x256xf32>
    %133 = arith.negf %132 : vector<2x256xf32>
    %134 = math.exp %133 : vector<2x256xf32>
    %cst_59 = arith.constant 1.000000e+00 : f32
    %135 = vector.broadcast %cst_59 : f32 to vector<2x256xf32>
    %136 = arith.addf %135, %134 : vector<2x256xf32>
    %137 = arith.divf %135, %136 : vector<2x256xf32>
    %138 = vector.extract_strided_slice %137 {offsets = [0, 0], sizes = [2, 64], strides = [1, 1]} : vector<2x256xf32> to vector<2x64xf32>
    %139 = vector.extract_strided_slice %137 {offsets = [0, 64], sizes = [2, 64], strides = [1, 1]} : vector<2x256xf32> to vector<2x64xf32>
    %140 = vector.extract_strided_slice %137 {offsets = [0, 128], sizes = [2, 64], strides = [1, 1]} : vector<2x256xf32> to vector<2x64xf32>
    %cst_60 = arith.constant 2.000000e+00 : f32
    %141 = vector.broadcast %cst_60 : f32 to vector<2x64xf32>
    %142 = arith.mulf %141, %140 : vector<2x64xf32>
    %cst_61 = arith.constant 1.000000e+00 : f32
    %143 = vector.broadcast %cst_61 : f32 to vector<2x64xf32>
    %144 = arith.subf %142, %143 : vector<2x64xf32>
    %145 = vector.extract_strided_slice %137 {offsets = [0, 192], sizes = [2, 64], strides = [1, 1]} : vector<2x256xf32> to vector<2x64xf32>
    %146 = arith.mulf %139, %119 : vector<2x64xf32>
    %147 = arith.mulf %138, %144 : vector<2x64xf32>
    %148 = arith.addf %146, %147 : vector<2x64xf32>
    %149 = math.tanh %148 : vector<2x64xf32>
    %150 = arith.mulf %145, %149 : vector<2x64xf32>
    %151 = vector.extract_strided_slice %150 {offsets = [0, 0], sizes = [2, 32], strides = [1, 1]} : vector<2x64xf32> to vector<2x32xf32>
    %c0_62 = arith.constant 0 : index
    %c6_63 = arith.constant 6 : index
    %c0_64 = arith.constant 0 : index
    %152 = vector.load %arg13[%c0_62, %c6_63, %c0_64] : memref<2x16x32xf32, #tpu.memory_space<vmem>>, vector<1x2x32xf32>
    %153 = vector.shape_cast %152 : vector<1x2x32xf32> to vector<2x32xf32>
    %154 = vector.shape_cast %151 : vector<2x32xf32> to vector<1x2x32xf32>
    tpu.vector_store %arg13[%c0_62, %c6_63, %c0_64], %154 {strides = array<i32>} : memref<2x16x32xf32, #tpu.memory_space<vmem>>, vector<1x2x32xf32>,
    %155 = vector.extract_strided_slice %150 {offsets = [0, 32], sizes = [2, 32], strides = [1, 1]} : vector<2x64xf32> to vector<2x32xf32>
    %c1_65 = arith.constant 1 : index
    %c8_66 = arith.constant 8 : index
    %c0_67 = arith.constant 0 : index
    %156 = vector.load %arg13[%c1_65, %c8_66, %c0_67] : memref<2x16x32xf32, #tpu.memory_space<vmem>>, vector<1x2x32xf32>
    %157 = vector.shape_cast %156 : vector<1x2x32xf32> to vector<2x32xf32>
    %158 = vector.shape_cast %155 : vector<2x32xf32> to vector<1x2x32xf32>
    tpu.vector_store %arg13[%c1_65, %c8_66, %c0_67], %158 {strides = array<i32>} : memref<2x16x32xf32, #tpu.memory_space<vmem>>, vector<1x2x32xf32>,
    %c8_68 = arith.constant 8 : index
    %c0_69 = arith.constant 0 : index
    %159 = vector.load %arg12[%c8_68, %c0_69] : memref<16x256xf32, #tpu.memory_space<vmem>>, vector<2x256xf32>
    %cst_70 = arith.constant dense<0.000000e+00> : vector<2x256xf32>
    %160 = tpu.matmul %150, %40, %cst_70 {dimension_numbers = #tpu.dot_dimension_numbers<[1], [0], [0], [1], [0, 0, 1, 1], [], []>} : vector<2x64xf32>, vector<64x256xf32>, vector<2x256xf32> -> vector<2x256xf32>
    %161 = arith.addf %159, %160 : vector<2x256xf32>
    %162 = arith.negf %161 : vector<2x256xf32>
    %163 = math.exp %162 : vector<2x256xf32>
    %cst_71 = arith.constant 1.000000e+00 : f32
    %164 = vector.broadcast %cst_71 : f32 to vector<2x256xf32>
    %165 = arith.addf %164, %163 : vector<2x256xf32>
    %166 = arith.divf %164, %165 : vector<2x256xf32>
    %167 = vector.extract_strided_slice %166 {offsets = [0, 0], sizes = [2, 64], strides = [1, 1]} : vector<2x256xf32> to vector<2x64xf32>
    %168 = vector.extract_strided_slice %166 {offsets = [0, 64], sizes = [2, 64], strides = [1, 1]} : vector<2x256xf32> to vector<2x64xf32>
    %169 = vector.extract_strided_slice %166 {offsets = [0, 128], sizes = [2, 64], strides = [1, 1]} : vector<2x256xf32> to vector<2x64xf32>
    %cst_72 = arith.constant 2.000000e+00 : f32
    %170 = vector.broadcast %cst_72 : f32 to vector<2x64xf32>
    %171 = arith.mulf %170, %169 : vector<2x64xf32>
    %cst_73 = arith.constant 1.000000e+00 : f32
    %172 = vector.broadcast %cst_73 : f32 to vector<2x64xf32>
    %173 = arith.subf %171, %172 : vector<2x64xf32>
    %174 = vector.extract_strided_slice %166 {offsets = [0, 192], sizes = [2, 64], strides = [1, 1]} : vector<2x256xf32> to vector<2x64xf32>
    %175 = arith.mulf %168, %148 : vector<2x64xf32>
    %176 = arith.mulf %167, %173 : vector<2x64xf32>
    %177 = arith.addf %175, %176 : vector<2x64xf32>
    %178 = math.tanh %177 : vector<2x64xf32>
    %179 = arith.mulf %174, %178 : vector<2x64xf32>
    %180 = vector.extract_strided_slice %179 {offsets = [0, 0], sizes = [2, 32], strides = [1, 1]} : vector<2x64xf32> to vector<2x32xf32>
    %c0_74 = arith.constant 0 : index
    %c8_75 = arith.constant 8 : index
    %c0_76 = arith.constant 0 : index
    %181 = vector.load %arg13[%c0_74, %c8_75, %c0_76] : memref<2x16x32xf32, #tpu.memory_space<vmem>>, vector<1x2x32xf32>
    %182 = vector.shape_cast %181 : vector<1x2x32xf32> to vector<2x32xf32>
    %183 = vector.shape_cast %180 : vector<2x32xf32> to vector<1x2x32xf32>
    tpu.vector_store %arg13[%c0_74, %c8_75, %c0_76], %183 {strides = array<i32>} : memref<2x16x32xf32, #tpu.memory_space<vmem>>, vector<1x2x32xf32>,
    %184 = vector.extract_strided_slice %179 {offsets = [0, 32], sizes = [2, 32], strides = [1, 1]} : vector<2x64xf32> to vector<2x32xf32>
    %c1_77 = arith.constant 1 : index
    %c6_78 = arith.constant 6 : index
    %c0_79 = arith.constant 0 : index
    %185 = vector.load %arg13[%c1_77, %c6_78, %c0_79] : memref<2x16x32xf32, #tpu.memory_space<vmem>>, vector<1x2x32xf32>
    %186 = vector.shape_cast %185 : vector<1x2x32xf32> to vector<2x32xf32>
    %187 = vector.shape_cast %184 : vector<2x32xf32> to vector<1x2x32xf32>
    tpu.vector_store %arg13[%c1_77, %c6_78, %c0_79], %187 {strides = array<i32>} : memref<2x16x32xf32, #tpu.memory_space<vmem>>, vector<1x2x32xf32>,
    %c10_80 = arith.constant 10 : index
    %c0_81 = arith.constant 0 : index
    %188 = vector.load %arg12[%c10_80, %c0_81] : memref<16x256xf32, #tpu.memory_space<vmem>>, vector<2x256xf32>
    %cst_82 = arith.constant dense<0.000000e+00> : vector<2x256xf32>
    %189 = tpu.matmul %179, %40, %cst_82 {dimension_numbers = #tpu.dot_dimension_numbers<[1], [0], [0], [1], [0, 0, 1, 1], [], []>} : vector<2x64xf32>, vector<64x256xf32>, vector<2x256xf32> -> vector<2x256xf32>
    %190 = arith.addf %188, %189 : vector<2x256xf32>
    %191 = arith.negf %190 : vector<2x256xf32>
    %192 = math.exp %191 : vector<2x256xf32>
    %cst_83 = arith.constant 1.000000e+00 : f32
    %193 = vector.broadcast %cst_83 : f32 to vector<2x256xf32>
    %194 = arith.addf %193, %192 : vector<2x256xf32>
    %195 = arith.divf %193, %194 : vector<2x256xf32>
    %196 = vector.extract_strided_slice %195 {offsets = [0, 0], sizes = [2, 64], strides = [1, 1]} : vector<2x256xf32> to vector<2x64xf32>
    %197 = vector.extract_strided_slice %195 {offsets = [0, 64], sizes = [2, 64], strides = [1, 1]} : vector<2x256xf32> to vector<2x64xf32>
    %198 = vector.extract_strided_slice %195 {offsets = [0, 128], sizes = [2, 64], strides = [1, 1]} : vector<2x256xf32> to vector<2x64xf32>
    %cst_84 = arith.constant 2.000000e+00 : f32
    %199 = vector.broadcast %cst_84 : f32 to vector<2x64xf32>
    %200 = arith.mulf %199, %198 : vector<2x64xf32>
    %cst_85 = arith.constant 1.000000e+00 : f32
    %201 = vector.broadcast %cst_85 : f32 to vector<2x64xf32>
    %202 = arith.subf %200, %201 : vector<2x64xf32>
    %203 = vector.extract_strided_slice %195 {offsets = [0, 192], sizes = [2, 64], strides = [1, 1]} : vector<2x256xf32> to vector<2x64xf32>
    %204 = arith.mulf %197, %177 : vector<2x64xf32>
    %205 = arith.mulf %196, %202 : vector<2x64xf32>
    %206 = arith.addf %204, %205 : vector<2x64xf32>
    %207 = math.tanh %206 : vector<2x64xf32>
    %208 = arith.mulf %203, %207 : vector<2x64xf32>
    %209 = vector.extract_strided_slice %208 {offsets = [0, 0], sizes = [2, 32], strides = [1, 1]} : vector<2x64xf32> to vector<2x32xf32>
    %c0_86 = arith.constant 0 : index
    %c10_87 = arith.constant 10 : index
    %c0_88 = arith.constant 0 : index
    %210 = vector.load %arg13[%c0_86, %c10_87, %c0_88] : memref<2x16x32xf32, #tpu.memory_space<vmem>>, vector<1x2x32xf32>
    %211 = vector.shape_cast %210 : vector<1x2x32xf32> to vector<2x32xf32>
    %212 = vector.shape_cast %209 : vector<2x32xf32> to vector<1x2x32xf32>
    tpu.vector_store %arg13[%c0_86, %c10_87, %c0_88], %212 {strides = array<i32>} : memref<2x16x32xf32, #tpu.memory_space<vmem>>, vector<1x2x32xf32>,
    %213 = vector.extract_strided_slice %208 {offsets = [0, 32], sizes = [2, 32], strides = [1, 1]} : vector<2x64xf32> to vector<2x32xf32>
    %c1_89 = arith.constant 1 : index
    %c4_90 = arith.constant 4 : index
    %c0_91 = arith.constant 0 : index
    %214 = vector.load %arg13[%c1_89, %c4_90, %c0_91] : memref<2x16x32xf32, #tpu.memory_space<vmem>>, vector<1x2x32xf32>
    %215 = vector.shape_cast %214 : vector<1x2x32xf32> to vector<2x32xf32>
    %216 = vector.shape_cast %213 : vector<2x32xf32> to vector<1x2x32xf32>
    tpu.vector_store %arg13[%c1_89, %c4_90, %c0_91], %216 {strides = array<i32>} : memref<2x16x32xf32, #tpu.memory_space<vmem>>, vector<1x2x32xf32>,
    %c12_92 = arith.constant 12 : index
    %c0_93 = arith.constant 0 : index
    %217 = vector.load %arg12[%c12_92, %c0_93] : memref<16x256xf32, #tpu.memory_space<vmem>>, vector<2x256xf32>
    %cst_94 = arith.constant dense<0.000000e+00> : vector<2x256xf32>
    %218 = tpu.matmul %208, %40, %cst_94 {dimension_numbers = #tpu.dot_dimension_numbers<[1], [0], [0], [1], [0, 0, 1, 1], [], []>} : vector<2x64xf32>, vector<64x256xf32>, vector<2x256xf32> -> vector<2x256xf32>
    %219 = arith.addf %217, %218 : vector<2x256xf32>
    %220 = arith.negf %219 : vector<2x256xf32>
    %221 = math.exp %220 : vector<2x256xf32>
    %cst_95 = arith.constant 1.000000e+00 : f32
    %222 = vector.broadcast %cst_95 : f32 to vector<2x256xf32>
    %223 = arith.addf %222, %221 : vector<2x256xf32>
    %224 = arith.divf %222, %223 : vector<2x256xf32>
    %225 = vector.extract_strided_slice %224 {offsets = [0, 0], sizes = [2, 64], strides = [1, 1]} : vector<2x256xf32> to vector<2x64xf32>
    %226 = vector.extract_strided_slice %224 {offsets = [0, 64], sizes = [2, 64], strides = [1, 1]} : vector<2x256xf32> to vector<2x64xf32>
    %227 = vector.extract_strided_slice %224 {offsets = [0, 128], sizes = [2, 64], strides = [1, 1]} : vector<2x256xf32> to vector<2x64xf32>
    %cst_96 = arith.constant 2.000000e+00 : f32
    %228 = vector.broadcast %cst_96 : f32 to vector<2x64xf32>
    %229 = arith.mulf %228, %227 : vector<2x64xf32>
    %cst_97 = arith.constant 1.000000e+00 : f32
    %230 = vector.broadcast %cst_97 : f32 to vector<2x64xf32>
    %231 = arith.subf %229, %230 : vector<2x64xf32>
    %232 = vector.extract_strided_slice %224 {offsets = [0, 192], sizes = [2, 64], strides = [1, 1]} : vector<2x256xf32> to vector<2x64xf32>
    %233 = arith.mulf %226, %206 : vector<2x64xf32>
    %234 = arith.mulf %225, %231 : vector<2x64xf32>
    %235 = arith.addf %233, %234 : vector<2x64xf32>
    %236 = math.tanh %235 : vector<2x64xf32>
    %237 = arith.mulf %232, %236 : vector<2x64xf32>
    %238 = vector.extract_strided_slice %237 {offsets = [0, 0], sizes = [2, 32], strides = [1, 1]} : vector<2x64xf32> to vector<2x32xf32>
    %c0_98 = arith.constant 0 : index
    %c12_99 = arith.constant 12 : index
    %c0_100 = arith.constant 0 : index
    %239 = vector.load %arg13[%c0_98, %c12_99, %c0_100] : memref<2x16x32xf32, #tpu.memory_space<vmem>>, vector<1x2x32xf32>
    %240 = vector.shape_cast %239 : vector<1x2x32xf32> to vector<2x32xf32>
    %241 = vector.shape_cast %238 : vector<2x32xf32> to vector<1x2x32xf32>
    tpu.vector_store %arg13[%c0_98, %c12_99, %c0_100], %241 {strides = array<i32>} : memref<2x16x32xf32, #tpu.memory_space<vmem>>, vector<1x2x32xf32>,
    %242 = vector.extract_strided_slice %237 {offsets = [0, 32], sizes = [2, 32], strides = [1, 1]} : vector<2x64xf32> to vector<2x32xf32>
    %c1_101 = arith.constant 1 : index
    %c2_102 = arith.constant 2 : index
    %c0_103 = arith.constant 0 : index
    %243 = vector.load %arg13[%c1_101, %c2_102, %c0_103] : memref<2x16x32xf32, #tpu.memory_space<vmem>>, vector<1x2x32xf32>
    %244 = vector.shape_cast %243 : vector<1x2x32xf32> to vector<2x32xf32>
    %245 = vector.shape_cast %242 : vector<2x32xf32> to vector<1x2x32xf32>
    tpu.vector_store %arg13[%c1_101, %c2_102, %c0_103], %245 {strides = array<i32>} : memref<2x16x32xf32, #tpu.memory_space<vmem>>, vector<1x2x32xf32>,
    %c14_104 = arith.constant 14 : index
    %c0_105 = arith.constant 0 : index
    %246 = vector.load %arg12[%c14_104, %c0_105] : memref<16x256xf32, #tpu.memory_space<vmem>>, vector<2x256xf32>
    %cst_106 = arith.constant dense<0.000000e+00> : vector<2x256xf32>
    %247 = tpu.matmul %237, %40, %cst_106 {dimension_numbers = #tpu.dot_dimension_numbers<[1], [0], [0], [1], [0, 0, 1, 1], [], []>} : vector<2x64xf32>, vector<64x256xf32>, vector<2x256xf32> -> vector<2x256xf32>
    %248 = arith.addf %246, %247 : vector<2x256xf32>
    %249 = arith.negf %248 : vector<2x256xf32>
    %250 = math.exp %249 : vector<2x256xf32>
    %cst_107 = arith.constant 1.000000e+00 : f32
    %251 = vector.broadcast %cst_107 : f32 to vector<2x256xf32>
    %252 = arith.addf %251, %250 : vector<2x256xf32>
    %253 = arith.divf %251, %252 : vector<2x256xf32>
    %254 = vector.extract_strided_slice %253 {offsets = [0, 0], sizes = [2, 64], strides = [1, 1]} : vector<2x256xf32> to vector<2x64xf32>
    %255 = vector.extract_strided_slice %253 {offsets = [0, 64], sizes = [2, 64], strides = [1, 1]} : vector<2x256xf32> to vector<2x64xf32>
    %256 = vector.extract_strided_slice %253 {offsets = [0, 128], sizes = [2, 64], strides = [1, 1]} : vector<2x256xf32> to vector<2x64xf32>
    %cst_108 = arith.constant 2.000000e+00 : f32
    %257 = vector.broadcast %cst_108 : f32 to vector<2x64xf32>
    %258 = arith.mulf %257, %256 : vector<2x64xf32>
    %cst_109 = arith.constant 1.000000e+00 : f32
    %259 = vector.broadcast %cst_109 : f32 to vector<2x64xf32>
    %260 = arith.subf %258, %259 : vector<2x64xf32>
    %261 = vector.extract_strided_slice %253 {offsets = [0, 192], sizes = [2, 64], strides = [1, 1]} : vector<2x256xf32> to vector<2x64xf32>
    %262 = arith.mulf %255, %235 : vector<2x64xf32>
    %263 = arith.mulf %254, %260 : vector<2x64xf32>
    %264 = arith.addf %262, %263 : vector<2x64xf32>
    %265 = math.tanh %264 : vector<2x64xf32>
    %266 = arith.mulf %261, %265 : vector<2x64xf32>
    %267 = vector.extract_strided_slice %266 {offsets = [0, 0], sizes = [2, 32], strides = [1, 1]} : vector<2x64xf32> to vector<2x32xf32>
    %c0_110 = arith.constant 0 : index
    %c14_111 = arith.constant 14 : index
    %c0_112 = arith.constant 0 : index
    %268 = vector.load %arg13[%c0_110, %c14_111, %c0_112] : memref<2x16x32xf32, #tpu.memory_space<vmem>>, vector<1x2x32xf32>
    %269 = vector.shape_cast %268 : vector<1x2x32xf32> to vector<2x32xf32>
    %270 = vector.shape_cast %267 : vector<2x32xf32> to vector<1x2x32xf32>
    tpu.vector_store %arg13[%c0_110, %c14_111, %c0_112], %270 {strides = array<i32>} : memref<2x16x32xf32, #tpu.memory_space<vmem>>, vector<1x2x32xf32>,
    %271 = vector.extract_strided_slice %266 {offsets = [0, 32], sizes = [2, 32], strides = [1, 1]} : vector<2x64xf32> to vector<2x32xf32>
    %c1_113 = arith.constant 1 : index
    %c0_114 = arith.constant 0 : index
    %c0_115 = arith.constant 0 : index
    %272 = vector.load %arg13[%c1_113, %c0_114, %c0_115] : memref<2x16x32xf32, #tpu.memory_space<vmem>>, vector<1x2x32xf32>
    %273 = vector.shape_cast %272 : vector<1x2x32xf32> to vector<2x32xf32>
    %274 = vector.shape_cast %271 : vector<2x32xf32> to vector<1x2x32xf32>
    tpu.vector_store %arg13[%c1_113, %c0_114, %c0_115], %274 {strides = array<i32>} : memref<2x16x32xf32, #tpu.memory_space<vmem>>, vector<1x2x32xf32>,
    %c0_116 = arith.constant 0 : index
    %c0_117 = arith.constant 0 : index
    %c0_118 = arith.constant 0 : index
    %275 = vector.load %arg13[%c0_116, %c0_117, %c0_118] : memref<2x16x32xf32, #tpu.memory_space<vmem>>, vector<1x16x32xf32>
    %276 = vector.shape_cast %275 : vector<1x16x32xf32> to vector<16x32xf32>
    %c1_119 = arith.constant 1 : index
    %c0_120 = arith.constant 0 : index
    %c0_121 = arith.constant 0 : index
    %277 = vector.load %arg13[%c1_119, %c0_120, %c0_121] : memref<2x16x32xf32, #tpu.memory_space<vmem>>, vector<1x16x32xf32>
    %278 = vector.shape_cast %277 : vector<1x16x32xf32> to vector<16x32xf32>
    %c0_122 = arith.constant 0 : index
    %c0_123 = arith.constant 0 : index
    %279 = vector.load %arg5[%c0_122, %c0_123] : memref<64x256xf32, #tpu.memory_space<vmem>>, vector<32x256xf32>
    %c0_124 = arith.constant 0 : index
    %c0_125 = arith.constant 0 : index
    %280 = vector.load %arg6[%c0_124, %c0_125] : memref<64x256xf32, #tpu.memory_space<vmem>>, vector<32x256xf32>
    %cst_126 = arith.constant dense<0.000000e+00> : vector<16x256xf32>
    %281 = tpu.matmul %276, %279, %cst_126 {dimension_numbers = #tpu.dot_dimension_numbers<[1], [0], [0], [1], [0, 0, 1, 1], [], []>} : vector<16x32xf32>, vector<32x256xf32>, vector<16x256xf32> -> vector<16x256xf32>
    %cst_127 = arith.constant dense<0.000000e+00> : vector<16x256xf32>
    %282 = tpu.matmul %276, %280, %cst_127 {dimension_numbers = #tpu.dot_dimension_numbers<[1], [0], [0], [1], [0, 0, 1, 1], [], []>} : vector<16x32xf32>, vector<32x256xf32>, vector<16x256xf32> -> vector<16x256xf32>
    %c32 = arith.constant 32 : index
    %c0_128 = arith.constant 0 : index
    %283 = vector.load %arg5[%c32, %c0_128] : memref<64x256xf32, #tpu.memory_space<vmem>>, vector<32x256xf32>
    %c32_129 = arith.constant 32 : index
    %c0_130 = arith.constant 0 : index
    %284 = vector.load %arg6[%c32_129, %c0_130] : memref<64x256xf32, #tpu.memory_space<vmem>>, vector<32x256xf32>
    %cst_131 = arith.constant dense<0.000000e+00> : vector<16x256xf32>
    %285 = tpu.matmul %278, %283, %cst_131 {dimension_numbers = #tpu.dot_dimension_numbers<[1], [0], [0], [1], [0, 0, 1, 1], [], []>} : vector<16x32xf32>, vector<32x256xf32>, vector<16x256xf32> -> vector<16x256xf32>
    %cst_132 = arith.constant dense<0.000000e+00> : vector<16x256xf32>
    %286 = tpu.matmul %278, %284, %cst_132 {dimension_numbers = #tpu.dot_dimension_numbers<[1], [0], [0], [1], [0, 0, 1, 1], [], []>} : vector<16x32xf32>, vector<32x256xf32>, vector<16x256xf32> -> vector<16x256xf32>
    %287 = arith.addf %281, %285 : vector<16x256xf32>
    %288 = arith.addf %282, %286 : vector<16x256xf32>
    %c0_133 = arith.constant 0 : index
    %c0_134 = arith.constant 0 : index
    %289 = vector.load %arg8[%c0_133, %c0_134] : memref<1x256xf32, #tpu.memory_space<vmem>>, vector<1x256xf32>
    %290 = vector.broadcast %289 : vector<1x256xf32> to vector<16x256xf32>
    %291 = arith.addf %287, %290 : vector<16x256xf32>
    %292 = vector.extract_strided_slice %291 {offsets = [0, 0], sizes = [2, 256], strides = [1, 1]} : vector<16x256xf32> to vector<2x256xf32>
    %293 = vector.extract_strided_slice %288 {offsets = [14, 0], sizes = [2, 256], strides = [1, 1]} : vector<16x256xf32> to vector<2x256xf32>
    %294 = arith.addf %292, %293 : vector<2x256xf32>
    %c0_135 = arith.constant 0 : index
    %c0_136 = arith.constant 0 : index
    %295 = vector.load %arg12[%c0_135, %c0_136] : memref<16x256xf32, #tpu.memory_space<vmem>>, vector<2x256xf32>
    tpu.vector_store %arg12[%c0_135, %c0_136], %294 {strides = array<i32>} : memref<16x256xf32, #tpu.memory_space<vmem>>, vector<2x256xf32>,
    %296 = vector.extract_strided_slice %291 {offsets = [2, 0], sizes = [2, 256], strides = [1, 1]} : vector<16x256xf32> to vector<2x256xf32>
    %297 = vector.extract_strided_slice %288 {offsets = [12, 0], sizes = [2, 256], strides = [1, 1]} : vector<16x256xf32> to vector<2x256xf32>
    %298 = arith.addf %296, %297 : vector<2x256xf32>
    %c2_137 = arith.constant 2 : index
    %c0_138 = arith.constant 0 : index
    %299 = vector.load %arg12[%c2_137, %c0_138] : memref<16x256xf32, #tpu.memory_space<vmem>>, vector<2x256xf32>
    tpu.vector_store %arg12[%c2_137, %c0_138], %298 {strides = array<i32>} : memref<16x256xf32, #tpu.memory_space<vmem>>, vector<2x256xf32>,
    %300 = vector.extract_strided_slice %291 {offsets = [4, 0], sizes = [2, 256], strides = [1, 1]} : vector<16x256xf32> to vector<2x256xf32>
    %301 = vector.extract_strided_slice %288 {offsets = [10, 0], sizes = [2, 256], strides = [1, 1]} : vector<16x256xf32> to vector<2x256xf32>
    %302 = arith.addf %300, %301 : vector<2x256xf32>
    %c4_139 = arith.constant 4 : index
    %c0_140 = arith.constant 0 : index
    %303 = vector.load %arg12[%c4_139, %c0_140] : memref<16x256xf32, #tpu.memory_space<vmem>>, vector<2x256xf32>
    tpu.vector_store %arg12[%c4_139, %c0_140], %302 {strides = array<i32>} : memref<16x256xf32, #tpu.memory_space<vmem>>, vector<2x256xf32>,
    %304 = vector.extract_strided_slice %291 {offsets = [6, 0], sizes = [2, 256], strides = [1, 1]} : vector<16x256xf32> to vector<2x256xf32>
    %305 = vector.extract_strided_slice %288 {offsets = [8, 0], sizes = [2, 256], strides = [1, 1]} : vector<16x256xf32> to vector<2x256xf32>
    %306 = arith.addf %304, %305 : vector<2x256xf32>
    %c6_141 = arith.constant 6 : index
    %c0_142 = arith.constant 0 : index
    %307 = vector.load %arg12[%c6_141, %c0_142] : memref<16x256xf32, #tpu.memory_space<vmem>>, vector<2x256xf32>
    tpu.vector_store %arg12[%c6_141, %c0_142], %306 {strides = array<i32>} : memref<16x256xf32, #tpu.memory_space<vmem>>, vector<2x256xf32>,
    %308 = vector.extract_strided_slice %291 {offsets = [8, 0], sizes = [2, 256], strides = [1, 1]} : vector<16x256xf32> to vector<2x256xf32>
    %309 = vector.extract_strided_slice %288 {offsets = [6, 0], sizes = [2, 256], strides = [1, 1]} : vector<16x256xf32> to vector<2x256xf32>
    %310 = arith.addf %308, %309 : vector<2x256xf32>
    %c8_143 = arith.constant 8 : index
    %c0_144 = arith.constant 0 : index
    %311 = vector.load %arg12[%c8_143, %c0_144] : memref<16x256xf32, #tpu.memory_space<vmem>>, vector<2x256xf32>
    tpu.vector_store %arg12[%c8_143, %c0_144], %310 {strides = array<i32>} : memref<16x256xf32, #tpu.memory_space<vmem>>, vector<2x256xf32>,
    %312 = vector.extract_strided_slice %291 {offsets = [10, 0], sizes = [2, 256], strides = [1, 1]} : vector<16x256xf32> to vector<2x256xf32>
    %313 = vector.extract_strided_slice %288 {offsets = [4, 0], sizes = [2, 256], strides = [1, 1]} : vector<16x256xf32> to vector<2x256xf32>
    %314 = arith.addf %312, %313 : vector<2x256xf32>
    %c10_145 = arith.constant 10 : index
    %c0_146 = arith.constant 0 : index
    %315 = vector.load %arg12[%c10_145, %c0_146] : memref<16x256xf32, #tpu.memory_space<vmem>>, vector<2x256xf32>
    tpu.vector_store %arg12[%c10_145, %c0_146], %314 {strides = array<i32>} : memref<16x256xf32, #tpu.memory_space<vmem>>, vector<2x256xf32>,
    %316 = vector.extract_strided_slice %291 {offsets = [12, 0], sizes = [2, 256], strides = [1, 1]} : vector<16x256xf32> to vector<2x256xf32>
    %317 = vector.extract_strided_slice %288 {offsets = [2, 0], sizes = [2, 256], strides = [1, 1]} : vector<16x256xf32> to vector<2x256xf32>
    %318 = arith.addf %316, %317 : vector<2x256xf32>
    %c12_147 = arith.constant 12 : index
    %c0_148 = arith.constant 0 : index
    %319 = vector.load %arg12[%c12_147, %c0_148] : memref<16x256xf32, #tpu.memory_space<vmem>>, vector<2x256xf32>
    tpu.vector_store %arg12[%c12_147, %c0_148], %318 {strides = array<i32>} : memref<16x256xf32, #tpu.memory_space<vmem>>, vector<2x256xf32>,
    %320 = vector.extract_strided_slice %291 {offsets = [14, 0], sizes = [2, 256], strides = [1, 1]} : vector<16x256xf32> to vector<2x256xf32>
    %321 = vector.extract_strided_slice %288 {offsets = [0, 0], sizes = [2, 256], strides = [1, 1]} : vector<16x256xf32> to vector<2x256xf32>
    %322 = arith.addf %320, %321 : vector<2x256xf32>
    %c14_149 = arith.constant 14 : index
    %c0_150 = arith.constant 0 : index
    %323 = vector.load %arg12[%c14_149, %c0_150] : memref<16x256xf32, #tpu.memory_space<vmem>>, vector<2x256xf32>
    tpu.vector_store %arg12[%c14_149, %c0_150], %322 {strides = array<i32>} : memref<16x256xf32, #tpu.memory_space<vmem>>, vector<2x256xf32>,
    %c0_151 = arith.constant 0 : index
    %c0_152 = arith.constant 0 : index
    %324 = vector.load %arg7[%c0_151, %c0_152] : memref<64x256xf32, #tpu.memory_space<vmem>>, vector<64x256xf32>
    %cst_153 = arith.constant 0.000000e+00 : f32
    %325 = vector.broadcast %cst_153 : f32 to vector<2x64xf32>
    %cst_154 = arith.constant 0.000000e+00 : f32
    %326 = vector.broadcast %cst_154 : f32 to vector<2x64xf32>
    %c0_155 = arith.constant 0 : index
    %c0_156 = arith.constant 0 : index
    %327 = vector.load %arg12[%c0_155, %c0_156] : memref<16x256xf32, #tpu.memory_space<vmem>>, vector<2x256xf32>
    %cst_157 = arith.constant dense<0.000000e+00> : vector<2x256xf32>
    %328 = tpu.matmul %325, %324, %cst_157 {dimension_numbers = #tpu.dot_dimension_numbers<[1], [0], [0], [1], [0, 0, 1, 1], [], []>} : vector<2x64xf32>, vector<64x256xf32>, vector<2x256xf32> -> vector<2x256xf32>
    %329 = arith.addf %327, %328 : vector<2x256xf32>
    %330 = arith.negf %329 : vector<2x256xf32>
    %331 = math.exp %330 : vector<2x256xf32>
    %cst_158 = arith.constant 1.000000e+00 : f32
    %332 = vector.broadcast %cst_158 : f32 to vector<2x256xf32>
    %333 = arith.addf %332, %331 : vector<2x256xf32>
    %334 = arith.divf %332, %333 : vector<2x256xf32>
    %335 = vector.extract_strided_slice %334 {offsets = [0, 0], sizes = [2, 64], strides = [1, 1]} : vector<2x256xf32> to vector<2x64xf32>
    %336 = vector.extract_strided_slice %334 {offsets = [0, 64], sizes = [2, 64], strides = [1, 1]} : vector<2x256xf32> to vector<2x64xf32>
    %337 = vector.extract_strided_slice %334 {offsets = [0, 128], sizes = [2, 64], strides = [1, 1]} : vector<2x256xf32> to vector<2x64xf32>
    %cst_159 = arith.constant 2.000000e+00 : f32
    %338 = vector.broadcast %cst_159 : f32 to vector<2x64xf32>
    %339 = arith.mulf %338, %337 : vector<2x64xf32>
    %cst_160 = arith.constant 1.000000e+00 : f32
    %340 = vector.broadcast %cst_160 : f32 to vector<2x64xf32>
    %341 = arith.subf %339, %340 : vector<2x64xf32>
    %342 = vector.extract_strided_slice %334 {offsets = [0, 192], sizes = [2, 64], strides = [1, 1]} : vector<2x256xf32> to vector<2x64xf32>
    %343 = arith.mulf %336, %326 : vector<2x64xf32>
    %344 = arith.mulf %335, %341 : vector<2x64xf32>
    %345 = arith.addf %343, %344 : vector<2x64xf32>
    %346 = math.tanh %345 : vector<2x64xf32>
    %347 = arith.mulf %342, %346 : vector<2x64xf32>
    %c2_161 = arith.constant 2 : index
    %c0_162 = arith.constant 0 : index
    %348 = vector.load %arg12[%c2_161, %c0_162] : memref<16x256xf32, #tpu.memory_space<vmem>>, vector<2x256xf32>
    %cst_163 = arith.constant dense<0.000000e+00> : vector<2x256xf32>
    %349 = tpu.matmul %347, %324, %cst_163 {dimension_numbers = #tpu.dot_dimension_numbers<[1], [0], [0], [1], [0, 0, 1, 1], [], []>} : vector<2x64xf32>, vector<64x256xf32>, vector<2x256xf32> -> vector<2x256xf32>
    %350 = arith.addf %348, %349 : vector<2x256xf32>
    %351 = arith.negf %350 : vector<2x256xf32>
    %352 = math.exp %351 : vector<2x256xf32>
    %cst_164 = arith.constant 1.000000e+00 : f32
    %353 = vector.broadcast %cst_164 : f32 to vector<2x256xf32>
    %354 = arith.addf %353, %352 : vector<2x256xf32>
    %355 = arith.divf %353, %354 : vector<2x256xf32>
    %356 = vector.extract_strided_slice %355 {offsets = [0, 0], sizes = [2, 64], strides = [1, 1]} : vector<2x256xf32> to vector<2x64xf32>
    %357 = vector.extract_strided_slice %355 {offsets = [0, 64], sizes = [2, 64], strides = [1, 1]} : vector<2x256xf32> to vector<2x64xf32>
    %358 = vector.extract_strided_slice %355 {offsets = [0, 128], sizes = [2, 64], strides = [1, 1]} : vector<2x256xf32> to vector<2x64xf32>
    %cst_165 = arith.constant 2.000000e+00 : f32
    %359 = vector.broadcast %cst_165 : f32 to vector<2x64xf32>
    %360 = arith.mulf %359, %358 : vector<2x64xf32>
    %cst_166 = arith.constant 1.000000e+00 : f32
    %361 = vector.broadcast %cst_166 : f32 to vector<2x64xf32>
    %362 = arith.subf %360, %361 : vector<2x64xf32>
    %363 = vector.extract_strided_slice %355 {offsets = [0, 192], sizes = [2, 64], strides = [1, 1]} : vector<2x256xf32> to vector<2x64xf32>
    %364 = arith.mulf %357, %345 : vector<2x64xf32>
    %365 = arith.mulf %356, %362 : vector<2x64xf32>
    %366 = arith.addf %364, %365 : vector<2x64xf32>
    %367 = math.tanh %366 : vector<2x64xf32>
    %368 = arith.mulf %363, %367 : vector<2x64xf32>
    %c4_167 = arith.constant 4 : index
    %c0_168 = arith.constant 0 : index
    %369 = vector.load %arg12[%c4_167, %c0_168] : memref<16x256xf32, #tpu.memory_space<vmem>>, vector<2x256xf32>
    %cst_169 = arith.constant dense<0.000000e+00> : vector<2x256xf32>
    %370 = tpu.matmul %368, %324, %cst_169 {dimension_numbers = #tpu.dot_dimension_numbers<[1], [0], [0], [1], [0, 0, 1, 1], [], []>} : vector<2x64xf32>, vector<64x256xf32>, vector<2x256xf32> -> vector<2x256xf32>
    %371 = arith.addf %369, %370 : vector<2x256xf32>
    %372 = arith.negf %371 : vector<2x256xf32>
    %373 = math.exp %372 : vector<2x256xf32>
    %cst_170 = arith.constant 1.000000e+00 : f32
    %374 = vector.broadcast %cst_170 : f32 to vector<2x256xf32>
    %375 = arith.addf %374, %373 : vector<2x256xf32>
    %376 = arith.divf %374, %375 : vector<2x256xf32>
    %377 = vector.extract_strided_slice %376 {offsets = [0, 0], sizes = [2, 64], strides = [1, 1]} : vector<2x256xf32> to vector<2x64xf32>
    %378 = vector.extract_strided_slice %376 {offsets = [0, 64], sizes = [2, 64], strides = [1, 1]} : vector<2x256xf32> to vector<2x64xf32>
    %379 = vector.extract_strided_slice %376 {offsets = [0, 128], sizes = [2, 64], strides = [1, 1]} : vector<2x256xf32> to vector<2x64xf32>
    %cst_171 = arith.constant 2.000000e+00 : f32
    %380 = vector.broadcast %cst_171 : f32 to vector<2x64xf32>
    %381 = arith.mulf %380, %379 : vector<2x64xf32>
    %cst_172 = arith.constant 1.000000e+00 : f32
    %382 = vector.broadcast %cst_172 : f32 to vector<2x64xf32>
    %383 = arith.subf %381, %382 : vector<2x64xf32>
    %384 = vector.extract_strided_slice %376 {offsets = [0, 192], sizes = [2, 64], strides = [1, 1]} : vector<2x256xf32> to vector<2x64xf32>
    %385 = arith.mulf %378, %366 : vector<2x64xf32>
    %386 = arith.mulf %377, %383 : vector<2x64xf32>
    %387 = arith.addf %385, %386 : vector<2x64xf32>
    %388 = math.tanh %387 : vector<2x64xf32>
    %389 = arith.mulf %384, %388 : vector<2x64xf32>
    %c6_173 = arith.constant 6 : index
    %c0_174 = arith.constant 0 : index
    %390 = vector.load %arg12[%c6_173, %c0_174] : memref<16x256xf32, #tpu.memory_space<vmem>>, vector<2x256xf32>
    %cst_175 = arith.constant dense<0.000000e+00> : vector<2x256xf32>
    %391 = tpu.matmul %389, %324, %cst_175 {dimension_numbers = #tpu.dot_dimension_numbers<[1], [0], [0], [1], [0, 0, 1, 1], [], []>} : vector<2x64xf32>, vector<64x256xf32>, vector<2x256xf32> -> vector<2x256xf32>
    %392 = arith.addf %390, %391 : vector<2x256xf32>
    %393 = arith.negf %392 : vector<2x256xf32>
    %394 = math.exp %393 : vector<2x256xf32>
    %cst_176 = arith.constant 1.000000e+00 : f32
    %395 = vector.broadcast %cst_176 : f32 to vector<2x256xf32>
    %396 = arith.addf %395, %394 : vector<2x256xf32>
    %397 = arith.divf %395, %396 : vector<2x256xf32>
    %398 = vector.extract_strided_slice %397 {offsets = [0, 0], sizes = [2, 64], strides = [1, 1]} : vector<2x256xf32> to vector<2x64xf32>
    %399 = vector.extract_strided_slice %397 {offsets = [0, 64], sizes = [2, 64], strides = [1, 1]} : vector<2x256xf32> to vector<2x64xf32>
    %400 = vector.extract_strided_slice %397 {offsets = [0, 128], sizes = [2, 64], strides = [1, 1]} : vector<2x256xf32> to vector<2x64xf32>
    %cst_177 = arith.constant 2.000000e+00 : f32
    %401 = vector.broadcast %cst_177 : f32 to vector<2x64xf32>
    %402 = arith.mulf %401, %400 : vector<2x64xf32>
    %cst_178 = arith.constant 1.000000e+00 : f32
    %403 = vector.broadcast %cst_178 : f32 to vector<2x64xf32>
    %404 = arith.subf %402, %403 : vector<2x64xf32>
    %405 = vector.extract_strided_slice %397 {offsets = [0, 192], sizes = [2, 64], strides = [1, 1]} : vector<2x256xf32> to vector<2x64xf32>
    %406 = arith.mulf %399, %387 : vector<2x64xf32>
    %407 = arith.mulf %398, %404 : vector<2x64xf32>
    %408 = arith.addf %406, %407 : vector<2x64xf32>
    %409 = math.tanh %408 : vector<2x64xf32>
    %410 = arith.mulf %405, %409 : vector<2x64xf32>
    %c8_179 = arith.constant 8 : index
    %c0_180 = arith.constant 0 : index
    %411 = vector.load %arg12[%c8_179, %c0_180] : memref<16x256xf32, #tpu.memory_space<vmem>>, vector<2x256xf32>
    %cst_181 = arith.constant dense<0.000000e+00> : vector<2x256xf32>
    %412 = tpu.matmul %410, %324, %cst_181 {dimension_numbers = #tpu.dot_dimension_numbers<[1], [0], [0], [1], [0, 0, 1, 1], [], []>} : vector<2x64xf32>, vector<64x256xf32>, vector<2x256xf32> -> vector<2x256xf32>
    %413 = arith.addf %411, %412 : vector<2x256xf32>
    %414 = arith.negf %413 : vector<2x256xf32>
    %415 = math.exp %414 : vector<2x256xf32>
    %cst_182 = arith.constant 1.000000e+00 : f32
    %416 = vector.broadcast %cst_182 : f32 to vector<2x256xf32>
    %417 = arith.addf %416, %415 : vector<2x256xf32>
    %418 = arith.divf %416, %417 : vector<2x256xf32>
    %419 = vector.extract_strided_slice %418 {offsets = [0, 0], sizes = [2, 64], strides = [1, 1]} : vector<2x256xf32> to vector<2x64xf32>
    %420 = vector.extract_strided_slice %418 {offsets = [0, 64], sizes = [2, 64], strides = [1, 1]} : vector<2x256xf32> to vector<2x64xf32>
    %421 = vector.extract_strided_slice %418 {offsets = [0, 128], sizes = [2, 64], strides = [1, 1]} : vector<2x256xf32> to vector<2x64xf32>
    %cst_183 = arith.constant 2.000000e+00 : f32
    %422 = vector.broadcast %cst_183 : f32 to vector<2x64xf32>
    %423 = arith.mulf %422, %421 : vector<2x64xf32>
    %cst_184 = arith.constant 1.000000e+00 : f32
    %424 = vector.broadcast %cst_184 : f32 to vector<2x64xf32>
    %425 = arith.subf %423, %424 : vector<2x64xf32>
    %426 = vector.extract_strided_slice %418 {offsets = [0, 192], sizes = [2, 64], strides = [1, 1]} : vector<2x256xf32> to vector<2x64xf32>
    %427 = arith.mulf %420, %408 : vector<2x64xf32>
    %428 = arith.mulf %419, %425 : vector<2x64xf32>
    %429 = arith.addf %427, %428 : vector<2x64xf32>
    %430 = math.tanh %429 : vector<2x64xf32>
    %431 = arith.mulf %426, %430 : vector<2x64xf32>
    %c10_185 = arith.constant 10 : index
    %c0_186 = arith.constant 0 : index
    %432 = vector.load %arg12[%c10_185, %c0_186] : memref<16x256xf32, #tpu.memory_space<vmem>>, vector<2x256xf32>
    %cst_187 = arith.constant dense<0.000000e+00> : vector<2x256xf32>
    %433 = tpu.matmul %431, %324, %cst_187 {dimension_numbers = #tpu.dot_dimension_numbers<[1], [0], [0], [1], [0, 0, 1, 1], [], []>} : vector<2x64xf32>, vector<64x256xf32>, vector<2x256xf32> -> vector<2x256xf32>
    %434 = arith.addf %432, %433 : vector<2x256xf32>
    %435 = arith.negf %434 : vector<2x256xf32>
    %436 = math.exp %435 : vector<2x256xf32>
    %cst_188 = arith.constant 1.000000e+00 : f32
    %437 = vector.broadcast %cst_188 : f32 to vector<2x256xf32>
    %438 = arith.addf %437, %436 : vector<2x256xf32>
    %439 = arith.divf %437, %438 : vector<2x256xf32>
    %440 = vector.extract_strided_slice %439 {offsets = [0, 0], sizes = [2, 64], strides = [1, 1]} : vector<2x256xf32> to vector<2x64xf32>
    %441 = vector.extract_strided_slice %439 {offsets = [0, 64], sizes = [2, 64], strides = [1, 1]} : vector<2x256xf32> to vector<2x64xf32>
    %442 = vector.extract_strided_slice %439 {offsets = [0, 128], sizes = [2, 64], strides = [1, 1]} : vector<2x256xf32> to vector<2x64xf32>
    %cst_189 = arith.constant 2.000000e+00 : f32
    %443 = vector.broadcast %cst_189 : f32 to vector<2x64xf32>
    %444 = arith.mulf %443, %442 : vector<2x64xf32>
    %cst_190 = arith.constant 1.000000e+00 : f32
    %445 = vector.broadcast %cst_190 : f32 to vector<2x64xf32>
    %446 = arith.subf %444, %445 : vector<2x64xf32>
    %447 = vector.extract_strided_slice %439 {offsets = [0, 192], sizes = [2, 64], strides = [1, 1]} : vector<2x256xf32> to vector<2x64xf32>
    %448 = arith.mulf %441, %429 : vector<2x64xf32>
    %449 = arith.mulf %440, %446 : vector<2x64xf32>
    %450 = arith.addf %448, %449 : vector<2x64xf32>
    %451 = math.tanh %450 : vector<2x64xf32>
    %452 = arith.mulf %447, %451 : vector<2x64xf32>
    %c12_191 = arith.constant 12 : index
    %c0_192 = arith.constant 0 : index
    %453 = vector.load %arg12[%c12_191, %c0_192] : memref<16x256xf32, #tpu.memory_space<vmem>>, vector<2x256xf32>
    %cst_193 = arith.constant dense<0.000000e+00> : vector<2x256xf32>
    %454 = tpu.matmul %452, %324, %cst_193 {dimension_numbers = #tpu.dot_dimension_numbers<[1], [0], [0], [1], [0, 0, 1, 1], [], []>} : vector<2x64xf32>, vector<64x256xf32>, vector<2x256xf32> -> vector<2x256xf32>
    %455 = arith.addf %453, %454 : vector<2x256xf32>
    %456 = arith.negf %455 : vector<2x256xf32>
    %457 = math.exp %456 : vector<2x256xf32>
    %cst_194 = arith.constant 1.000000e+00 : f32
    %458 = vector.broadcast %cst_194 : f32 to vector<2x256xf32>
    %459 = arith.addf %458, %457 : vector<2x256xf32>
    %460 = arith.divf %458, %459 : vector<2x256xf32>
    %461 = vector.extract_strided_slice %460 {offsets = [0, 0], sizes = [2, 64], strides = [1, 1]} : vector<2x256xf32> to vector<2x64xf32>
    %462 = vector.extract_strided_slice %460 {offsets = [0, 64], sizes = [2, 64], strides = [1, 1]} : vector<2x256xf32> to vector<2x64xf32>
    %463 = vector.extract_strided_slice %460 {offsets = [0, 128], sizes = [2, 64], strides = [1, 1]} : vector<2x256xf32> to vector<2x64xf32>
    %cst_195 = arith.constant 2.000000e+00 : f32
    %464 = vector.broadcast %cst_195 : f32 to vector<2x64xf32>
    %465 = arith.mulf %464, %463 : vector<2x64xf32>
    %cst_196 = arith.constant 1.000000e+00 : f32
    %466 = vector.broadcast %cst_196 : f32 to vector<2x64xf32>
    %467 = arith.subf %465, %466 : vector<2x64xf32>
    %468 = vector.extract_strided_slice %460 {offsets = [0, 192], sizes = [2, 64], strides = [1, 1]} : vector<2x256xf32> to vector<2x64xf32>
    %469 = arith.mulf %462, %450 : vector<2x64xf32>
    %470 = arith.mulf %461, %467 : vector<2x64xf32>
    %471 = arith.addf %469, %470 : vector<2x64xf32>
    %472 = math.tanh %471 : vector<2x64xf32>
    %473 = arith.mulf %468, %472 : vector<2x64xf32>
    %c14_197 = arith.constant 14 : index
    %c0_198 = arith.constant 0 : index
    %474 = vector.load %arg12[%c14_197, %c0_198] : memref<16x256xf32, #tpu.memory_space<vmem>>, vector<2x256xf32>
    %cst_199 = arith.constant dense<0.000000e+00> : vector<2x256xf32>
    %475 = tpu.matmul %473, %324, %cst_199 {dimension_numbers = #tpu.dot_dimension_numbers<[1], [0], [0], [1], [0, 0, 1, 1], [], []>} : vector<2x64xf32>, vector<64x256xf32>, vector<2x256xf32> -> vector<2x256xf32>
    %476 = arith.addf %474, %475 : vector<2x256xf32>
    %477 = arith.negf %476 : vector<2x256xf32>
    %478 = math.exp %477 : vector<2x256xf32>
    %cst_200 = arith.constant 1.000000e+00 : f32
    %479 = vector.broadcast %cst_200 : f32 to vector<2x256xf32>
    %480 = arith.addf %479, %478 : vector<2x256xf32>
    %481 = arith.divf %479, %480 : vector<2x256xf32>
    %482 = vector.extract_strided_slice %481 {offsets = [0, 0], sizes = [2, 64], strides = [1, 1]} : vector<2x256xf32> to vector<2x64xf32>
    %483 = vector.extract_strided_slice %481 {offsets = [0, 64], sizes = [2, 64], strides = [1, 1]} : vector<2x256xf32> to vector<2x64xf32>
    %484 = vector.extract_strided_slice %481 {offsets = [0, 128], sizes = [2, 64], strides = [1, 1]} : vector<2x256xf32> to vector<2x64xf32>
    %cst_201 = arith.constant 2.000000e+00 : f32
    %485 = vector.broadcast %cst_201 : f32 to vector<2x64xf32>
    %486 = arith.mulf %485, %484 : vector<2x64xf32>
    %cst_202 = arith.constant 1.000000e+00 : f32
    %487 = vector.broadcast %cst_202 : f32 to vector<2x64xf32>
    %488 = arith.subf %486, %487 : vector<2x64xf32>
    %489 = vector.extract_strided_slice %481 {offsets = [0, 192], sizes = [2, 64], strides = [1, 1]} : vector<2x256xf32> to vector<2x64xf32>
    %490 = arith.mulf %483, %471 : vector<2x64xf32>
    %491 = arith.mulf %482, %488 : vector<2x64xf32>
    %492 = arith.addf %490, %491 : vector<2x64xf32>
    %493 = math.tanh %492 : vector<2x64xf32>
    %494 = arith.mulf %489, %493 : vector<2x64xf32>
    %c0_203 = arith.constant 0 : index
    %c0_204 = arith.constant 0 : index
    %495 = vector.load %arg9[%c0_203, %c0_204] : memref<64x4xf32, #tpu.memory_space<vmem>>, vector<64x4xf32>
    %cst_205 = arith.constant dense<0.000000e+00> : vector<2x4xf32>
    %496 = tpu.matmul %494, %495, %cst_205 {dimension_numbers = #tpu.dot_dimension_numbers<[1], [0], [0], [1], [0, 0, 1, 1], [], []>} : vector<2x64xf32>, vector<64x4xf32>, vector<2x4xf32> -> vector<2x4xf32>
    %c0_206 = arith.constant 0 : index
    %c0_207 = arith.constant 0 : index
    %497 = vector.load %arg10[%c0_206, %c0_207] : memref<1x4xf32, #tpu.memory_space<vmem>>, vector<1x4xf32>
    %498 = vector.broadcast %497 : vector<1x4xf32> to vector<2x4xf32>
    %499 = arith.addf %496, %498 : vector<2x4xf32>
    %c0_208 = arith.constant 0 : index
    %c0_209 = arith.constant 0 : index
    %500 = vector.load %arg11[%c0_208, %c0_209] : memref<2x4xf32, #tpu.memory_space<vmem>>, vector<2x4xf32>
    tpu.vector_store %arg11[%c0_208, %c0_209], %499 {strides = array<i32>} : memref<2x4xf32, #tpu.memory_space<vmem>>, vector<2x4xf32>,
    return
  }
}

</mosaic_0001>

<llo_original>
// kernel: lstm_network_forward.1
$region0: #{lstm_network_forward.1}
  #allocation0 [shape = 'u32[]', space=smem, size = 0x4, offset = 0x4, fixed_abs, tag = 'smem constant byte address 0x4 - core index']
  #allocation1 [shape = 'u32[72,128]{1,0:T(1,128)}', space=vmem, size = 0x9000, scoped, tag = 'internal scratch']
  #allocation2 [shape = 'f32[16,256]{1,0:T(8,128)}', space=vmem, size = 0x4000, scoped, tag = 'scratch operand']
  #allocation3 [shape = 'f32[2,16,32]{2,1,0:T(8,128)}', space=vmem, size = 0x4000, scoped, tag = 'scratch operand']
  %s0 = inlined_call_operand.vmem [shape: f32[16,8], index: 0, kind: input, shape index: {}]
  %s1 = inlined_call_operand.vmem [shape: f32[8,256], index: 1, kind: input, shape index: {}]
  %s2 = inlined_call_operand.vmem [shape: f32[8,256], index: 2, kind: input, shape index: {}]
  %s3 = inlined_call_operand.hbm [shape: f32[64,256], index: 3, kind: input, shape index: {}]
  %s4 = inlined_call_operand.vmem [shape: f32[1,256], index: 4, kind: input, shape index: {}]
  %s5 = inlined_call_operand.hbm [shape: f32[64,256], index: 5, kind: input, shape index: {}]
  %s6 = inlined_call_operand.hbm [shape: f32[64,256], index: 6, kind: input, shape index: {}]
  %s7 = inlined_call_operand.hbm [shape: f32[64,256], index: 7, kind: input, shape index: {}]
  %s8 = inlined_call_operand.vmem [shape: f32[1,256], index: 8, kind: input, shape index: {}]
  %s9 = inlined_call_operand.vmem [shape: f32[64,4], index: 9, kind: input, shape index: {}]
  %s10 = inlined_call_operand.vmem [shape: f32[1,4], index: 10, kind: input, shape index: {}]
  %s11 = inlined_call_operand.hbm [shape: f32[2,4], index: 11, kind: output, shape index: {}]
  %s12 = sld [smem:[#allocation0]]
  $region70: #{lstm_network_forward.1} parent=0
    _
  %s14 = ssub.s32 1, %s12
  %s15 = scalar_select 0, %s14, %s12
  $region1: #{lstm_network_forward.1} parent=0
    #allocation4 [shape = 'u8[65536]{0}', space=vmem, size = 0x10000, scoped, tag = 'input window, operand 3, single buffered']
    #allocation5 [shape = 's32[1]{0}', space=sflag, size = 0x4, scoped, tag = 'scoped memory for lstm_network_forward.1']
    #allocation6 [shape = 's32[1]{0}', space=sflag, size = 0x4, scoped, tag = 'scoped memory for lstm_network_forward.1']
    #allocation7 [shape = 'u8[65536]{0}', space=vmem, size = 0x10000, scoped, tag = 'input window, operand 5, single buffered']
    #allocation8 [shape = 's32[1]{0}', space=sflag, size = 0x4, scoped, tag = 'scoped memory for lstm_network_forward.1']
    #allocation9 [shape = 'u8[65536]{0}', space=vmem, size = 0x10000, scoped, tag = 'input window, operand 6, single buffered']
    #allocation10 [shape = 'u8[65536]{0}', space=vmem, size = 0x10000, scoped, tag = 'input window, operand 7, single buffered']
    #allocation11 [shape = 's32[1]{0}', space=sflag, size = 0x4, scoped, tag = 'scoped memory for lstm_network_forward.1']
    #allocation12 [shape = 'u8[1024]{0}', space=vmem, size = 0x400, scoped, tag = 'output window, operand 0, single buffered']
    %16 = vsyncpa [#allocation5], 0
    %17 = vsyncpa [#allocation8], 0
    %18 = vsyncpa [#allocation11], 0
    %19 = vsyncpa [#allocation6], 0
    // Predicated region
    $region2: #{lstm_network_forward.1} parent=1 // pred_check
      _
    $region3: #{lstm_network_forward.1} parent=1 // pred_check_branch
      %21 = sbr.rel (0) target = $region5
    $region4: #{lstm_network_forward.1} parent=1 // pred_region
      _
    $region5: #{lstm_network_forward.1} parent=1 // pred_fallthru
      _
    // Predicated region
    $region6: #{lstm_network_forward.1} parent=1 // pred_check
      _
    $region7: #{lstm_network_forward.1} parent=1 // pred_check_branch
      %23 = sbr.rel (0) target = $region9
    $region8: #{lstm_network_forward.1} parent=1 // pred_region
      _
    $region9: #{lstm_network_forward.1} parent=1 // pred_fallthru
      _
    // Predicated region
    $region10: #{lstm_network_forward.1} parent=1 // pred_check
      _
    $region11: #{lstm_network_forward.1} parent=1 // pred_check_branch
      %25 = sbr.rel (0) target = $region13
    $region12: #{lstm_network_forward.1} parent=1 // pred_region
      _
    $region13: #{lstm_network_forward.1} parent=1 // pred_fallthru
      _
    // Predicated region
    $region14: #{lstm_network_forward.1} parent=1 // pred_check
      _
    $region15: #{lstm_network_forward.1} parent=1 // pred_check_branch
      %27 = sbr.rel (0) target = $region17
    $region16: #{lstm_network_forward.1} parent=1 // pred_region
      %29 = vsyncadd [#allocation5], 0
      %s30 = sshll.u32 %s3, 4
      %s31 = int_to_ptr.hbm [resolvable:$true] %s30
      %s32 = sshll.u32 [#allocation4], 4
      %s33 = int_to_ptr.vmem [resolvable:$true] %s32
      %38 = dma.hbm_to_vmem [thread:$0]  %s31, 2048, %s33, [#allocation5], 256, 256, 16
    $region17: #{lstm_network_forward.1} parent=1 // pred_fallthru
      _
    // Predicated region
    $region18: #{lstm_network_forward.1} parent=1 // pred_check
      _
    $region19: #{lstm_network_forward.1} parent=1 // pred_check_branch
      %40 = sbr.rel (0) target = $region21
    $region20: #{lstm_network_forward.1} parent=1 // pred_region
      _
    $region21: #{lstm_network_forward.1} parent=1 // pred_fallthru
      _
    // Predicated region
    $region22: #{lstm_network_forward.1} parent=1 // pred_check
      _
    $region23: #{lstm_network_forward.1} parent=1 // pred_check_branch
      %42 = sbr.rel (0) target = $region25
    $region24: #{lstm_network_forward.1} parent=1 // pred_region
      %44 = vsyncadd [#allocation8], 0
      %s45 = sshll.u32 %s5, 4
      %s46 = int_to_ptr.hbm [resolvable:$true] %s45
      %s47 = sshll.u32 [#allocation7], 4
      %s48 = int_to_ptr.vmem [resolvable:$true] %s47
      %53 = dma.hbm_to_vmem [thread:$0]  %s46, 2048, %s48, [#allocation8], 256, 256, 16
    $region25: #{lstm_network_forward.1} parent=1 // pred_fallthru
      _
    // Predicated region
    $region26: #{lstm_network_forward.1} parent=1 // pred_check
      _
    $region27: #{lstm_network_forward.1} parent=1 // pred_check_branch
      %55 = sbr.rel (0) target = $region29
    $region28: #{lstm_network_forward.1} parent=1 // pred_region
      %57 = vsyncadd [#allocation8], 0
      %s58 = sshll.u32 %s6, 4
      %s59 = int_to_ptr.hbm [resolvable:$true] %s58
      %s60 = sshll.u32 [#allocation9], 4
      %s61 = int_to_ptr.vmem [resolvable:$true] %s60
      %66 = dma.hbm_to_vmem [thread:$0]  %s59, 2048, %s61, [#allocation8], 256, 256, 16
    $region29: #{lstm_network_forward.1} parent=1 // pred_fallthru
      _
    // Predicated region
    $region30: #{lstm_network_forward.1} parent=1 // pred_check
      _
    $region31: #{lstm_network_forward.1} parent=1 // pred_check_branch
      %68 = sbr.rel (0) target = $region33
    $region32: #{lstm_network_forward.1} parent=1 // pred_region
      %70 = vsyncadd [#allocation11], 0
      %s71 = sshll.u32 %s7, 4
      %s72 = int_to_ptr.hbm [resolvable:$true] %s71
      %s73 = sshll.u32 [#allocation10], 4
      %s74 = int_to_ptr.vmem [resolvable:$true] %s73
      %79 = dma.hbm_to_vmem [thread:$0]  %s72, 2048, %s74, [#allocation11], 256, 256, 16
    $region33: #{lstm_network_forward.1} parent=1 // pred_fallthru
      _
    // Predicated region
    $region34: #{lstm_network_forward.1} parent=1 // pred_check
      _
    $region35: #{lstm_network_forward.1} parent=1 // pred_check_branch
      %81 = sbr.rel (0) target = $region37
    $region36: #{lstm_network_forward.1} parent=1 // pred_region
      _
    $region37: #{lstm_network_forward.1} parent=1 // pred_fallthru
      _
    // Predicated region
    $region38: #{lstm_network_forward.1} parent=1 // pred_check
      _
    $region39: #{lstm_network_forward.1} parent=1 // pred_check_branch
      %83 = sbr.rel (0) target = $region41
    $region40: #{lstm_network_forward.1} parent=1 // pred_region
      _
    $region41: #{lstm_network_forward.1} parent=1 // pred_fallthru
      _
    // Predicated region
    $region42: #{lstm_network_forward.1} parent=1 // pred_check
      _
    $region43: #{lstm_network_forward.1} parent=1 // pred_check_branch
      %85 = sbr.rel (0) target = $region45
    $region44: #{lstm_network_forward.1} parent=1 // pred_region
      _
    $region45: #{lstm_network_forward.1} parent=1 // pred_fallthru
      _
    // Predicated region
    $region46: #{lstm_network_forward.1} parent=1 // pred_check
      _
    $region47: #{lstm_network_forward.1} parent=1 // pred_check_branch
      %87 = sbr.rel (0) target = $region49
    $region48: #{lstm_network_forward.1} parent=1 // pred_region
      %89 = dma.done [#allocation5], 2048
    $region49: #{lstm_network_forward.1} parent=1 // pred_fallthru
      _
    // Predicated region
    $region50: #{lstm_network_forward.1} parent=1 // pred_check
      _
    $region51: #{lstm_network_forward.1} parent=1 // pred_check_branch
      %91 = sbr.rel (0) target = $region53
    $region52: #{lstm_network_forward.1} parent=1 // pred_region
      %93 = dma.done [#allocation8], 2048
    $region53: #{lstm_network_forward.1} parent=1 // pred_fallthru
      _
    // Predicated region
    $region54: #{lstm_network_forward.1} parent=1 // pred_check
      _
    $region55: #{lstm_network_forward.1} parent=1 // pred_check_branch
      %95 = sbr.rel (0) target = $region57
    $region56: #{lstm_network_forward.1} parent=1 // pred_region
      %97 = dma.done [#allocation8], 2048
    $region57: #{lstm_network_forward.1} parent=1 // pred_fallthru
      _
    // Predicated region
    $region58: #{lstm_network_forward.1} parent=1 // pred_check
      _
    $region59: #{lstm_network_forward.1} parent=1 // pred_check_branch
      %99 = sbr.rel (0) target = $region61
    $region60: #{lstm_network_forward.1} parent=1 // pred_region
      %101 = dma.done [#allocation11], 2048
    $region61: #{lstm_network_forward.1} parent=1 // pred_fallthru
      _
    %v102 = vld [vmem:[%s0] sm:$0xff]
    %v103 = vld [vmem:[%s0 + $0x8] sm:$0xff]
    %v104 = vld [vmem:[%s1] sm:$0xff]
    %v105 = vld [vmem:[%s1 + $0x8] sm:$0xff]
    %v106 = vld [vmem:[%s2] sm:$0xff]
    %v107 = vld [vmem:[%s2 + $0x8] sm:$0xff]
    %vm108 = vcmask 64512
    %v110 = vsel %vm108, %v102, 0
    %v113 = vsel %vm108, %v103, 0
    %115 = vmatpush.msra.mxu0 0.0
    %116 = vmatpush.msra.mxu0 0.0
    %117 = vmatpush.msra.mxu0 0.0
    %118 = vmatpush.msra.mxu0 0.0
    %119 = vmatpush.msra.mxu0 0.0
    %120 = vmatpush.msra.mxu0 0.0
    %121 = vmatpush.msra.mxu0 0.0
    %122 = vmatpush.msra.mxu0 0.0
    %123 = vmatpush.msra.mxu0 0.0
    %124 = vmatpush.msra.mxu0 0.0
    %125 = vmatpush.msra.mxu0 0.0
    %126 = vmatpush.msra.mxu0 0.0
    %127 = vmatpush.msra.mxu0 0.0
    %128 = vmatpush.msra.mxu0 0.0
    %129 = vmatpush.msra.mxu0 0.0
    %130 = vmatpush.msra.mxu0 %v106
    %131 = vmatmul.f32.gmra.mxu0 %v110
    %v132 = vpop.f32.mrf.mxu0
    %v133 = vadd.f32 0.0, %v132
    %134 = vmatmul.f32.gmra.mxu0 %v113
    %v135 = vpop.f32.mrf.mxu0
    %v136 = vadd.f32 0.0, %v135
    %137 = vdwg.mxu0
    %138 = vmatpush.msra.mxu0 0.0
    %139 = vmatpush.msra.mxu0 0.0
    %140 = vmatpush.msra.mxu0 0.0
    %141 = vmatpush.msra.mxu0 0.0
    %142 = vmatpush.msra.mxu0 0.0
    %143 = vmatpush.msra.mxu0 0.0
    %144 = vmatpush.msra.mxu0 0.0
    %145 = vmatpush.msra.mxu0 0.0
    %146 = vmatpush.msra.mxu0 0.0
    %147 = vmatpush.msra.mxu0 0.0
    %148 = vmatpush.msra.mxu0 0.0
    %149 = vmatpush.msra.mxu0 0.0
    %150 = vmatpush.msra.mxu0 0.0
    %151 = vmatpush.msra.mxu0 0.0
    %152 = vmatpush.msra.mxu0 0.0
    %153 = vmatpush.msra.mxu0 %v107
    %154 = vmatmul.f32.gmra.mxu0 %v110
    %v155 = vpop.f32.mrf.mxu0
    %v156 = vadd.f32 0.0, %v155
    %157 = vmatmul.f32.gmra.mxu0 %v113
    %v158 = vpop.f32.mrf.mxu0
    %v159 = vadd.f32 0.0, %v158
    %160 = vdwg.mxu0
    %v161 = vld [vmem:[%s4] sm:$0x3]
    %v163 = vperm.slane %v161, 0
    %v164 = vperm.slane %v161, 1
    %167 = vmatpush.msra.mxu0 0.0
    %168 = vmatpush.msra.mxu0 0.0
    %169 = vmatpush.msra.mxu0 0.0
    %170 = vmatpush.msra.mxu0 0.0
    %171 = vmatpush.msra.mxu0 0.0
    %172 = vmatpush.msra.mxu0 0.0
    %173 = vmatpush.msra.mxu0 0.0
    %174 = vmatpush.msra.mxu0 0.0
    %175 = vmatpush.msra.mxu0 0.0
    %176 = vmatpush.msra.mxu0 0.0
    %177 = vmatpush.msra.mxu0 0.0
    %178 = vmatpush.msra.mxu0 0.0
    %179 = vmatpush.msra.mxu0 0.0
    %180 = vmatpush.msra.mxu0 0.0
    %181 = vmatpush.msra.mxu0 0.0
    %182 = vmatpush.msra.mxu0 %v104
    %183 = vmatmul.f32.gmra.mxu0 %v110
    %v184 = vpop.f32.mrf.mxu0
    %v185 = vadd.f32 %v163, %v184
    %186 = vmatmul.f32.gmra.mxu0 %v113
    %v187 = vpop.f32.mrf.mxu0
    %v188 = vadd.f32 %v163, %v187
    %189 = vdwg.mxu0
    %190 = vmatpush.msra.mxu0 0.0
    %191 = vmatpush.msra.mxu0 0.0
    %192 = vmatpush.msra.mxu0 0.0
    %193 = vmatpush.msra.mxu0 0.0
    %194 = vmatpush.msra.mxu0 0.0
    %195 = vmatpush.msra.mxu0 0.0
    %196 = vmatpush.msra.mxu0 0.0
    %197 = vmatpush.msra.mxu0 0.0
    %198 = vmatpush.msra.mxu0 0.0
    %199 = vmatpush.msra.mxu0 0.0
    %200 = vmatpush.msra.mxu0 0.0
    %201 = vmatpush.msra.mxu0 0.0
    %202 = vmatpush.msra.mxu0 0.0
    %203 = vmatpush.msra.mxu0 0.0
    %204 = vmatpush.msra.mxu0 0.0
    %205 = vmatpush.msra.mxu0 %v105
    %206 = vmatmul.f32.gmra.mxu0 %v110
    %v207 = vpop.f32.mrf.mxu0
    %v208 = vadd.f32 %v164, %v207
    %209 = vmatmul.f32.gmra.mxu0 %v113
    %v210 = vpop.f32.mrf.mxu0
    %v211 = vadd.f32 %v164, %v210
    %212 = vdwg.mxu0
    %v215 = vrot.slane %v136, 6
    %v216 = vrot.slane %v159, 6
    %v219 = vadd.f32 %v185, %v215
    %v220 = vadd.f32 %v208, %v216
    %221 = vst [vmem:[#allocation2] sm:$0x3] %v219
    %222 = vst [vmem:[#allocation2 + $0x8] sm:$0x3] %v220
    %v223 = vrot.slane %v136, 2
    %v224 = vrot.slane %v159, 2
    %v227 = vadd.f32 %v185, %v223
    %v228 = vadd.f32 %v208, %v224
    %229 = vst [vmem:[#allocation2] sm:$0xc] %v227
    %230 = vst [vmem:[#allocation2 + $0x8] sm:$0xc] %v228
    %231 = vst [vmem:[#allocation2] sm:$0x30] %v219
    %232 = vst [vmem:[#allocation2 + $0x8] sm:$0x30] %v220
    %233 = vst [vmem:[#allocation2] sm:$0xc0] %v227
    %234 = vst [vmem:[#allocation2 + $0x8] sm:$0xc0] %v228
    %v237 = vrot.slane %v133, 6
    %v238 = vrot.slane %v156, 6
    %v241 = vadd.f32 %v188, %v237
    %v242 = vadd.f32 %v211, %v238
    %243 = vst [vmem:[#allocation2 + $0x10] sm:$0x3] %v241
    %244 = vst [vmem:[#allocation2 + $0x18] sm:$0x3] %v242
    %v245 = vrot.slane %v133, 2
    %v246 = vrot.slane %v156, 2
    %v249 = vadd.f32 %v188, %v245
    %v250 = vadd.f32 %v211, %v246
    %251 = vst [vmem:[#allocation2 + $0x10] sm:$0xc] %v249
    %252 = vst [vmem:[#allocation2 + $0x18] sm:$0xc] %v250
    %253 = vst [vmem:[#allocation2 + $0x10] sm:$0x30] %v241
    %254 = vst [vmem:[#allocation2 + $0x18] sm:$0x30] %v242
    %255 = vst [vmem:[#allocation2 + $0x10] sm:$0xc0] %v249
    %256 = vst [vmem:[#allocation2 + $0x18] sm:$0xc0] %v250
    %v257 = vld [vmem:[#allocation4] sm:$0xff]
    %v258 = vld [vmem:[#allocation4 + $0x8] sm:$0xff]
    %v259 = vld [vmem:[#allocation4 + $0x10] sm:$0xff]
    %v260 = vld [vmem:[#allocation4 + $0x18] sm:$0xff]
    %v261 = vld [vmem:[#allocation4 + $0x20] sm:$0xff]
    %v262 = vld [vmem:[#allocation4 + $0x28] sm:$0xff]
    %v263 = vld [vmem:[#allocation4 + $0x30] sm:$0xff]
    %v264 = vld [vmem:[#allocation4 + $0x38] sm:$0xff]
    %v265 = vld [vmem:[#allocation4 + $0x40] sm:$0xff]
    %v266 = vld [vmem:[#allocation4 + $0x48] sm:$0xff]
    %v267 = vld [vmem:[#allocation4 + $0x50] sm:$0xff]
    %v268 = vld [vmem:[#allocation4 + $0x58] sm:$0xff]
    %v269 = vld [vmem:[#allocation4 + $0x60] sm:$0xff]
    %v270 = vld [vmem:[#allocation4 + $0x68] sm:$0xff]
    %v271 = vld [vmem:[#allocation4 + $0x70] sm:$0xff]
    %v272 = vld [vmem:[#allocation4 + $0x78] sm:$0xff]
    %v273 = vld [vmem:[#allocation2] sm:$0x3]
    %v274 = vld [vmem:[#allocation2 + $0x8] sm:$0x3]
    %vm275 = vcmask 523264
    %v277 = vsel %vm275, 0.0, 0
    %279 = vmatpush.msra.mxu0 0.0
    %280 = vmatpush.msra.mxu0 0.0
    %281 = vmatpush.msra.mxu0 0.0
    %282 = vmatpush.msra.mxu0 0.0
    %283 = vmatpush.msra.mxu0 0.0
    %284 = vmatpush.msra.mxu0 0.0
    %285 = vmatpush.msra.mxu0 0.0
    %286 = vmatpush.msra.mxu0 0.0
    %287 = vmatpush.msra.mxu0 %v271
    %288 = vmatpush.msra.mxu0 %v269
    %289 = vmatpush.msra.mxu0 %v267
    %290 = vmatpush.msra.mxu0 %v265
    %291 = vmatpush.msra.mxu0 %v263
    %292 = vmatpush.msra.mxu0 %v261
    %293 = vmatpush.msra.mxu0 %v259
    %294 = vmatpush.msra.mxu0 %v257
    %295 = vmatmul.f32.gmra.mxu0 %v277
    %v296 = vpop.f32.mrf.mxu0
    %v297 = vadd.f32 0.0, %v296
    %298 = vdwg.mxu0
    %299 = vmatpush.msra.mxu0 0.0
    %300 = vmatpush.msra.mxu0 0.0
    %301 = vmatpush.msra.mxu0 0.0
    %302 = vmatpush.msra.mxu0 0.0
    %303 = vmatpush.msra.mxu0 0.0
    %304 = vmatpush.msra.mxu0 0.0
    %305 = vmatpush.msra.mxu0 0.0
    %306 = vmatpush.msra.mxu0 0.0
    %307 = vmatpush.msra.mxu0 %v272
    %308 = vmatpush.msra.mxu0 %v270
    %309 = vmatpush.msra.mxu0 %v268
    %310 = vmatpush.msra.mxu0 %v266
    %311 = vmatpush.msra.mxu0 %v264
    %312 = vmatpush.msra.mxu0 %v262
    %313 = vmatpush.msra.mxu0 %v260
    %314 = vmatpush.msra.mxu0 %v258
    %315 = vmatmul.f32.gmra.mxu0 %v277
    %v316 = vpop.f32.mrf.mxu0
    %v317 = vadd.f32 0.0, %v316
    %318 = vdwg.mxu0
    %v319 = vadd.f32 %v273, %v297
    %v320 = vadd.f32 %v274, %v317
    %v321 = vxor.u32 %v319, 2147483648
    %v322 = vxor.u32 %v320, 2147483648
    %v323 = vmul.f32 %v321, 1.442695
    %v324 = vpow.pop %v323
    %v325 = vmul.f32 %v322, 1.442695
    %v326 = vpow.pop %v325
    %v327 = vadd.f32 %v324, 1.0
    %v328 = vadd.f32 %v326, 1.0
    %v329 = vrcp.pop %v327
    %v330 = vmul.f32 %v327, %v329
    %v331 = vsub.f32 1.0, %v330
    %v332 = vmul.f32 %v329, %v331
    %v333 = vadd.f32 %v329, %v332
    %vm334 = vweird.f32 %v327
    %vm335 = vweird.f32 %v329
    %vm336 = vmor %vm334, %vm335
    %v337 = vsel %vm336, %v329, %v333
    %v338 = vand.u32 2147483647, %v327
    %vm339 = vcmp.eq.f32.partialorder %v338, 8.507059e+37
    %v340 = vand.u32 %v327, 2147483648
    %v341 = vor.u32 1.1754944e-38, %v340
    %v342 = vsel %vm339, %v341, %v337
    %v343 = vmul.f32 1.0, %v342
    %v344 = vrcp.pop %v328
    %v345 = vmul.f32 %v328, %v344
    %v346 = vsub.f32 1.0, %v345
    %v347 = vmul.f32 %v344, %v346
    %v348 = vadd.f32 %v344, %v347
    %vm349 = vweird.f32 %v328
    %vm350 = vweird.f32 %v344
    %vm351 = vmor %vm349, %vm350
    %v352 = vsel %vm351, %v344, %v348
    %v353 = vand.u32 2147483647, %v328
    %vm354 = vcmp.eq.f32.partialorder %v353, 8.507059e+37
    %v355 = vand.u32 %v328, 2147483648
    %v356 = vor.u32 1.1754944e-38, %v355
    %v357 = vsel %vm354, %v356, %v352
    %v358 = vmul.f32 1.0, %v357
    %v359 = vmul.f32 %v358, 2.0
    %v360 = vsub.f32 %v359, 1.0
    %v361 = vmul.f32 %v343, 0.0
    %v362 = vmul.f32 %v343, %v360
    %364 = vrot.lane.b32.xlu0 %v362, 64
    %v365 = vpop.permute.xlu0 %364
    %v367 = vadd.f32 %v361, %v365
    %v368 = vtanh.pop %v367
    %v369 = vmul.f32 %v358, %v368
    %371 = vrot.lane.b32.xlu0 %v369, 64
    %v372 = vpop.permute.xlu0 %371
    %vm374 = vcmask 254976
    %375 = vst.msk [vmem:[#allocation3] sm:$0x3] %vm374, %v372
    %376 = vrot.lane.b32.xlu0 %v369, 32
    %v377 = vpop.permute.xlu0 %376
    %s379 = scalar_lea.vmem [#allocation3], 16
    %380 = vst.msk [vmem:[%s379 + $0xe] sm:$0x3] %vm374, %v377
    %v381 = vld [vmem:[#allocation2] sm:$0xc]
    %v382 = vld [vmem:[#allocation2 + $0x8] sm:$0xc]
    %v383 = vsel %vm275, %v372, 0
    %385 = vmatpush.msra.mxu0 0.0
    %386 = vmatpush.msra.mxu0 0.0
    %387 = vmatpush.msra.mxu0 0.0
    %388 = vmatpush.msra.mxu0 0.0
    %389 = vmatpush.msra.mxu0 0.0
    %390 = vmatpush.msra.mxu0 0.0
    %391 = vmatpush.msra.mxu0 0.0
    %392 = vmatpush.msra.mxu0 0.0
    %393 = vmatpush.msra.mxu0 %v271
    %394 = vmatpush.msra.mxu0 %v269
    %395 = vmatpush.msra.mxu0 %v267
    %396 = vmatpush.msra.mxu0 %v265
    %397 = vmatpush.msra.mxu0 %v263
    %398 = vmatpush.msra.mxu0 %v261
    %399 = vmatpush.msra.mxu0 %v259
    %400 = vmatpush.msra.mxu0 %v257
    %401 = vmatmul.f32.gmra.mxu0 %v383
    %v402 = vpop.f32.mrf.mxu0
    %v403 = vadd.f32 0.0, %v402
    %404 = vdwg.mxu0
    %405 = vmatpush.msra.mxu0 0.0
    %406 = vmatpush.msra.mxu0 0.0
    %407 = vmatpush.msra.mxu0 0.0
    %408 = vmatpush.msra.mxu0 0.0
    %409 = vmatpush.msra.mxu0 0.0
    %410 = vmatpush.msra.mxu0 0.0
    %411 = vmatpush.msra.mxu0 0.0
    %412 = vmatpush.msra.mxu0 0.0
    %413 = vmatpush.msra.mxu0 %v272
    %414 = vmatpush.msra.mxu0 %v270
    %415 = vmatpush.msra.mxu0 %v268
    %416 = vmatpush.msra.mxu0 %v266
    %417 = vmatpush.msra.mxu0 %v264
    %418 = vmatpush.msra.mxu0 %v262
    %419 = vmatpush.msra.mxu0 %v260
    %420 = vmatpush.msra.mxu0 %v258
    %421 = vmatmul.f32.gmra.mxu0 %v383
    %v422 = vpop.f32.mrf.mxu0
    %v423 = vadd.f32 0.0, %v422
    %424 = vdwg.mxu0
    %v427 = vrot.slane %v403, 6
    %v428 = vrot.slane %v423, 6
    %v431 = vadd.f32 %v381, %v427
    %v432 = vadd.f32 %v382, %v428
    %v433 = vxor.u32 %v431, 2147483648
    %v434 = vxor.u32 %v432, 2147483648
    %v435 = vmul.f32 %v433, 1.442695
    %v436 = vpow.pop %v435
    %v437 = vmul.f32 %v434, 1.442695
    %v438 = vpow.pop %v437
    %v439 = vadd.f32 %v436, 1.0
    %v440 = vadd.f32 %v438, 1.0
    %v441 = vrcp.pop %v439
    %v442 = vmul.f32 %v439, %v441
    %v443 = vsub.f32 1.0, %v442
    %v444 = vmul.f32 %v441, %v443
    %v445 = vadd.f32 %v441, %v444
    %vm446 = vweird.f32 %v439
    %vm447 = vweird.f32 %v441
    %vm448 = vmor %vm446, %vm447
    %v449 = vsel %vm448, %v441, %v445
    %v450 = vand.u32 2147483647, %v439
    %vm451 = vcmp.eq.f32.partialorder %v450, 8.507059e+37
    %v452 = vand.u32 %v439, 2147483648
    %v453 = vor.u32 1.1754944e-38, %v452
    %v454 = vsel %vm451, %v453, %v449
    %v455 = vmul.f32 1.0, %v454
    %v456 = vrcp.pop %v440
    %v457 = vmul.f32 %v440, %v456
    %v458 = vsub.f32 1.0, %v457
    %v459 = vmul.f32 %v456, %v458
    %v460 = vadd.f32 %v456, %v459
    %vm461 = vweird.f32 %v440
    %vm462 = vweird.f32 %v456
    %vm463 = vmor %vm461, %vm462
    %v464 = vsel %vm463, %v456, %v460
    %v465 = vand.u32 2147483647, %v440
    %vm466 = vcmp.eq.f32.partialorder %v465, 8.507059e+37
    %v467 = vand.u32 %v440, 2147483648
    %v468 = vor.u32 1.1754944e-38, %v467
    %v469 = vsel %vm466, %v468, %v464
    %v470 = vmul.f32 1.0, %v469
    %v471 = vmul.f32 %v470, 2.0
    %v472 = vsub.f32 %v471, 1.0
    %v474 = vrot.slane %v367, 6
    %v476 = vmul.f32 %v455, %v474
    %v477 = vmul.f32 %v455, %v472
    %479 = vrot.lane.b32.xlu0 %v477, 64
    %v480 = vpop.permute.xlu0 %479
    %v482 = vadd.f32 %v476, %v480
    %v483 = vtanh.pop %v482
    %v484 = vmul.f32 %v470, %v483
    %486 = vrot.lane.b32.xlu0 %v484, 64
    %v487 = vpop.permute.xlu0 %486
    %vm489 = vcmask 257026
    %490 = vst.msk [vmem:[#allocation3] sm:$0xc] %vm489, %v487
    %491 = vrot.lane.b32.xlu0 %v484, 32
    %v492 = vpop.permute.xlu0 %491
    %494 = vst.msk [vmem:[%s379 + $0xa] sm:$0xc] %vm489, %v492
    %v495 = vld [vmem:[#allocation2] sm:$0x30]
    %v496 = vld [vmem:[#allocation2 + $0x8] sm:$0x30]
    %v497 = vrot.slane %v484, 2
    %498 = vrot.lane.b32.xlu0 %v497, 64
    %v499 = vpop.permute.xlu0 %498
    %v500 = vsel %vm275, %v499, 0
    %502 = vmatpush.msra.mxu0 0.0
    %503 = vmatpush.msra.mxu0 0.0
    %504 = vmatpush.msra.mxu0 0.0
    %505 = vmatpush.msra.mxu0 0.0
    %506 = vmatpush.msra.mxu0 0.0
    %507 = vmatpush.msra.mxu0 0.0
    %508 = vmatpush.msra.mxu0 0.0
    %509 = vmatpush.msra.mxu0 0.0
    %510 = vmatpush.msra.mxu0 %v271
    %511 = vmatpush.msra.mxu0 %v269
    %512 = vmatpush.msra.mxu0 %v267
    %513 = vmatpush.msra.mxu0 %v265
    %514 = vmatpush.msra.mxu0 %v263
    %515 = vmatpush.msra.mxu0 %v261
    %516 = vmatpush.msra.mxu0 %v259
    %517 = vmatpush.msra.mxu0 %v257
    %518 = vmatmul.f32.gmra.mxu0 %v500
    %v519 = vpop.f32.mrf.mxu0
    %v520 = vadd.f32 0.0, %v519
    %521 = vdwg.mxu0
    %522 = vmatpush.msra.mxu0 0.0
    %523 = vmatpush.msra.mxu0 0.0
    %524 = vmatpush.msra.mxu0 0.0
    %525 = vmatpush.msra.mxu0 0.0
    %526 = vmatpush.msra.mxu0 0.0
    %527 = vmatpush.msra.mxu0 0.0
    %528 = vmatpush.msra.mxu0 0.0
    %529 = vmatpush.msra.mxu0 0.0
    %530 = vmatpush.msra.mxu0 %v272
    %531 = vmatpush.msra.mxu0 %v270
    %532 = vmatpush.msra.mxu0 %v268
    %533 = vmatpush.msra.mxu0 %v266
    %534 = vmatpush.msra.mxu0 %v264
    %535 = vmatpush.msra.mxu0 %v262
    %536 = vmatpush.msra.mxu0 %v260
    %537 = vmatpush.msra.mxu0 %v258
    %538 = vmatmul.f32.gmra.mxu0 %v500
    %v539 = vpop.f32.mrf.mxu0
    %v540 = vadd.f32 0.0, %v539
    %541 = vdwg.mxu0
    %v544 = vrot.slane %v520, 4
    %v545 = vrot.slane %v540, 4
    %v548 = vadd.f32 %v495, %v544
    %v549 = vadd.f32 %v496, %v545
    %v550 = vxor.u32 %v548, 2147483648
    %v551 = vxor.u32 %v549, 2147483648
    %v552 = vmul.f32 %v550, 1.442695
    %v553 = vpow.pop %v552
    %v554 = vmul.f32 %v551, 1.442695
    %v555 = vpow.pop %v554
    %v556 = vadd.f32 %v553, 1.0
    %v557 = vadd.f32 %v555, 1.0
    %v558 = vrcp.pop %v556
    %v559 = vmul.f32 %v556, %v558
    %v560 = vsub.f32 1.0, %v559
    %v561 = vmul.f32 %v558, %v560
    %v562 = vadd.f32 %v558, %v561
    %vm563 = vweird.f32 %v556
    %vm564 = vweird.f32 %v558
    %vm565 = vmor %vm563, %vm564
    %v566 = vsel %vm565, %v558, %v562
    %v567 = vand.u32 2147483647, %v556
    %vm568 = vcmp.eq.f32.partialorder %v567, 8.507059e+37
    %v569 = vand.u32 %v556, 2147483648
    %v570 = vor.u32 1.1754944e-38, %v569
    %v571 = vsel %vm568, %v570, %v566
    %v572 = vmul.f32 1.0, %v571
    %v573 = vrcp.pop %v557
    %v574 = vmul.f32 %v557, %v573
    %v575 = vsub.f32 1.0, %v574
    %v576 = vmul.f32 %v573, %v575
    %v577 = vadd.f32 %v573, %v576
    %vm578 = vweird.f32 %v557
    %vm579 = vweird.f32 %v573
    %vm580 = vmor %vm578, %vm579
    %v581 = vsel %vm580, %v573, %v577
    %v582 = vand.u32 2147483647, %v557
    %vm583 = vcmp.eq.f32.partialorder %v582, 8.507059e+37
    %v584 = vand.u32 %v557, 2147483648
    %v585 = vor.u32 1.1754944e-38, %v584
    %v586 = vsel %vm583, %v585, %v581
    %v587 = vmul.f32 1.0, %v586
    %v588 = vmul.f32 %v587, 2.0
    %v589 = vsub.f32 %v588, 1.0
    %v591 = vrot.slane %v482, 6
    %v593 = vmul.f32 %v572, %v591
    %v594 = vmul.f32 %v572, %v589
    %596 = vrot.lane.b32.xlu0 %v594, 64
    %v597 = vpop.permute.xlu0 %596
    %v599 = vadd.f32 %v593, %v597
    %v600 = vtanh.pop %v599
    %v601 = vmul.f32 %v587, %v600
    %603 = vrot.lane.b32.xlu0 %v601, 64
    %v604 = vpop.permute.xlu0 %603
    %vm606 = vcmask 259076
    %607 = vst.msk [vmem:[#allocation3] sm:$0x30] %vm606, %v604
    %608 = vrot.lane.b32.xlu0 %v601, 32
    %v609 = vpop.permute.xlu0 %608
    %611 = vst.msk [vmem:[%s379 + $0x6] sm:$0x30] %vm606, %v609
    %v612 = vld [vmem:[#allocation2] sm:$0xc0]
    %v613 = vld [vmem:[#allocation2 + $0x8] sm:$0xc0]
    %v614 = vrot.slane %v601, 4
    %615 = vrot.lane.b32.xlu0 %v614, 64
    %v616 = vpop.permute.xlu0 %615
    %v617 = vsel %vm275, %v616, 0
    %619 = vmatpush.msra.mxu0 0.0
    %620 = vmatpush.msra.mxu0 0.0
    %621 = vmatpush.msra.mxu0 0.0
    %622 = vmatpush.msra.mxu0 0.0
    %623 = vmatpush.msra.mxu0 0.0
    %624 = vmatpush.msra.mxu0 0.0
    %625 = vmatpush.msra.mxu0 0.0
    %626 = vmatpush.msra.mxu0 0.0
    %627 = vmatpush.msra.mxu0 %v271
    %628 = vmatpush.msra.mxu0 %v269
    %629 = vmatpush.msra.mxu0 %v267
    %630 = vmatpush.msra.mxu0 %v265
    %631 = vmatpush.msra.mxu0 %v263
    %632 = vmatpush.msra.mxu0 %v261
    %633 = vmatpush.msra.mxu0 %v259
    %634 = vmatpush.msra.mxu0 %v257
    %635 = vmatmul.f32.gmra.mxu0 %v617
    %v636 = vpop.f32.mrf.mxu0
    %v637 = vadd.f32 0.0, %v636
    %638 = vdwg.mxu0
    %639 = vmatpush.msra.mxu0 0.0
    %640 = vmatpush.msra.mxu0 0.0
    %641 = vmatpush.msra.mxu0 0.0
    %642 = vmatpush.msra.mxu0 0.0
    %643 = vmatpush.msra.mxu0 0.0
    %644 = vmatpush.msra.mxu0 0.0
    %645 = vmatpush.msra.mxu0 0.0
    %646 = vmatpush.msra.mxu0 0.0
    %647 = vmatpush.msra.mxu0 %v272
    %648 = vmatpush.msra.mxu0 %v270
    %649 = vmatpush.msra.mxu0 %v268
    %650 = vmatpush.msra.mxu0 %v266
    %651 = vmatpush.msra.mxu0 %v264
    %652 = vmatpush.msra.mxu0 %v262
    %653 = vmatpush.msra.mxu0 %v260
    %654 = vmatpush.msra.mxu0 %v258
    %655 = vmatmul.f32.gmra.mxu0 %v617
    %v656 = vpop.f32.mrf.mxu0
    %v657 = vadd.f32 0.0, %v656
    %658 = vdwg.mxu0
    %v661 = vrot.slane %v637, 2
    %v662 = vrot.slane %v657, 2
    %v665 = vadd.f32 %v612, %v661
    %v666 = vadd.f32 %v613, %v662
    %v667 = vxor.u32 %v665, 2147483648
    %v668 = vxor.u32 %v666, 2147483648
    %v669 = vmul.f32 %v667, 1.442695
    %v670 = vpow.pop %v669
    %v671 = vmul.f32 %v668, 1.442695
    %v672 = vpow.pop %v671
    %v673 = vadd.f32 %v670, 1.0
    %v674 = vadd.f32 %v672, 1.0
    %v675 = vrcp.pop %v673
    %v676 = vmul.f32 %v673, %v675
    %v677 = vsub.f32 1.0, %v676
    %v678 = vmul.f32 %v675, %v677
    %v679 = vadd.f32 %v675, %v678
    %vm680 = vweird.f32 %v673
    %vm681 = vweird.f32 %v675
    %vm682 = vmor %vm680, %vm681
    %v683 = vsel %vm682, %v675, %v679
    %v684 = vand.u32 2147483647, %v673
    %vm685 = vcmp.eq.f32.partialorder %v684, 8.507059e+37
    %v686 = vand.u32 %v673, 2147483648
    %v687 = vor.u32 1.1754944e-38, %v686
    %v688 = vsel %vm685, %v687, %v683
    %v689 = vmul.f32 1.0, %v688
    %v690 = vrcp.pop %v674
    %v691 = vmul.f32 %v674, %v690
    %v692 = vsub.f32 1.0, %v691
    %v693 = vmul.f32 %v690, %v692
    %v694 = vadd.f32 %v690, %v693
    %vm695 = vweird.f32 %v674
    %vm696 = vweird.f32 %v690
    %vm697 = vmor %vm695, %vm696
    %v698 = vsel %vm697, %v690, %v694
    %v699 = vand.u32 2147483647, %v674
    %vm700 = vcmp.eq.f32.partialorder %v699, 8.507059e+37
    %v701 = vand.u32 %v674, 2147483648
    %v702 = vor.u32 1.1754944e-38, %v701
    %v703 = vsel %vm700, %v702, %v698
    %v704 = vmul.f32 1.0, %v703
    %v705 = vmul.f32 %v704, 2.0
    %v706 = vsub.f32 %v705, 1.0
    %v708 = vrot.slane %v599, 6
    %v710 = vmul.f32 %v689, %v708
    %v711 = vmul.f32 %v689, %v706
    %713 = vrot.lane.b32.xlu0 %v711, 64
    %v714 = vpop.permute.xlu0 %713
    %v716 = vadd.f32 %v710, %v714
    %v717 = vtanh.pop %v716
    %v718 = vmul.f32 %v704, %v717
    %720 = vrot.lane.b32.xlu0 %v718, 64
    %v721 = vpop.permute.xlu0 %720
    %vm723 = vcmask 261126
    %724 = vst.msk [vmem:[#allocation3] sm:$0xc0] %vm723, %v721
    %725 = vrot.lane.b32.xlu0 %v718, 32
    %v726 = vpop.permute.xlu0 %725
    %728 = vst.msk [vmem:[%s379 + $0x2] sm:$0xc0] %vm723, %v726
    %v729 = vld [vmem:[#allocation2 + $0x10] sm:$0x3]
    %v730 = vld [vmem:[#allocation2 + $0x18] sm:$0x3]
    %v731 = vrot.slane %v718, 6
    %732 = vrot.lane.b32.xlu0 %v731, 64
    %v733 = vpop.permute.xlu0 %732
    %v734 = vsel %vm275, %v733, 0
    %736 = vmatpush.msra.mxu0 0.0
    %737 = vmatpush.msra.mxu0 0.0
    %738 = vmatpush.msra.mxu0 0.0
    %739 = vmatpush.msra.mxu0 0.0
    %740 = vmatpush.msra.mxu0 0.0
    %741 = vmatpush.msra.mxu0 0.0
    %742 = vmatpush.msra.mxu0 0.0
    %743 = vmatpush.msra.mxu0 0.0
    %744 = vmatpush.msra.mxu0 %v271
    %745 = vmatpush.msra.mxu0 %v269
    %746 = vmatpush.msra.mxu0 %v267
    %747 = vmatpush.msra.mxu0 %v265
    %748 = vmatpush.msra.mxu0 %v263
    %749 = vmatpush.msra.mxu0 %v261
    %750 = vmatpush.msra.mxu0 %v259
    %751 = vmatpush.msra.mxu0 %v257
    %752 = vmatmul.f32.gmra.mxu0 %v734
    %v753 = vpop.f32.mrf.mxu0
    %v754 = vadd.f32 0.0, %v753
    %755 = vdwg.mxu0
    %756 = vmatpush.msra.mxu0 0.0
    %757 = vmatpush.msra.mxu0 0.0
    %758 = vmatpush.msra.mxu0 0.0
    %759 = vmatpush.msra.mxu0 0.0
    %760 = vmatpush.msra.mxu0 0.0
    %761 = vmatpush.msra.mxu0 0.0
    %762 = vmatpush.msra.mxu0 0.0
    %763 = vmatpush.msra.mxu0 0.0
    %764 = vmatpush.msra.mxu0 %v272
    %765 = vmatpush.msra.mxu0 %v270
    %766 = vmatpush.msra.mxu0 %v268
    %767 = vmatpush.msra.mxu0 %v266
    %768 = vmatpush.msra.mxu0 %v264
    %769 = vmatpush.msra.mxu0 %v262
    %770 = vmatpush.msra.mxu0 %v260
    %771 = vmatpush.msra.mxu0 %v258
    %772 = vmatmul.f32.gmra.mxu0 %v734
    %v773 = vpop.f32.mrf.mxu0
    %v774 = vadd.f32 0.0, %v773
    %775 = vdwg.mxu0
    %v776 = vadd.f32 %v729, %v754
    %v777 = vadd.f32 %v730, %v774
    %v778 = vxor.u32 %v776, 2147483648
    %v779 = vxor.u32 %v777, 2147483648
    %v780 = vmul.f32 %v778, 1.442695
    %v781 = vpow.pop %v780
    %v782 = vmul.f32 %v779, 1.442695
    %v783 = vpow.pop %v782
    %v784 = vadd.f32 %v781, 1.0
    %v785 = vadd.f32 %v783, 1.0
    %v786 = vrcp.pop %v784
    %v787 = vmul.f32 %v784, %v786
    %v788 = vsub.f32 1.0, %v787
    %v789 = vmul.f32 %v786, %v788
    %v790 = vadd.f32 %v786, %v789
    %vm791 = vweird.f32 %v784
    %vm792 = vweird.f32 %v786
    %vm793 = vmor %vm791, %vm792
    %v794 = vsel %vm793, %v786, %v790
    %v795 = vand.u32 2147483647, %v784
    %vm796 = vcmp.eq.f32.partialorder %v795, 8.507059e+37
    %v797 = vand.u32 %v784, 2147483648
    %v798 = vor.u32 1.1754944e-38, %v797
    %v799 = vsel %vm796, %v798, %v794
    %v800 = vmul.f32 1.0, %v799
    %v801 = vrcp.pop %v785
    %v802 = vmul.f32 %v785, %v801
    %v803 = vsub.f32 1.0, %v802
    %v804 = vmul.f32 %v801, %v803
    %v805 = vadd.f32 %v801, %v804
    %vm806 = vweird.f32 %v785
    %vm807 = vweird.f32 %v801
    %vm808 = vmor %vm806, %vm807
    %v809 = vsel %vm808, %v801, %v805
    %v810 = vand.u32 2147483647, %v785
    %vm811 = vcmp.eq.f32.partialorder %v810, 8.507059e+37
    %v812 = vand.u32 %v785, 2147483648
    %v813 = vor.u32 1.1754944e-38, %v812
    %v814 = vsel %vm811, %v813, %v809
    %v815 = vmul.f32 1.0, %v814
    %v816 = vmul.f32 %v815, 2.0
    %v817 = vsub.f32 %v816, 1.0
    %v819 = vrot.slane %v716, 6
    %v821 = vmul.f32 %v800, %v819
    %v822 = vmul.f32 %v800, %v817
    %824 = vrot.lane.b32.xlu0 %v822, 64
    %v825 = vpop.permute.xlu0 %824
    %v827 = vadd.f32 %v821, %v825
    %v828 = vtanh.pop %v827
    %v829 = vmul.f32 %v815, %v828
    %831 = vrot.lane.b32.xlu0 %v829, 64
    %v832 = vpop.permute.xlu0 %831
    %834 = vst.msk [vmem:[#allocation3 + $0x8] sm:$0x3] %vm374, %v832
    %835 = vrot.lane.b32.xlu0 %v829, 32
    %v836 = vpop.permute.xlu0 %835
    %838 = vst.msk [vmem:[%s379 + $0x6] sm:$0x3] %vm374, %v836
    %v839 = vld [vmem:[#allocation2 + $0x10] sm:$0xc]
    %v840 = vld [vmem:[#allocation2 + $0x18] sm:$0xc]
    %v841 = vsel %vm275, %v832, 0
    %843 = vmatpush.msra.mxu0 0.0
    %844 = vmatpush.msra.mxu0 0.0
    %845 = vmatpush.msra.mxu0 0.0
    %846 = vmatpush.msra.mxu0 0.0
    %847 = vmatpush.msra.mxu0 0.0
    %848 = vmatpush.msra.mxu0 0.0
    %849 = vmatpush.msra.mxu0 0.0
    %850 = vmatpush.msra.mxu0 0.0
    %851 = vmatpush.msra.mxu0 %v271
    %852 = vmatpush.msra.mxu0 %v269
    %853 = vmatpush.msra.mxu0 %v267
    %854 = vmatpush.msra.mxu0 %v265
    %855 = vmatpush.msra.mxu0 %v263
    %856 = vmatpush.msra.mxu0 %v261
    %857 = vmatpush.msra.mxu0 %v259
    %858 = vmatpush.msra.mxu0 %v257
    %859 = vmatmul.f32.gmra.mxu0 %v841
    %v860 = vpop.f32.mrf.mxu0
    %v861 = vadd.f32 0.0, %v860
    %862 = vdwg.mxu0
    %863 = vmatpush.msra.mxu0 0.0
    %864 = vmatpush.msra.mxu0 0.0
    %865 = vmatpush.msra.mxu0 0.0
    %866 = vmatpush.msra.mxu0 0.0
    %867 = vmatpush.msra.mxu0 0.0
    %868 = vmatpush.msra.mxu0 0.0
    %869 = vmatpush.msra.mxu0 0.0
    %870 = vmatpush.msra.mxu0 0.0
    %871 = vmatpush.msra.mxu0 %v272
    %872 = vmatpush.msra.mxu0 %v270
    %873 = vmatpush.msra.mxu0 %v268
    %874 = vmatpush.msra.mxu0 %v266
    %875 = vmatpush.msra.mxu0 %v264
    %876 = vmatpush.msra.mxu0 %v262
    %877 = vmatpush.msra.mxu0 %v260
    %878 = vmatpush.msra.mxu0 %v258
    %879 = vmatmul.f32.gmra.mxu0 %v841
    %v880 = vpop.f32.mrf.mxu0
    %v881 = vadd.f32 0.0, %v880
    %882 = vdwg.mxu0
    %v885 = vrot.slane %v861, 6
    %v886 = vrot.slane %v881, 6
    %v889 = vadd.f32 %v839, %v885
    %v890 = vadd.f32 %v840, %v886
    %v891 = vxor.u32 %v889, 2147483648
    %v892 = vxor.u32 %v890, 2147483648
    %v893 = vmul.f32 %v891, 1.442695
    %v894 = vpow.pop %v893
    %v895 = vmul.f32 %v892, 1.442695
    %v896 = vpow.pop %v895
    %v897 = vadd.f32 %v894, 1.0
    %v898 = vadd.f32 %v896, 1.0
    %v899 = vrcp.pop %v897
    %v900 = vmul.f32 %v897, %v899
    %v901 = vsub.f32 1.0, %v900
    %v902 = vmul.f32 %v899, %v901
    %v903 = vadd.f32 %v899, %v902
    %vm904 = vweird.f32 %v897
    %vm905 = vweird.f32 %v899
    %vm906 = vmor %vm904, %vm905
    %v907 = vsel %vm906, %v899, %v903
    %v908 = vand.u32 2147483647, %v897
    %vm909 = vcmp.eq.f32.partialorder %v908, 8.507059e+37
    %v910 = vand.u32 %v897, 2147483648
    %v911 = vor.u32 1.1754944e-38, %v910
    %v912 = vsel %vm909, %v911, %v907
    %v913 = vmul.f32 1.0, %v912
    %v914 = vrcp.pop %v898
    %v915 = vmul.f32 %v898, %v914
    %v916 = vsub.f32 1.0, %v915
    %v917 = vmul.f32 %v914, %v916
    %v918 = vadd.f32 %v914, %v917
    %vm919 = vweird.f32 %v898
    %vm920 = vweird.f32 %v914
    %vm921 = vmor %vm919, %vm920
    %v922 = vsel %vm921, %v914, %v918
    %v923 = vand.u32 2147483647, %v898
    %vm924 = vcmp.eq.f32.partialorder %v923, 8.507059e+37
    %v925 = vand.u32 %v898, 2147483648
    %v926 = vor.u32 1.1754944e-38, %v925
    %v927 = vsel %vm924, %v926, %v922
    %v928 = vmul.f32 1.0, %v927
    %v929 = vmul.f32 %v928, 2.0
    %v930 = vsub.f32 %v929, 1.0
    %v932 = vrot.slane %v827, 6
    %v934 = vmul.f32 %v913, %v932
    %v935 = vmul.f32 %v913, %v930
    %937 = vrot.lane.b32.xlu0 %v935, 64
    %v938 = vpop.permute.xlu0 %937
    %v940 = vadd.f32 %v934, %v938
    %v941 = vtanh.pop %v940
    %v942 = vmul.f32 %v928, %v941
    %944 = vrot.lane.b32.xlu0 %v942, 64
    %v945 = vpop.permute.xlu0 %944
    %947 = vst.msk [vmem:[#allocation3 + $0x8] sm:$0xc] %vm489, %v945
    %948 = vrot.lane.b32.xlu0 %v942, 32
    %v949 = vpop.permute.xlu0 %948
    %951 = vst.msk [vmem:[%s379 + $0x2] sm:$0xc] %vm489, %v949
    %v952 = vld [vmem:[#allocation2 + $0x10] sm:$0x30]
    %v953 = vld [vmem:[#allocation2 + $0x18] sm:$0x30]
    %v954 = vrot.slane %v942, 2
    %955 = vrot.lane.b32.xlu0 %v954, 64
    %v956 = vpop.permute.xlu0 %955
    %v957 = vsel %vm275, %v956, 0
    %959 = vmatpush.msra.mxu0 0.0
    %960 = vmatpush.msra.mxu0 0.0
    %961 = vmatpush.msra.mxu0 0.0
    %962 = vmatpush.msra.mxu0 0.0
    %963 = vmatpush.msra.mxu0 0.0
    %964 = vmatpush.msra.mxu0 0.0
    %965 = vmatpush.msra.mxu0 0.0
    %966 = vmatpush.msra.mxu0 0.0
    %967 = vmatpush.msra.mxu0 %v271
    %968 = vmatpush.msra.mxu0 %v269
    %969 = vmatpush.msra.mxu0 %v267
    %970 = vmatpush.msra.mxu0 %v265
    %971 = vmatpush.msra.mxu0 %v263
    %972 = vmatpush.msra.mxu0 %v261
    %973 = vmatpush.msra.mxu0 %v259
    %974 = vmatpush.msra.mxu0 %v257
    %975 = vmatmul.f32.gmra.mxu0 %v957
    %v976 = vpop.f32.mrf.mxu0
    %v977 = vadd.f32 0.0, %v976
    %978 = vdwg.mxu0
    %979 = vmatpush.msra.mxu0 0.0
    %980 = vmatpush.msra.mxu0 0.0
    %981 = vmatpush.msra.mxu0 0.0
    %982 = vmatpush.msra.mxu0 0.0
    %983 = vmatpush.msra.mxu0 0.0
    %984 = vmatpush.msra.mxu0 0.0
    %985 = vmatpush.msra.mxu0 0.0
    %986 = vmatpush.msra.mxu0 0.0
    %987 = vmatpush.msra.mxu0 %v272
    %988 = vmatpush.msra.mxu0 %v270
    %989 = vmatpush.msra.mxu0 %v268
    %990 = vmatpush.msra.mxu0 %v266
    %991 = vmatpush.msra.mxu0 %v264
    %992 = vmatpush.msra.mxu0 %v262
    %993 = vmatpush.msra.mxu0 %v260
    %994 = vmatpush.msra.mxu0 %v258
    %995 = vmatmul.f32.gmra.mxu0 %v957
    %v996 = vpop.f32.mrf.mxu0
    %v997 = vadd.f32 0.0, %v996
    %998 = vdwg.mxu0
    %v1001 = vrot.slane %v977, 4
    %v1002 = vrot.slane %v997, 4
    %v1005 = vadd.f32 %v952, %v1001
    %v1006 = vadd.f32 %v953, %v1002
    %v1007 = vxor.u32 %v1005, 2147483648
    %v1008 = vxor.u32 %v1006, 2147483648
    %v1009 = vmul.f32 %v1007, 1.442695
    %v1010 = vpow.pop %v1009
    %v1011 = vmul.f32 %v1008, 1.442695
    %v1012 = vpow.pop %v1011
    %v1013 = vadd.f32 %v1010, 1.0
    %v1014 = vadd.f32 %v1012, 1.0
    %v1015 = vrcp.pop %v1013
    %v1016 = vmul.f32 %v1013, %v1015
    %v1017 = vsub.f32 1.0, %v1016
    %v1018 = vmul.f32 %v1015, %v1017
    %v1019 = vadd.f32 %v1015, %v1018
    %vm1020 = vweird.f32 %v1013
    %vm1021 = vweird.f32 %v1015
    %vm1022 = vmor %vm1020, %vm1021
    %v1023 = vsel %vm1022, %v1015, %v1019
    %v1024 = vand.u32 2147483647, %v1013
    %vm1025 = vcmp.eq.f32.partialorder %v1024, 8.507059e+37
    %v1026 = vand.u32 %v1013, 2147483648
    %v1027 = vor.u32 1.1754944e-38, %v1026
    %v1028 = vsel %vm1025, %v1027, %v1023
    %v1029 = vmul.f32 1.0, %v1028
    %v1030 = vrcp.pop %v1014
    %v1031 = vmul.f32 %v1014, %v1030
    %v1032 = vsub.f32 1.0, %v1031
    %v1033 = vmul.f32 %v1030, %v1032
    %v1034 = vadd.f32 %v1030, %v1033
    %vm1035 = vweird.f32 %v1014
    %vm1036 = vweird.f32 %v1030
    %vm1037 = vmor %vm1035, %vm1036
    %v1038 = vsel %vm1037, %v1030, %v1034
    %v1039 = vand.u32 2147483647, %v1014
    %vm1040 = vcmp.eq.f32.partialorder %v1039, 8.507059e+37
    %v1041 = vand.u32 %v1014, 2147483648
    %v1042 = vor.u32 1.1754944e-38, %v1041
    %v1043 = vsel %vm1040, %v1042, %v1038
    %v1044 = vmul.f32 1.0, %v1043
    %v1045 = vmul.f32 %v1044, 2.0
    %v1046 = vsub.f32 %v1045, 1.0
    %v1048 = vrot.slane %v940, 6
    %v1050 = vmul.f32 %v1029, %v1048
    %v1051 = vmul.f32 %v1029, %v1046
    %1053 = vrot.lane.b32.xlu0 %v1051, 64
    %v1054 = vpop.permute.xlu0 %1053
    %v1056 = vadd.f32 %v1050, %v1054
    %v1057 = vtanh.pop %v1056
    %v1058 = vmul.f32 %v1044, %v1057
    %1060 = vrot.lane.b32.xlu0 %v1058, 64
    %v1061 = vpop.permute.xlu0 %1060
    %1063 = vst.msk [vmem:[#allocation3 + $0x8] sm:$0x30] %vm606, %v1061
    %1064 = vrot.lane.b32.xlu0 %v1058, 32
    %v1065 = vpop.permute.xlu0 %1064
    %1067 = vst.msk [vmem:[%s379 - $0x2] sm:$0x30] %vm606, %v1065
    %v1068 = vld [vmem:[#allocation2 + $0x10] sm:$0xc0]
    %v1069 = vld [vmem:[#allocation2 + $0x18] sm:$0xc0]
    %v1070 = vrot.slane %v1058, 4
    %1071 = vrot.lane.b32.xlu0 %v1070, 64
    %v1072 = vpop.permute.xlu0 %1071
    %v1073 = vsel %vm275, %v1072, 0
    %1075 = vmatpush.msra.mxu0 0.0
    %1076 = vmatpush.msra.mxu0 0.0
    %1077 = vmatpush.msra.mxu0 0.0
    %1078 = vmatpush.msra.mxu0 0.0
    %1079 = vmatpush.msra.mxu0 0.0
    %1080 = vmatpush.msra.mxu0 0.0
    %1081 = vmatpush.msra.mxu0 0.0
    %1082 = vmatpush.msra.mxu0 0.0
    %1083 = vmatpush.msra.mxu0 %v271
    %1084 = vmatpush.msra.mxu0 %v269
    %1085 = vmatpush.msra.mxu0 %v267
    %1086 = vmatpush.msra.mxu0 %v265
    %1087 = vmatpush.msra.mxu0 %v263
    %1088 = vmatpush.msra.mxu0 %v261
    %1089 = vmatpush.msra.mxu0 %v259
    %1090 = vmatpush.msra.mxu0 %v257
    %1091 = vmatmul.f32.gmra.mxu0 %v1073
    %v1092 = vpop.f32.mrf.mxu0
    %v1093 = vadd.f32 0.0, %v1092
    %1094 = vdwg.mxu0
    %1095 = vmatpush.msra.mxu0 0.0
    %1096 = vmatpush.msra.mxu0 0.0
    %1097 = vmatpush.msra.mxu0 0.0
    %1098 = vmatpush.msra.mxu0 0.0
    %1099 = vmatpush.msra.mxu0 0.0
    %1100 = vmatpush.msra.mxu0 0.0
    %1101 = vmatpush.msra.mxu0 0.0
    %1102 = vmatpush.msra.mxu0 0.0
    %1103 = vmatpush.msra.mxu0 %v272
    %1104 = vmatpush.msra.mxu0 %v270
    %1105 = vmatpush.msra.mxu0 %v268
    %1106 = vmatpush.msra.mxu0 %v266
    %1107 = vmatpush.msra.mxu0 %v264
    %1108 = vmatpush.msra.mxu0 %v262
    %1109 = vmatpush.msra.mxu0 %v260
    %1110 = vmatpush.msra.mxu0 %v258
    %1111 = vmatmul.f32.gmra.mxu0 %v1073
    %v1112 = vpop.f32.mrf.mxu0
    %v1113 = vadd.f32 0.0, %v1112
    %1114 = vdwg.mxu0
    %v1117 = vrot.slane %v1093, 2
    %v1118 = vrot.slane %v1113, 2
    %v1121 = vadd.f32 %v1068, %v1117
    %v1122 = vadd.f32 %v1069, %v1118
    %v1123 = vxor.u32 %v1121, 2147483648
    %v1124 = vxor.u32 %v1122, 2147483648
    %v1125 = vmul.f32 %v1123, 1.442695
    %v1126 = vpow.pop %v1125
    %v1127 = vmul.f32 %v1124, 1.442695
    %v1128 = vpow.pop %v1127
    %v1129 = vadd.f32 %v1126, 1.0
    %v1130 = vadd.f32 %v1128, 1.0
    %v1131 = vrcp.pop %v1129
    %v1132 = vmul.f32 %v1129, %v1131
    %v1133 = vsub.f32 1.0, %v1132
    %v1134 = vmul.f32 %v1131, %v1133
    %v1135 = vadd.f32 %v1131, %v1134
    %vm1136 = vweird.f32 %v1129
    %vm1137 = vweird.f32 %v1131
    %vm1138 = vmor %vm1136, %vm1137
    %v1139 = vsel %vm1138, %v1131, %v1135
    %v1140 = vand.u32 2147483647, %v1129
    %vm1141 = vcmp.eq.f32.partialorder %v1140, 8.507059e+37
    %v1142 = vand.u32 %v1129, 2147483648
    %v1143 = vor.u32 1.1754944e-38, %v1142
    %v1144 = vsel %vm1141, %v1143, %v1139
    %v1145 = vmul.f32 1.0, %v1144
    %v1146 = vrcp.pop %v1130
    %v1147 = vmul.f32 %v1130, %v1146
    %v1148 = vsub.f32 1.0, %v1147
    %v1149 = vmul.f32 %v1146, %v1148
    %v1150 = vadd.f32 %v1146, %v1149
    %vm1151 = vweird.f32 %v1130
    %vm1152 = vweird.f32 %v1146
    %vm1153 = vmor %vm1151, %vm1152
    %v1154 = vsel %vm1153, %v1146, %v1150
    %v1155 = vand.u32 2147483647, %v1130
    %vm1156 = vcmp.eq.f32.partialorder %v1155, 8.507059e+37
    %v1157 = vand.u32 %v1130, 2147483648
    %v1158 = vor.u32 1.1754944e-38, %v1157
    %v1159 = vsel %vm1156, %v1158, %v1154
    %v1160 = vmul.f32 1.0, %v1159
    %v1161 = vmul.f32 %v1160, 2.0
    %v1162 = vsub.f32 %v1161, 1.0
    %v1164 = vrot.slane %v1056, 6
    %v1166 = vmul.f32 %v1145, %v1164
    %v1167 = vmul.f32 %v1145, %v1162
    %1169 = vrot.lane.b32.xlu0 %v1167, 64
    %v1170 = vpop.permute.xlu0 %1169
    %v1172 = vadd.f32 %v1166, %v1170
    %v1173 = vtanh.pop %v1172
    %v1174 = vmul.f32 %v1160, %v1173
    %1176 = vrot.lane.b32.xlu0 %v1174, 64
    %v1177 = vpop.permute.xlu0 %1176
    %1179 = vst.msk [vmem:[#allocation3 + $0x8] sm:$0xc0] %vm723, %v1177
    %1180 = vrot.lane.b32.xlu0 %v1174, 32
    %v1181 = vpop.permute.xlu0 %1180
    %1183 = vst.msk [vmem:[%s379 - $0x6] sm:$0xc0] %vm723, %v1181
    %v1184 = vld [vmem:[#allocation3] sm:$0xff]
    %v1185 = vld [vmem:[#allocation3 + $0x8] sm:$0xff]
    %v1186 = vld [vmem:[%s379] sm:$0xff]
    %v1187 = vld [vmem:[%s379 + $0x8] sm:$0xff]
    %v1188 = vld [vmem:[#allocation7] sm:$0xff]
    %v1189 = vld [vmem:[#allocation7 + $0x8] sm:$0xff]
    %v1190 = vld [vmem:[#allocation7 + $0x10] sm:$0xff]
    %v1191 = vld [vmem:[#allocation7 + $0x18] sm:$0xff]
    %v1192 = vld [vmem:[#allocation7 + $0x20] sm:$0xff]
    %v1193 = vld [vmem:[#allocation7 + $0x28] sm:$0xff]
    %v1194 = vld [vmem:[#allocation7 + $0x30] sm:$0xff]
    %v1195 = vld [vmem:[#allocation7 + $0x38] sm:$0xff]
    %v1196 = vld [vmem:[#allocation9] sm:$0xff]
    %v1197 = vld [vmem:[#allocation9 + $0x8] sm:$0xff]
    %v1198 = vld [vmem:[#allocation9 + $0x10] sm:$0xff]
    %v1199 = vld [vmem:[#allocation9 + $0x18] sm:$0xff]
    %v1200 = vld [vmem:[#allocation9 + $0x20] sm:$0xff]
    %v1201 = vld [vmem:[#allocation9 + $0x28] sm:$0xff]
    %v1202 = vld [vmem:[#allocation9 + $0x30] sm:$0xff]
    %v1203 = vld [vmem:[#allocation9 + $0x38] sm:$0xff]
    %v1204 = vld [vmem:[#allocation7 + $0x40] sm:$0xff]
    %v1205 = vld [vmem:[#allocation7 + $0x48] sm:$0xff]
    %v1206 = vld [vmem:[#allocation7 + $0x50] sm:$0xff]
    %v1207 = vld [vmem:[#allocation7 + $0x58] sm:$0xff]
    %v1208 = vld [vmem:[#allocation7 + $0x60] sm:$0xff]
    %v1209 = vld [vmem:[#allocation7 + $0x68] sm:$0xff]
    %v1210 = vld [vmem:[#allocation7 + $0x70] sm:$0xff]
    %v1211 = vld [vmem:[#allocation7 + $0x78] sm:$0xff]
    %v1212 = vld [vmem:[#allocation9 + $0x40] sm:$0xff]
    %v1213 = vld [vmem:[#allocation9 + $0x48] sm:$0xff]
    %v1214 = vld [vmem:[#allocation9 + $0x50] sm:$0xff]
    %v1215 = vld [vmem:[#allocation9 + $0x58] sm:$0xff]
    %v1216 = vld [vmem:[#allocation9 + $0x60] sm:$0xff]
    %v1217 = vld [vmem:[#allocation9 + $0x68] sm:$0xff]
    %v1218 = vld [vmem:[#allocation9 + $0x70] sm:$0xff]
    %v1219 = vld [vmem:[#allocation9 + $0x78] sm:$0xff]
    %vm1220 = vcmask 261120
    %v1222 = vsel %vm1220, %v1186, 0
    %v1225 = vsel %vm1220, %v1187, 0
    %1227 = vmatpush.msra.mxu0 0.0
    %1228 = vmatpush.msra.mxu0 0.0
    %1229 = vmatpush.msra.mxu0 0.0
    %1230 = vmatpush.msra.mxu0 0.0
    %1231 = vmatpush.msra.mxu0 0.0
    %1232 = vmatpush.msra.mxu0 0.0
    %1233 = vmatpush.msra.mxu0 0.0
    %1234 = vmatpush.msra.mxu0 0.0
    %1235 = vmatpush.msra.mxu0 0.0
    %1236 = vmatpush.msra.mxu0 0.0
    %1237 = vmatpush.msra.mxu0 0.0
    %1238 = vmatpush.msra.mxu0 0.0
    %1239 = vmatpush.msra.mxu0 %v1210
    %1240 = vmatpush.msra.mxu0 %v1208
    %1241 = vmatpush.msra.mxu0 %v1206
    %1242 = vmatpush.msra.mxu0 %v1204
    %1243 = vmatmul.f32.gmra.mxu0 %v1222
    %v1244 = vpop.f32.mrf.mxu0
    %v1245 = vadd.f32 0.0, %v1244
    %1246 = vmatmul.f32.gmra.mxu0 %v1225
    %v1247 = vpop.f32.mrf.mxu0
    %v1248 = vadd.f32 0.0, %v1247
    %1249 = vdwg.mxu0
    %1250 = vmatpush.msra.mxu0 0.0
    %1251 = vmatpush.msra.mxu0 0.0
    %1252 = vmatpush.msra.mxu0 0.0
    %1253 = vmatpush.msra.mxu0 0.0
    %1254 = vmatpush.msra.mxu0 0.0
    %1255 = vmatpush.msra.mxu0 0.0
    %1256 = vmatpush.msra.mxu0 0.0
    %1257 = vmatpush.msra.mxu0 0.0
    %1258 = vmatpush.msra.mxu0 0.0
    %1259 = vmatpush.msra.mxu0 0.0
    %1260 = vmatpush.msra.mxu0 0.0
    %1261 = vmatpush.msra.mxu0 0.0
    %1262 = vmatpush.msra.mxu0 %v1211
    %1263 = vmatpush.msra.mxu0 %v1209
    %1264 = vmatpush.msra.mxu0 %v1207
    %1265 = vmatpush.msra.mxu0 %v1205
    %1266 = vmatmul.f32.gmra.mxu0 %v1222
    %v1267 = vpop.f32.mrf.mxu0
    %v1268 = vadd.f32 0.0, %v1267
    %1269 = vmatmul.f32.gmra.mxu0 %v1225
    %v1270 = vpop.f32.mrf.mxu0
    %v1271 = vadd.f32 0.0, %v1270
    %1272 = vdwg.mxu0
    %1273 = vmatpush.msra.mxu0 0.0
    %1274 = vmatpush.msra.mxu0 0.0
    %1275 = vmatpush.msra.mxu0 0.0
    %1276 = vmatpush.msra.mxu0 0.0
    %1277 = vmatpush.msra.mxu0 0.0
    %1278 = vmatpush.msra.mxu0 0.0
    %1279 = vmatpush.msra.mxu0 0.0
    %1280 = vmatpush.msra.mxu0 0.0
    %1281 = vmatpush.msra.mxu0 0.0
    %1282 = vmatpush.msra.mxu0 0.0
    %1283 = vmatpush.msra.mxu0 0.0
    %1284 = vmatpush.msra.mxu0 0.0
    %1285 = vmatpush.msra.mxu0 %v1218
    %1286 = vmatpush.msra.mxu0 %v1216
    %1287 = vmatpush.msra.mxu0 %v1214
    %1288 = vmatpush.msra.mxu0 %v1212
    %1289 = vmatmul.f32.gmra.mxu0 %v1222
    %v1290 = vpop.f32.mrf.mxu0
    %v1291 = vadd.f32 0.0, %v1290
    %1292 = vmatmul.f32.gmra.mxu0 %v1225
    %v1293 = vpop.f32.mrf.mxu0
    %v1294 = vadd.f32 0.0, %v1293
    %1295 = vdwg.mxu0
    %1296 = vmatpush.msra.mxu0 0.0
    %1297 = vmatpush.msra.mxu0 0.0
    %1298 = vmatpush.msra.mxu0 0.0
    %1299 = vmatpush.msra.mxu0 0.0
    %1300 = vmatpush.msra.mxu0 0.0
    %1301 = vmatpush.msra.mxu0 0.0
    %1302 = vmatpush.msra.mxu0 0.0
    %1303 = vmatpush.msra.mxu0 0.0
    %1304 = vmatpush.msra.mxu0 0.0
    %1305 = vmatpush.msra.mxu0 0.0
    %1306 = vmatpush.msra.mxu0 0.0
    %1307 = vmatpush.msra.mxu0 0.0
    %1308 = vmatpush.msra.mxu0 %v1219
    %1309 = vmatpush.msra.mxu0 %v1217
    %1310 = vmatpush.msra.mxu0 %v1215
    %1311 = vmatpush.msra.mxu0 %v1213
    %1312 = vmatmul.f32.gmra.mxu0 %v1222
    %v1313 = vpop.f32.mrf.mxu0
    %v1314 = vadd.f32 0.0, %v1313
    %1315 = vmatmul.f32.gmra.mxu0 %v1225
    %v1316 = vpop.f32.mrf.mxu0
    %v1317 = vadd.f32 0.0, %v1316
    %1318 = vdwg.mxu0
    %v1320 = vsel %vm1220, %v1184, 0
    %v1323 = vsel %vm1220, %v1185, 0
    %1325 = vmatpush.msra.mxu0 0.0
    %1326 = vmatpush.msra.mxu0 0.0
    %1327 = vmatpush.msra.mxu0 0.0
    %1328 = vmatpush.msra.mxu0 0.0
    %1329 = vmatpush.msra.mxu0 0.0
    %1330 = vmatpush.msra.mxu0 0.0
    %1331 = vmatpush.msra.mxu0 0.0
    %1332 = vmatpush.msra.mxu0 0.0
    %1333 = vmatpush.msra.mxu0 0.0
    %1334 = vmatpush.msra.mxu0 0.0
    %1335 = vmatpush.msra.mxu0 0.0
    %1336 = vmatpush.msra.mxu0 0.0
    %1337 = vmatpush.msra.mxu0 %v1194
    %1338 = vmatpush.msra.mxu0 %v1192
    %1339 = vmatpush.msra.mxu0 %v1190
    %1340 = vmatpush.msra.mxu0 %v1188
    %1341 = vmatmul.f32.gmra.mxu0 %v1320
    %v1342 = vpop.f32.mrf.mxu0
    %v1343 = vadd.f32 %v1245, %v1342
    %1344 = vmatmul.f32.gmra.mxu0 %v1323
    %v1345 = vpop.f32.mrf.mxu0
    %v1346 = vadd.f32 %v1248, %v1345
    %1347 = vdwg.mxu0
    %1348 = vmatpush.msra.mxu0 0.0
    %1349 = vmatpush.msra.mxu0 0.0
    %1350 = vmatpush.msra.mxu0 0.0
    %1351 = vmatpush.msra.mxu0 0.0
    %1352 = vmatpush.msra.mxu0 0.0
    %1353 = vmatpush.msra.mxu0 0.0
    %1354 = vmatpush.msra.mxu0 0.0
    %1355 = vmatpush.msra.mxu0 0.0
    %1356 = vmatpush.msra.mxu0 0.0
    %1357 = vmatpush.msra.mxu0 0.0
    %1358 = vmatpush.msra.mxu0 0.0
    %1359 = vmatpush.msra.mxu0 0.0
    %1360 = vmatpush.msra.mxu0 %v1195
    %1361 = vmatpush.msra.mxu0 %v1193
    %1362 = vmatpush.msra.mxu0 %v1191
    %1363 = vmatpush.msra.mxu0 %v1189
    %1364 = vmatmul.f32.gmra.mxu0 %v1320
    %v1365 = vpop.f32.mrf.mxu0
    %v1366 = vadd.f32 %v1268, %v1365
    %1367 = vmatmul.f32.gmra.mxu0 %v1323
    %v1368 = vpop.f32.mrf.mxu0
    %v1369 = vadd.f32 %v1271, %v1368
    %1370 = vdwg.mxu0
    %1371 = vmatpush.msra.mxu0 0.0
    %1372 = vmatpush.msra.mxu0 0.0
    %1373 = vmatpush.msra.mxu0 0.0
    %1374 = vmatpush.msra.mxu0 0.0
    %1375 = vmatpush.msra.mxu0 0.0
    %1376 = vmatpush.msra.mxu0 0.0
    %1377 = vmatpush.msra.mxu0 0.0
    %1378 = vmatpush.msra.mxu0 0.0
    %1379 = vmatpush.msra.mxu0 0.0
    %1380 = vmatpush.msra.mxu0 0.0
    %1381 = vmatpush.msra.mxu0 0.0
    %1382 = vmatpush.msra.mxu0 0.0
    %1383 = vmatpush.msra.mxu0 %v1202
    %1384 = vmatpush.msra.mxu0 %v1200
    %1385 = vmatpush.msra.mxu0 %v1198
    %1386 = vmatpush.msra.mxu0 %v1196
    %1387 = vmatmul.f32.gmra.mxu0 %v1320
    %v1388 = vpop.f32.mrf.mxu0
    %v1389 = vadd.f32 %v1291, %v1388
    %1390 = vmatmul.f32.gmra.mxu0 %v1323
    %v1391 = vpop.f32.mrf.mxu0
    %v1392 = vadd.f32 %v1294, %v1391
    %1393 = vdwg.mxu0
    %1394 = vmatpush.msra.mxu0 0.0
    %1395 = vmatpush.msra.mxu0 0.0
    %1396 = vmatpush.msra.mxu0 0.0
    %1397 = vmatpush.msra.mxu0 0.0
    %1398 = vmatpush.msra.mxu0 0.0
    %1399 = vmatpush.msra.mxu0 0.0
    %1400 = vmatpush.msra.mxu0 0.0
    %1401 = vmatpush.msra.mxu0 0.0
    %1402 = vmatpush.msra.mxu0 0.0
    %1403 = vmatpush.msra.mxu0 0.0
    %1404 = vmatpush.msra.mxu0 0.0
    %1405 = vmatpush.msra.mxu0 0.0
    %1406 = vmatpush.msra.mxu0 %v1203
    %1407 = vmatpush.msra.mxu0 %v1201
    %1408 = vmatpush.msra.mxu0 %v1199
    %1409 = vmatpush.msra.mxu0 %v1197
    %1410 = vmatmul.f32.gmra.mxu0 %v1320
    %v1411 = vpop.f32.mrf.mxu0
    %v1412 = vadd.f32 %v1314, %v1411
    %1413 = vmatmul.f32.gmra.mxu0 %v1323
    %v1414 = vpop.f32.mrf.mxu0
    %v1415 = vadd.f32 %v1317, %v1414
    %1416 = vdwg.mxu0
    %v1417 = vld [vmem:[%s8] sm:$0x3]
    %v1419 = vperm.slane %v1417, 0
    %v1420 = vperm.slane %v1417, 1
    %v1423 = vadd.f32 %v1343, %v1419
    %v1424 = vadd.f32 %v1366, %v1420
    %v1425 = vadd.f32 %v1346, %v1419
    %v1426 = vadd.f32 %v1369, %v1420
    %v1429 = vrot.slane %v1392, 6
    %v1430 = vrot.slane %v1415, 6
    %v1433 = vadd.f32 %v1423, %v1429
    %v1434 = vadd.f32 %v1424, %v1430
    %1435 = vst [vmem:[#allocation2] sm:$0x3] %v1433
    %1436 = vst [vmem:[#allocation2 + $0x8] sm:$0x3] %v1434
    %v1437 = vrot.slane %v1392, 2
    %v1438 = vrot.slane %v1415, 2
    %v1441 = vadd.f32 %v1423, %v1437
    %v1442 = vadd.f32 %v1424, %v1438
    %1443 = vst [vmem:[#allocation2] sm:$0xc] %v1441
    %1444 = vst [vmem:[#allocation2 + $0x8] sm:$0xc] %v1442
    %1445 = vst [vmem:[#allocation2] sm:$0x30] %v1433
    %1446 = vst [vmem:[#allocation2 + $0x8] sm:$0x30] %v1434
    %1447 = vst [vmem:[#allocation2] sm:$0xc0] %v1441
    %1448 = vst [vmem:[#allocation2 + $0x8] sm:$0xc0] %v1442
    %v1451 = vrot.slane %v1389, 6
    %v1452 = vrot.slane %v1412, 6
    %v1455 = vadd.f32 %v1425, %v1451
    %v1456 = vadd.f32 %v1426, %v1452
    %1457 = vst [vmem:[#allocation2 + $0x10] sm:$0x3] %v1455
    %1458 = vst [vmem:[#allocation2 + $0x18] sm:$0x3] %v1456
    %v1459 = vrot.slane %v1389, 2
    %v1460 = vrot.slane %v1412, 2
    %v1463 = vadd.f32 %v1425, %v1459
    %v1464 = vadd.f32 %v1426, %v1460
    %1465 = vst [vmem:[#allocation2 + $0x10] sm:$0xc] %v1463
    %1466 = vst [vmem:[#allocation2 + $0x18] sm:$0xc] %v1464
    %1467 = vst [vmem:[#allocation2 + $0x10] sm:$0x30] %v1455
    %1468 = vst [vmem:[#allocation2 + $0x18] sm:$0x30] %v1456
    %1469 = vst [vmem:[#allocation2 + $0x10] sm:$0xc0] %v1463
    %1470 = vst [vmem:[#allocation2 + $0x18] sm:$0xc0] %v1464
    %v1471 = vld [vmem:[#allocation10] sm:$0xff]
    %v1472 = vld [vmem:[#allocation10 + $0x8] sm:$0xff]
    %v1473 = vld [vmem:[#allocation10 + $0x10] sm:$0xff]
    %v1474 = vld [vmem:[#allocation10 + $0x18] sm:$0xff]
    %v1475 = vld [vmem:[#allocation10 + $0x20] sm:$0xff]
    %v1476 = vld [vmem:[#allocation10 + $0x28] sm:$0xff]
    %v1477 = vld [vmem:[#allocation10 + $0x30] sm:$0xff]
    %v1478 = vld [vmem:[#allocation10 + $0x38] sm:$0xff]
    %v1479 = vld [vmem:[#allocation10 + $0x40] sm:$0xff]
    %v1480 = vld [vmem:[#allocation10 + $0x48] sm:$0xff]
    %v1481 = vld [vmem:[#allocation10 + $0x50] sm:$0xff]
    %v1482 = vld [vmem:[#allocation10 + $0x58] sm:$0xff]
    %v1483 = vld [vmem:[#allocation10 + $0x60] sm:$0xff]
    %v1484 = vld [vmem:[#allocation10 + $0x68] sm:$0xff]
    %v1485 = vld [vmem:[#allocation10 + $0x70] sm:$0xff]
    %v1486 = vld [vmem:[#allocation10 + $0x78] sm:$0xff]
    %v1487 = vld [vmem:[#allocation2] sm:$0x3]
    %v1488 = vld [vmem:[#allocation2 + $0x8] sm:$0x3]
    %1489 = vmatpush.msra.mxu0 0.0
    %1490 = vmatpush.msra.mxu0 0.0
    %1491 = vmatpush.msra.mxu0 0.0
    %1492 = vmatpush.msra.mxu0 0.0
    %1493 = vmatpush.msra.mxu0 0.0
    %1494 = vmatpush.msra.mxu0 0.0
    %1495 = vmatpush.msra.mxu0 0.0
    %1496 = vmatpush.msra.mxu0 0.0
    %1497 = vmatpush.msra.mxu0 %v1485
    %1498 = vmatpush.msra.mxu0 %v1483
    %1499 = vmatpush.msra.mxu0 %v1481
    %1500 = vmatpush.msra.mxu0 %v1479
    %1501 = vmatpush.msra.mxu0 %v1477
    %1502 = vmatpush.msra.mxu0 %v1475
    %1503 = vmatpush.msra.mxu0 %v1473
    %1504 = vmatpush.msra.mxu0 %v1471
    %1505 = vmatmul.f32.gmra.mxu0 %v277
    %v1506 = vpop.f32.mrf.mxu0
    %v1507 = vadd.f32 0.0, %v1506
    %1508 = vdwg.mxu0
    %1509 = vmatpush.msra.mxu0 0.0
    %1510 = vmatpush.msra.mxu0 0.0
    %1511 = vmatpush.msra.mxu0 0.0
    %1512 = vmatpush.msra.mxu0 0.0
    %1513 = vmatpush.msra.mxu0 0.0
    %1514 = vmatpush.msra.mxu0 0.0
    %1515 = vmatpush.msra.mxu0 0.0
    %1516 = vmatpush.msra.mxu0 0.0
    %1517 = vmatpush.msra.mxu0 %v1486
    %1518 = vmatpush.msra.mxu0 %v1484
    %1519 = vmatpush.msra.mxu0 %v1482
    %1520 = vmatpush.msra.mxu0 %v1480
    %1521 = vmatpush.msra.mxu0 %v1478
    %1522 = vmatpush.msra.mxu0 %v1476
    %1523 = vmatpush.msra.mxu0 %v1474
    %1524 = vmatpush.msra.mxu0 %v1472
    %1525 = vmatmul.f32.gmra.mxu0 %v277
    %v1526 = vpop.f32.mrf.mxu0
    %v1527 = vadd.f32 0.0, %v1526
    %1528 = vdwg.mxu0
    %v1529 = vadd.f32 %v1487, %v1507
    %v1530 = vadd.f32 %v1488, %v1527
    %v1531 = vxor.u32 %v1529, 2147483648
    %v1532 = vxor.u32 %v1530, 2147483648
    %v1533 = vmul.f32 %v1531, 1.442695
    %v1534 = vpow.pop %v1533
    %v1535 = vmul.f32 %v1532, 1.442695
    %v1536 = vpow.pop %v1535
    %v1537 = vadd.f32 %v1534, 1.0
    %v1538 = vadd.f32 %v1536, 1.0
    %v1539 = vrcp.pop %v1537
    %v1540 = vmul.f32 %v1537, %v1539
    %v1541 = vsub.f32 1.0, %v1540
    %v1542 = vmul.f32 %v1539, %v1541
    %v1543 = vadd.f32 %v1539, %v1542
    %vm1544 = vweird.f32 %v1537
    %vm1545 = vweird.f32 %v1539
    %vm1546 = vmor %vm1544, %vm1545
    %v1547 = vsel %vm1546, %v1539, %v1543
    %v1548 = vand.u32 2147483647, %v1537
    %vm1549 = vcmp.eq.f32.partialorder %v1548, 8.507059e+37
    %v1550 = vand.u32 %v1537, 2147483648
    %v1551 = vor.u32 1.1754944e-38, %v1550
    %v1552 = vsel %vm1549, %v1551, %v1547
    %v1553 = vmul.f32 1.0, %v1552
    %v1554 = vrcp.pop %v1538
    %v1555 = vmul.f32 %v1538, %v1554
    %v1556 = vsub.f32 1.0, %v1555
    %v1557 = vmul.f32 %v1554, %v1556
    %v1558 = vadd.f32 %v1554, %v1557
    %vm1559 = vweird.f32 %v1538
    %vm1560 = vweird.f32 %v1554
    %vm1561 = vmor %vm1559, %vm1560
    %v1562 = vsel %vm1561, %v1554, %v1558
    %v1563 = vand.u32 2147483647, %v1538
    %vm1564 = vcmp.eq.f32.partialorder %v1563, 8.507059e+37
    %v1565 = vand.u32 %v1538, 2147483648
    %v1566 = vor.u32 1.1754944e-38, %v1565
    %v1567 = vsel %vm1564, %v1566, %v1562
    %v1568 = vmul.f32 1.0, %v1567
    %v1569 = vmul.f32 %v1568, 2.0
    %v1570 = vsub.f32 %v1569, 1.0
    %v1571 = vmul.f32 %v1553, 0.0
    %v1572 = vmul.f32 %v1553, %v1570
    %1574 = vrot.lane.b32.xlu0 %v1572, 64
    %v1575 = vpop.permute.xlu0 %1574
    %v1577 = vadd.f32 %v1571, %v1575
    %v1578 = vtanh.pop %v1577
    %v1579 = vmul.f32 %v1568, %v1578
    %v1580 = vld [vmem:[#allocation2] sm:$0xc]
    %v1581 = vld [vmem:[#allocation2 + $0x8] sm:$0xc]
    %1583 = vrot.lane.b32.xlu0 %v1579, 64
    %v1584 = vpop.permute.xlu0 %1583
    %v1585 = vsel %vm275, %v1584, 0
    %1587 = vmatpush.msra.mxu0 0.0
    %1588 = vmatpush.msra.mxu0 0.0
    %1589 = vmatpush.msra.mxu0 0.0
    %1590 = vmatpush.msra.mxu0 0.0
    %1591 = vmatpush.msra.mxu0 0.0
    %1592 = vmatpush.msra.mxu0 0.0
    %1593 = vmatpush.msra.mxu0 0.0
    %1594 = vmatpush.msra.mxu0 0.0
    %1595 = vmatpush.msra.mxu0 %v1485
    %1596 = vmatpush.msra.mxu0 %v1483
    %1597 = vmatpush.msra.mxu0 %v1481
    %1598 = vmatpush.msra.mxu0 %v1479
    %1599 = vmatpush.msra.mxu0 %v1477
    %1600 = vmatpush.msra.mxu0 %v1475
    %1601 = vmatpush.msra.mxu0 %v1473
    %1602 = vmatpush.msra.mxu0 %v1471
    %1603 = vmatmul.f32.gmra.mxu0 %v1585
    %v1604 = vpop.f32.mrf.mxu0
    %v1605 = vadd.f32 0.0, %v1604
    %1606 = vdwg.mxu0
    %1607 = vmatpush.msra.mxu0 0.0
    %1608 = vmatpush.msra.mxu0 0.0
    %1609 = vmatpush.msra.mxu0 0.0
    %1610 = vmatpush.msra.mxu0 0.0
    %1611 = vmatpush.msra.mxu0 0.0
    %1612 = vmatpush.msra.mxu0 0.0
    %1613 = vmatpush.msra.mxu0 0.0
    %1614 = vmatpush.msra.mxu0 0.0
    %1615 = vmatpush.msra.mxu0 %v1486
    %1616 = vmatpush.msra.mxu0 %v1484
    %1617 = vmatpush.msra.mxu0 %v1482
    %1618 = vmatpush.msra.mxu0 %v1480
    %1619 = vmatpush.msra.mxu0 %v1478
    %1620 = vmatpush.msra.mxu0 %v1476
    %1621 = vmatpush.msra.mxu0 %v1474
    %1622 = vmatpush.msra.mxu0 %v1472
    %1623 = vmatmul.f32.gmra.mxu0 %v1585
    %v1624 = vpop.f32.mrf.mxu0
    %v1625 = vadd.f32 0.0, %v1624
    %1626 = vdwg.mxu0
    %v1629 = vrot.slane %v1605, 6
    %v1630 = vrot.slane %v1625, 6
    %v1633 = vadd.f32 %v1580, %v1629
    %v1634 = vadd.f32 %v1581, %v1630
    %v1635 = vxor.u32 %v1633, 2147483648
    %v1636 = vxor.u32 %v1634, 2147483648
    %v1637 = vmul.f32 %v1635, 1.442695
    %v1638 = vpow.pop %v1637
    %v1639 = vmul.f32 %v1636, 1.442695
    %v1640 = vpow.pop %v1639
    %v1641 = vadd.f32 %v1638, 1.0
    %v1642 = vadd.f32 %v1640, 1.0
    %v1643 = vrcp.pop %v1641
    %v1644 = vmul.f32 %v1641, %v1643
    %v1645 = vsub.f32 1.0, %v1644
    %v1646 = vmul.f32 %v1643, %v1645
    %v1647 = vadd.f32 %v1643, %v1646
    %vm1648 = vweird.f32 %v1641
    %vm1649 = vweird.f32 %v1643
    %vm1650 = vmor %vm1648, %vm1649
    %v1651 = vsel %vm1650, %v1643, %v1647
    %v1652 = vand.u32 2147483647, %v1641
    %vm1653 = vcmp.eq.f32.partialorder %v1652, 8.507059e+37
    %v1654 = vand.u32 %v1641, 2147483648
    %v1655 = vor.u32 1.1754944e-38, %v1654
    %v1656 = vsel %vm1653, %v1655, %v1651
    %v1657 = vmul.f32 1.0, %v1656
    %v1658 = vrcp.pop %v1642
    %v1659 = vmul.f32 %v1642, %v1658
    %v1660 = vsub.f32 1.0, %v1659
    %v1661 = vmul.f32 %v1658, %v1660
    %v1662 = vadd.f32 %v1658, %v1661
    %vm1663 = vweird.f32 %v1642
    %vm1664 = vweird.f32 %v1658
    %vm1665 = vmor %vm1663, %vm1664
    %v1666 = vsel %vm1665, %v1658, %v1662
    %v1667 = vand.u32 2147483647, %v1642
    %vm1668 = vcmp.eq.f32.partialorder %v1667, 8.507059e+37
    %v1669 = vand.u32 %v1642, 2147483648
    %v1670 = vor.u32 1.1754944e-38, %v1669
    %v1671 = vsel %vm1668, %v1670, %v1666
    %v1672 = vmul.f32 1.0, %v1671
    %v1673 = vmul.f32 %v1672, 2.0
    %v1674 = vsub.f32 %v1673, 1.0
    %v1676 = vrot.slane %v1577, 6
    %v1678 = vmul.f32 %v1657, %v1676
    %v1679 = vmul.f32 %v1657, %v1674
    %1681 = vrot.lane.b32.xlu0 %v1679, 64
    %v1682 = vpop.permute.xlu0 %1681
    %v1684 = vadd.f32 %v1678, %v1682
    %v1685 = vtanh.pop %v1684
    %v1686 = vmul.f32 %v1672, %v1685
    %v1687 = vld [vmem:[#allocation2] sm:$0x30]
    %v1688 = vld [vmem:[#allocation2 + $0x8] sm:$0x30]
    %v1690 = vrot.slane %v1686, 2
    %1691 = vrot.lane.b32.xlu0 %v1690, 64
    %v1692 = vpop.permute.xlu0 %1691
    %v1693 = vsel %vm275, %v1692, 0
    %1695 = vmatpush.msra.mxu0 0.0
    %1696 = vmatpush.msra.mxu0 0.0
    %1697 = vmatpush.msra.mxu0 0.0
    %1698 = vmatpush.msra.mxu0 0.0
    %1699 = vmatpush.msra.mxu0 0.0
    %1700 = vmatpush.msra.mxu0 0.0
    %1701 = vmatpush.msra.mxu0 0.0
    %1702 = vmatpush.msra.mxu0 0.0
    %1703 = vmatpush.msra.mxu0 %v1485
    %1704 = vmatpush.msra.mxu0 %v1483
    %1705 = vmatpush.msra.mxu0 %v1481
    %1706 = vmatpush.msra.mxu0 %v1479
    %1707 = vmatpush.msra.mxu0 %v1477
    %1708 = vmatpush.msra.mxu0 %v1475
    %1709 = vmatpush.msra.mxu0 %v1473
    %1710 = vmatpush.msra.mxu0 %v1471
    %1711 = vmatmul.f32.gmra.mxu0 %v1693
    %v1712 = vpop.f32.mrf.mxu0
    %v1713 = vadd.f32 0.0, %v1712
    %1714 = vdwg.mxu0
    %1715 = vmatpush.msra.mxu0 0.0
    %1716 = vmatpush.msra.mxu0 0.0
    %1717 = vmatpush.msra.mxu0 0.0
    %1718 = vmatpush.msra.mxu0 0.0
    %1719 = vmatpush.msra.mxu0 0.0
    %1720 = vmatpush.msra.mxu0 0.0
    %1721 = vmatpush.msra.mxu0 0.0
    %1722 = vmatpush.msra.mxu0 0.0
    %1723 = vmatpush.msra.mxu0 %v1486
    %1724 = vmatpush.msra.mxu0 %v1484
    %1725 = vmatpush.msra.mxu0 %v1482
    %1726 = vmatpush.msra.mxu0 %v1480
    %1727 = vmatpush.msra.mxu0 %v1478
    %1728 = vmatpush.msra.mxu0 %v1476
    %1729 = vmatpush.msra.mxu0 %v1474
    %1730 = vmatpush.msra.mxu0 %v1472
    %1731 = vmatmul.f32.gmra.mxu0 %v1693
    %v1732 = vpop.f32.mrf.mxu0
    %v1733 = vadd.f32 0.0, %v1732
    %1734 = vdwg.mxu0
    %v1737 = vrot.slane %v1713, 4
    %v1738 = vrot.slane %v1733, 4
    %v1741 = vadd.f32 %v1687, %v1737
    %v1742 = vadd.f32 %v1688, %v1738
    %v1743 = vxor.u32 %v1741, 2147483648
    %v1744 = vxor.u32 %v1742, 2147483648
    %v1745 = vmul.f32 %v1743, 1.442695
    %v1746 = vpow.pop %v1745
    %v1747 = vmul.f32 %v1744, 1.442695
    %v1748 = vpow.pop %v1747
    %v1749 = vadd.f32 %v1746, 1.0
    %v1750 = vadd.f32 %v1748, 1.0
    %v1751 = vrcp.pop %v1749
    %v1752 = vmul.f32 %v1749, %v1751
    %v1753 = vsub.f32 1.0, %v1752
    %v1754 = vmul.f32 %v1751, %v1753
    %v1755 = vadd.f32 %v1751, %v1754
    %vm1756 = vweird.f32 %v1749
    %vm1757 = vweird.f32 %v1751
    %vm1758 = vmor %vm1756, %vm1757
    %v1759 = vsel %vm1758, %v1751, %v1755
    %v1760 = vand.u32 2147483647, %v1749
    %vm1761 = vcmp.eq.f32.partialorder %v1760, 8.507059e+37
    %v1762 = vand.u32 %v1749, 2147483648
    %v1763 = vor.u32 1.1754944e-38, %v1762
    %v1764 = vsel %vm1761, %v1763, %v1759
    %v1765 = vmul.f32 1.0, %v1764
    %v1766 = vrcp.pop %v1750
    %v1767 = vmul.f32 %v1750, %v1766
    %v1768 = vsub.f32 1.0, %v1767
    %v1769 = vmul.f32 %v1766, %v1768
    %v1770 = vadd.f32 %v1766, %v1769
    %vm1771 = vweird.f32 %v1750
    %vm1772 = vweird.f32 %v1766
    %vm1773 = vmor %vm1771, %vm1772
    %v1774 = vsel %vm1773, %v1766, %v1770
    %v1775 = vand.u32 2147483647, %v1750
    %vm1776 = vcmp.eq.f32.partialorder %v1775, 8.507059e+37
    %v1777 = vand.u32 %v1750, 2147483648
    %v1778 = vor.u32 1.1754944e-38, %v1777
    %v1779 = vsel %vm1776, %v1778, %v1774
    %v1780 = vmul.f32 1.0, %v1779
    %v1781 = vmul.f32 %v1780, 2.0
    %v1782 = vsub.f32 %v1781, 1.0
    %v1784 = vrot.slane %v1684, 6
    %v1786 = vmul.f32 %v1765, %v1784
    %v1787 = vmul.f32 %v1765, %v1782
    %1789 = vrot.lane.b32.xlu0 %v1787, 64
    %v1790 = vpop.permute.xlu0 %1789
    %v1792 = vadd.f32 %v1786, %v1790
    %v1793 = vtanh.pop %v1792
    %v1794 = vmul.f32 %v1780, %v1793
    %v1795 = vld [vmem:[#allocation2] sm:$0xc0]
    %v1796 = vld [vmem:[#allocation2 + $0x8] sm:$0xc0]
    %v1798 = vrot.slane %v1794, 4
    %1799 = vrot.lane.b32.xlu0 %v1798, 64
    %v1800 = vpop.permute.xlu0 %1799
    %v1801 = vsel %vm275, %v1800, 0
    %1803 = vmatpush.msra.mxu0 0.0
    %1804 = vmatpush.msra.mxu0 0.0
    %1805 = vmatpush.msra.mxu0 0.0
    %1806 = vmatpush.msra.mxu0 0.0
    %1807 = vmatpush.msra.mxu0 0.0
    %1808 = vmatpush.msra.mxu0 0.0
    %1809 = vmatpush.msra.mxu0 0.0
    %1810 = vmatpush.msra.mxu0 0.0
    %1811 = vmatpush.msra.mxu0 %v1485
    %1812 = vmatpush.msra.mxu0 %v1483
    %1813 = vmatpush.msra.mxu0 %v1481
    %1814 = vmatpush.msra.mxu0 %v1479
    %1815 = vmatpush.msra.mxu0 %v1477
    %1816 = vmatpush.msra.mxu0 %v1475
    %1817 = vmatpush.msra.mxu0 %v1473
    %1818 = vmatpush.msra.mxu0 %v1471
    %1819 = vmatmul.f32.gmra.mxu0 %v1801
    %v1820 = vpop.f32.mrf.mxu0
    %v1821 = vadd.f32 0.0, %v1820
    %1822 = vdwg.mxu0
    %1823 = vmatpush.msra.mxu0 0.0
    %1824 = vmatpush.msra.mxu0 0.0
    %1825 = vmatpush.msra.mxu0 0.0
    %1826 = vmatpush.msra.mxu0 0.0
    %1827 = vmatpush.msra.mxu0 0.0
    %1828 = vmatpush.msra.mxu0 0.0
    %1829 = vmatpush.msra.mxu0 0.0
    %1830 = vmatpush.msra.mxu0 0.0
    %1831 = vmatpush.msra.mxu0 %v1486
    %1832 = vmatpush.msra.mxu0 %v1484
    %1833 = vmatpush.msra.mxu0 %v1482
    %1834 = vmatpush.msra.mxu0 %v1480
    %1835 = vmatpush.msra.mxu0 %v1478
    %1836 = vmatpush.msra.mxu0 %v1476
    %1837 = vmatpush.msra.mxu0 %v1474
    %1838 = vmatpush.msra.mxu0 %v1472
    %1839 = vmatmul.f32.gmra.mxu0 %v1801
    %v1840 = vpop.f32.mrf.mxu0
    %v1841 = vadd.f32 0.0, %v1840
    %1842 = vdwg.mxu0
    %v1845 = vrot.slane %v1821, 2
    %v1846 = vrot.slane %v1841, 2
    %v1849 = vadd.f32 %v1795, %v1845
    %v1850 = vadd.f32 %v1796, %v1846
    %v1851 = vxor.u32 %v1849, 2147483648
    %v1852 = vxor.u32 %v1850, 2147483648
    %v1853 = vmul.f32 %v1851, 1.442695
    %v1854 = vpow.pop %v1853
    %v1855 = vmul.f32 %v1852, 1.442695
    %v1856 = vpow.pop %v1855
    %v1857 = vadd.f32 %v1854, 1.0
    %v1858 = vadd.f32 %v1856, 1.0
    %v1859 = vrcp.pop %v1857
    %v1860 = vmul.f32 %v1857, %v1859
    %v1861 = vsub.f32 1.0, %v1860
    %v1862 = vmul.f32 %v1859, %v1861
    %v1863 = vadd.f32 %v1859, %v1862
    %vm1864 = vweird.f32 %v1857
    %vm1865 = vweird.f32 %v1859
    %vm1866 = vmor %vm1864, %vm1865
    %v1867 = vsel %vm1866, %v1859, %v1863
    %v1868 = vand.u32 2147483647, %v1857
    %vm1869 = vcmp.eq.f32.partialorder %v1868, 8.507059e+37
    %v1870 = vand.u32 %v1857, 2147483648
    %v1871 = vor.u32 1.1754944e-38, %v1870
    %v1872 = vsel %vm1869, %v1871, %v1867
    %v1873 = vmul.f32 1.0, %v1872
    %v1874 = vrcp.pop %v1858
    %v1875 = vmul.f32 %v1858, %v1874
    %v1876 = vsub.f32 1.0, %v1875
    %v1877 = vmul.f32 %v1874, %v1876
    %v1878 = vadd.f32 %v1874, %v1877
    %vm1879 = vweird.f32 %v1858
    %vm1880 = vweird.f32 %v1874
    %vm1881 = vmor %vm1879, %vm1880
    %v1882 = vsel %vm1881, %v1874, %v1878
    %v1883 = vand.u32 2147483647, %v1858
    %vm1884 = vcmp.eq.f32.partialorder %v1883, 8.507059e+37
    %v1885 = vand.u32 %v1858, 2147483648
    %v1886 = vor.u32 1.1754944e-38, %v1885
    %v1887 = vsel %vm1884, %v1886, %v1882
    %v1888 = vmul.f32 1.0, %v1887
    %v1889 = vmul.f32 %v1888, 2.0
    %v1890 = vsub.f32 %v1889, 1.0
    %v1892 = vrot.slane %v1792, 6
    %v1894 = vmul.f32 %v1873, %v1892
    %v1895 = vmul.f32 %v1873, %v1890
    %1897 = vrot.lane.b32.xlu0 %v1895, 64
    %v1898 = vpop.permute.xlu0 %1897
    %v1900 = vadd.f32 %v1894, %v1898
    %v1901 = vtanh.pop %v1900
    %v1902 = vmul.f32 %v1888, %v1901
    %v1903 = vld [vmem:[#allocation2 + $0x10] sm:$0x3]
    %v1904 = vld [vmem:[#allocation2 + $0x18] sm:$0x3]
    %v1906 = vrot.slane %v1902, 6
    %1907 = vrot.lane.b32.xlu0 %v1906, 64
    %v1908 = vpop.permute.xlu0 %1907
    %v1909 = vsel %vm275, %v1908, 0
    %1911 = vmatpush.msra.mxu0 0.0
    %1912 = vmatpush.msra.mxu0 0.0
    %1913 = vmatpush.msra.mxu0 0.0
    %1914 = vmatpush.msra.mxu0 0.0
    %1915 = vmatpush.msra.mxu0 0.0
    %1916 = vmatpush.msra.mxu0 0.0
    %1917 = vmatpush.msra.mxu0 0.0
    %1918 = vmatpush.msra.mxu0 0.0
    %1919 = vmatpush.msra.mxu0 %v1485
    %1920 = vmatpush.msra.mxu0 %v1483
    %1921 = vmatpush.msra.mxu0 %v1481
    %1922 = vmatpush.msra.mxu0 %v1479
    %1923 = vmatpush.msra.mxu0 %v1477
    %1924 = vmatpush.msra.mxu0 %v1475
    %1925 = vmatpush.msra.mxu0 %v1473
    %1926 = vmatpush.msra.mxu0 %v1471
    %1927 = vmatmul.f32.gmra.mxu0 %v1909
    %v1928 = vpop.f32.mrf.mxu0
    %v1929 = vadd.f32 0.0, %v1928
    %1930 = vdwg.mxu0
    %1931 = vmatpush.msra.mxu0 0.0
    %1932 = vmatpush.msra.mxu0 0.0
    %1933 = vmatpush.msra.mxu0 0.0
    %1934 = vmatpush.msra.mxu0 0.0
    %1935 = vmatpush.msra.mxu0 0.0
    %1936 = vmatpush.msra.mxu0 0.0
    %1937 = vmatpush.msra.mxu0 0.0
    %1938 = vmatpush.msra.mxu0 0.0
    %1939 = vmatpush.msra.mxu0 %v1486
    %1940 = vmatpush.msra.mxu0 %v1484
    %1941 = vmatpush.msra.mxu0 %v1482
    %1942 = vmatpush.msra.mxu0 %v1480
    %1943 = vmatpush.msra.mxu0 %v1478
    %1944 = vmatpush.msra.mxu0 %v1476
    %1945 = vmatpush.msra.mxu0 %v1474
    %1946 = vmatpush.msra.mxu0 %v1472
    %1947 = vmatmul.f32.gmra.mxu0 %v1909
    %v1948 = vpop.f32.mrf.mxu0
    %v1949 = vadd.f32 0.0, %v1948
    %1950 = vdwg.mxu0
    %v1951 = vadd.f32 %v1903, %v1929
    %v1952 = vadd.f32 %v1904, %v1949
    %v1953 = vxor.u32 %v1951, 2147483648
    %v1954 = vxor.u32 %v1952, 2147483648
    %v1955 = vmul.f32 %v1953, 1.442695
    %v1956 = vpow.pop %v1955
    %v1957 = vmul.f32 %v1954, 1.442695
    %v1958 = vpow.pop %v1957
    %v1959 = vadd.f32 %v1956, 1.0
    %v1960 = vadd.f32 %v1958, 1.0
    %v1961 = vrcp.pop %v1959
    %v1962 = vmul.f32 %v1959, %v1961
    %v1963 = vsub.f32 1.0, %v1962
    %v1964 = vmul.f32 %v1961, %v1963
    %v1965 = vadd.f32 %v1961, %v1964
    %vm1966 = vweird.f32 %v1959
    %vm1967 = vweird.f32 %v1961
    %vm1968 = vmor %vm1966, %vm1967
    %v1969 = vsel %vm1968, %v1961, %v1965
    %v1970 = vand.u32 2147483647, %v1959
    %vm1971 = vcmp.eq.f32.partialorder %v1970, 8.507059e+37
    %v1972 = vand.u32 %v1959, 2147483648
    %v1973 = vor.u32 1.1754944e-38, %v1972
    %v1974 = vsel %vm1971, %v1973, %v1969
    %v1975 = vmul.f32 1.0, %v1974
    %v1976 = vrcp.pop %v1960
    %v1977 = vmul.f32 %v1960, %v1976
    %v1978 = vsub.f32 1.0, %v1977
    %v1979 = vmul.f32 %v1976, %v1978
    %v1980 = vadd.f32 %v1976, %v1979
    %vm1981 = vweird.f32 %v1960
    %vm1982 = vweird.f32 %v1976
    %vm1983 = vmor %vm1981, %vm1982
    %v1984 = vsel %vm1983, %v1976, %v1980
    %v1985 = vand.u32 2147483647, %v1960
    %vm1986 = vcmp.eq.f32.partialorder %v1985, 8.507059e+37
    %v1987 = vand.u32 %v1960, 2147483648
    %v1988 = vor.u32 1.1754944e-38, %v1987
    %v1989 = vsel %vm1986, %v1988, %v1984
    %v1990 = vmul.f32 1.0, %v1989
    %v1991 = vmul.f32 %v1990, 2.0
    %v1992 = vsub.f32 %v1991, 1.0
    %v1994 = vrot.slane %v1900, 6
    %v1996 = vmul.f32 %v1975, %v1994
    %v1997 = vmul.f32 %v1975, %v1992
    %1999 = vrot.lane.b32.xlu0 %v1997, 64
    %v2000 = vpop.permute.xlu0 %1999
    %v2002 = vadd.f32 %v1996, %v2000
    %v2003 = vtanh.pop %v2002
    %v2004 = vmul.f32 %v1990, %v2003
    %v2005 = vld [vmem:[#allocation2 + $0x10] sm:$0xc]
    %v2006 = vld [vmem:[#allocation2 + $0x18] sm:$0xc]
    %2008 = vrot.lane.b32.xlu0 %v2004, 64
    %v2009 = vpop.permute.xlu0 %2008
    %v2010 = vsel %vm275, %v2009, 0
    %2012 = vmatpush.msra.mxu0 0.0
    %2013 = vmatpush.msra.mxu0 0.0
    %2014 = vmatpush.msra.mxu0 0.0
    %2015 = vmatpush.msra.mxu0 0.0
    %2016 = vmatpush.msra.mxu0 0.0
    %2017 = vmatpush.msra.mxu0 0.0
    %2018 = vmatpush.msra.mxu0 0.0
    %2019 = vmatpush.msra.mxu0 0.0
    %2020 = vmatpush.msra.mxu0 %v1485
    %2021 = vmatpush.msra.mxu0 %v1483
    %2022 = vmatpush.msra.mxu0 %v1481
    %2023 = vmatpush.msra.mxu0 %v1479
    %2024 = vmatpush.msra.mxu0 %v1477
    %2025 = vmatpush.msra.mxu0 %v1475
    %2026 = vmatpush.msra.mxu0 %v1473
    %2027 = vmatpush.msra.mxu0 %v1471
    %2028 = vmatmul.f32.gmra.mxu0 %v2010
    %v2029 = vpop.f32.mrf.mxu0
    %v2030 = vadd.f32 0.0, %v2029
    %2031 = vdwg.mxu0
    %2032 = vmatpush.msra.mxu0 0.0
    %2033 = vmatpush.msra.mxu0 0.0
    %2034 = vmatpush.msra.mxu0 0.0
    %2035 = vmatpush.msra.mxu0 0.0
    %2036 = vmatpush.msra.mxu0 0.0
    %2037 = vmatpush.msra.mxu0 0.0
    %2038 = vmatpush.msra.mxu0 0.0
    %2039 = vmatpush.msra.mxu0 0.0
    %2040 = vmatpush.msra.mxu0 %v1486
    %2041 = vmatpush.msra.mxu0 %v1484
    %2042 = vmatpush.msra.mxu0 %v1482
    %2043 = vmatpush.msra.mxu0 %v1480
    %2044 = vmatpush.msra.mxu0 %v1478
    %2045 = vmatpush.msra.mxu0 %v1476
    %2046 = vmatpush.msra.mxu0 %v1474
    %2047 = vmatpush.msra.mxu0 %v1472
    %2048 = vmatmul.f32.gmra.mxu0 %v2010
    %v2049 = vpop.f32.mrf.mxu0
    %v2050 = vadd.f32 0.0, %v2049
    %2051 = vdwg.mxu0
    %v2054 = vrot.slane %v2030, 6
    %v2055 = vrot.slane %v2050, 6
    %v2058 = vadd.f32 %v2005, %v2054
    %v2059 = vadd.f32 %v2006, %v2055
    %v2060 = vxor.u32 %v2058, 2147483648
    %v2061 = vxor.u32 %v2059, 2147483648
    %v2062 = vmul.f32 %v2060, 1.442695
    %v2063 = vpow.pop %v2062
    %v2064 = vmul.f32 %v2061, 1.442695
    %v2065 = vpow.pop %v2064
    %v2066 = vadd.f32 %v2063, 1.0
    %v2067 = vadd.f32 %v2065, 1.0
    %v2068 = vrcp.pop %v2066
    %v2069 = vmul.f32 %v2066, %v2068
    %v2070 = vsub.f32 1.0, %v2069
    %v2071 = vmul.f32 %v2068, %v2070
    %v2072 = vadd.f32 %v2068, %v2071
    %vm2073 = vweird.f32 %v2066
    %vm2074 = vweird.f32 %v2068
    %vm2075 = vmor %vm2073, %vm2074
    %v2076 = vsel %vm2075, %v2068, %v2072
    %v2077 = vand.u32 2147483647, %v2066
    %vm2078 = vcmp.eq.f32.partialorder %v2077, 8.507059e+37
    %v2079 = vand.u32 %v2066, 2147483648
    %v2080 = vor.u32 1.1754944e-38, %v2079
    %v2081 = vsel %vm2078, %v2080, %v2076
    %v2082 = vmul.f32 1.0, %v2081
    %v2083 = vrcp.pop %v2067
    %v2084 = vmul.f32 %v2067, %v2083
    %v2085 = vsub.f32 1.0, %v2084
    %v2086 = vmul.f32 %v2083, %v2085
    %v2087 = vadd.f32 %v2083, %v2086
    %vm2088 = vweird.f32 %v2067
    %vm2089 = vweird.f32 %v2083
    %vm2090 = vmor %vm2088, %vm2089
    %v2091 = vsel %vm2090, %v2083, %v2087
    %v2092 = vand.u32 2147483647, %v2067
    %vm2093 = vcmp.eq.f32.partialorder %v2092, 8.507059e+37
    %v2094 = vand.u32 %v2067, 2147483648
    %v2095 = vor.u32 1.1754944e-38, %v2094
    %v2096 = vsel %vm2093, %v2095, %v2091
    %v2097 = vmul.f32 1.0, %v2096
    %v2098 = vmul.f32 %v2097, 2.0
    %v2099 = vsub.f32 %v2098, 1.0
    %v2101 = vrot.slane %v2002, 6
    %v2103 = vmul.f32 %v2082, %v2101
    %v2104 = vmul.f32 %v2082, %v2099
    %2106 = vrot.lane.b32.xlu0 %v2104, 64
    %v2107 = vpop.permute.xlu0 %2106
    %v2109 = vadd.f32 %v2103, %v2107
    %v2110 = vtanh.pop %v2109
    %v2111 = vmul.f32 %v2097, %v2110
    %v2112 = vld [vmem:[#allocation2 + $0x10] sm:$0x30]
    %v2113 = vld [vmem:[#allocation2 + $0x18] sm:$0x30]
    %v2115 = vrot.slane %v2111, 2
    %2116 = vrot.lane.b32.xlu0 %v2115, 64
    %v2117 = vpop.permute.xlu0 %2116
    %v2118 = vsel %vm275, %v2117, 0
    %2120 = vmatpush.msra.mxu0 0.0
    %2121 = vmatpush.msra.mxu0 0.0
    %2122 = vmatpush.msra.mxu0 0.0
    %2123 = vmatpush.msra.mxu0 0.0
    %2124 = vmatpush.msra.mxu0 0.0
    %2125 = vmatpush.msra.mxu0 0.0
    %2126 = vmatpush.msra.mxu0 0.0
    %2127 = vmatpush.msra.mxu0 0.0
    %2128 = vmatpush.msra.mxu0 %v1485
    %2129 = vmatpush.msra.mxu0 %v1483
    %2130 = vmatpush.msra.mxu0 %v1481
    %2131 = vmatpush.msra.mxu0 %v1479
    %2132 = vmatpush.msra.mxu0 %v1477
    %2133 = vmatpush.msra.mxu0 %v1475
    %2134 = vmatpush.msra.mxu0 %v1473
    %2135 = vmatpush.msra.mxu0 %v1471
    %2136 = vmatmul.f32.gmra.mxu0 %v2118
    %v2137 = vpop.f32.mrf.mxu0
    %v2138 = vadd.f32 0.0, %v2137
    %2139 = vdwg.mxu0
    %2140 = vmatpush.msra.mxu0 0.0
    %2141 = vmatpush.msra.mxu0 0.0
    %2142 = vmatpush.msra.mxu0 0.0
    %2143 = vmatpush.msra.mxu0 0.0
    %2144 = vmatpush.msra.mxu0 0.0
    %2145 = vmatpush.msra.mxu0 0.0
    %2146 = vmatpush.msra.mxu0 0.0
    %2147 = vmatpush.msra.mxu0 0.0
    %2148 = vmatpush.msra.mxu0 %v1486
    %2149 = vmatpush.msra.mxu0 %v1484
    %2150 = vmatpush.msra.mxu0 %v1482
    %2151 = vmatpush.msra.mxu0 %v1480
    %2152 = vmatpush.msra.mxu0 %v1478
    %2153 = vmatpush.msra.mxu0 %v1476
    %2154 = vmatpush.msra.mxu0 %v1474
    %2155 = vmatpush.msra.mxu0 %v1472
    %2156 = vmatmul.f32.gmra.mxu0 %v2118
    %v2157 = vpop.f32.mrf.mxu0
    %v2158 = vadd.f32 0.0, %v2157
    %2159 = vdwg.mxu0
    %v2162 = vrot.slane %v2138, 4
    %v2163 = vrot.slane %v2158, 4
    %v2166 = vadd.f32 %v2112, %v2162
    %v2167 = vadd.f32 %v2113, %v2163
    %v2168 = vxor.u32 %v2166, 2147483648
    %v2169 = vxor.u32 %v2167, 2147483648
    %v2170 = vmul.f32 %v2168, 1.442695
    %v2171 = vpow.pop %v2170
    %v2172 = vmul.f32 %v2169, 1.442695
    %v2173 = vpow.pop %v2172
    %v2174 = vadd.f32 %v2171, 1.0
    %v2175 = vadd.f32 %v2173, 1.0
    %v2176 = vrcp.pop %v2174
    %v2177 = vmul.f32 %v2174, %v2176
    %v2178 = vsub.f32 1.0, %v2177
    %v2179 = vmul.f32 %v2176, %v2178
    %v2180 = vadd.f32 %v2176, %v2179
    %vm2181 = vweird.f32 %v2174
    %vm2182 = vweird.f32 %v2176
    %vm2183 = vmor %vm2181, %vm2182
    %v2184 = vsel %vm2183, %v2176, %v2180
    %v2185 = vand.u32 2147483647, %v2174
    %vm2186 = vcmp.eq.f32.partialorder %v2185, 8.507059e+37
    %v2187 = vand.u32 %v2174, 2147483648
    %v2188 = vor.u32 1.1754944e-38, %v2187
    %v2189 = vsel %vm2186, %v2188, %v2184
    %v2190 = vmul.f32 1.0, %v2189
    %v2191 = vrcp.pop %v2175
    %v2192 = vmul.f32 %v2175, %v2191
    %v2193 = vsub.f32 1.0, %v2192
    %v2194 = vmul.f32 %v2191, %v2193
    %v2195 = vadd.f32 %v2191, %v2194
    %vm2196 = vweird.f32 %v2175
    %vm2197 = vweird.f32 %v2191
    %vm2198 = vmor %vm2196, %vm2197
    %v2199 = vsel %vm2198, %v2191, %v2195
    %v2200 = vand.u32 2147483647, %v2175
    %vm2201 = vcmp.eq.f32.partialorder %v2200, 8.507059e+37
    %v2202 = vand.u32 %v2175, 2147483648
    %v2203 = vor.u32 1.1754944e-38, %v2202
    %v2204 = vsel %vm2201, %v2203, %v2199
    %v2205 = vmul.f32 1.0, %v2204
    %v2206 = vmul.f32 %v2205, 2.0
    %v2207 = vsub.f32 %v2206, 1.0
    %v2209 = vrot.slane %v2109, 6
    %v2211 = vmul.f32 %v2190, %v2209
    %v2212 = vmul.f32 %v2190, %v2207
    %2214 = vrot.lane.b32.xlu0 %v2212, 64
    %v2215 = vpop.permute.xlu0 %2214
    %v2217 = vadd.f32 %v2211, %v2215
    %v2218 = vtanh.pop %v2217
    %v2219 = vmul.f32 %v2205, %v2218
    %v2220 = vld [vmem:[#allocation2 + $0x10] sm:$0xc0]
    %v2221 = vld [vmem:[#allocation2 + $0x18] sm:$0xc0]
    %v2223 = vrot.slane %v2219, 4
    %2224 = vrot.lane.b32.xlu0 %v2223, 64
    %v2225 = vpop.permute.xlu0 %2224
    %v2226 = vsel %vm275, %v2225, 0
    %2228 = vmatpush.msra.mxu0 0.0
    %2229 = vmatpush.msra.mxu0 0.0
    %2230 = vmatpush.msra.mxu0 0.0
    %2231 = vmatpush.msra.mxu0 0.0
    %2232 = vmatpush.msra.mxu0 0.0
    %2233 = vmatpush.msra.mxu0 0.0
    %2234 = vmatpush.msra.mxu0 0.0
    %2235 = vmatpush.msra.mxu0 0.0
    %2236 = vmatpush.msra.mxu0 %v1485
    %2237 = vmatpush.msra.mxu0 %v1483
    %2238 = vmatpush.msra.mxu0 %v1481
    %2239 = vmatpush.msra.mxu0 %v1479
    %2240 = vmatpush.msra.mxu0 %v1477
    %2241 = vmatpush.msra.mxu0 %v1475
    %2242 = vmatpush.msra.mxu0 %v1473
    %2243 = vmatpush.msra.mxu0 %v1471
    %2244 = vmatmul.f32.gmra.mxu0 %v2226
    %v2245 = vpop.f32.mrf.mxu0
    %v2246 = vadd.f32 0.0, %v2245
    %2247 = vdwg.mxu0
    %2248 = vmatpush.msra.mxu0 0.0
    %2249 = vmatpush.msra.mxu0 0.0
    %2250 = vmatpush.msra.mxu0 0.0
    %2251 = vmatpush.msra.mxu0 0.0
    %2252 = vmatpush.msra.mxu0 0.0
    %2253 = vmatpush.msra.mxu0 0.0
    %2254 = vmatpush.msra.mxu0 0.0
    %2255 = vmatpush.msra.mxu0 0.0
    %2256 = vmatpush.msra.mxu0 %v1486
    %2257 = vmatpush.msra.mxu0 %v1484
    %2258 = vmatpush.msra.mxu0 %v1482
    %2259 = vmatpush.msra.mxu0 %v1480
    %2260 = vmatpush.msra.mxu0 %v1478
    %2261 = vmatpush.msra.mxu0 %v1476
    %2262 = vmatpush.msra.mxu0 %v1474
    %2263 = vmatpush.msra.mxu0 %v1472
    %2264 = vmatmul.f32.gmra.mxu0 %v2226
    %v2265 = vpop.f32.mrf.mxu0
    %v2266 = vadd.f32 0.0, %v2265
    %2267 = vdwg.mxu0
    %v2270 = vrot.slane %v2246, 2
    %v2271 = vrot.slane %v2266, 2
    %v2274 = vadd.f32 %v2220, %v2270
    %v2275 = vadd.f32 %v2221, %v2271
    %v2276 = vxor.u32 %v2274, 2147483648
    %v2277 = vxor.u32 %v2275, 2147483648
    %v2278 = vmul.f32 %v2276, 1.442695
    %v2279 = vpow.pop %v2278
    %v2280 = vmul.f32 %v2277, 1.442695
    %v2281 = vpow.pop %v2280
    %v2282 = vadd.f32 %v2279, 1.0
    %v2283 = vadd.f32 %v2281, 1.0
    %v2284 = vrcp.pop %v2282
    %v2285 = vmul.f32 %v2282, %v2284
    %v2286 = vsub.f32 1.0, %v2285
    %v2287 = vmul.f32 %v2284, %v2286
    %v2288 = vadd.f32 %v2284, %v2287
    %vm2289 = vweird.f32 %v2282
    %vm2290 = vweird.f32 %v2284
    %vm2291 = vmor %vm2289, %vm2290
    %v2292 = vsel %vm2291, %v2284, %v2288
    %v2293 = vand.u32 2147483647, %v2282
    %vm2294 = vcmp.eq.f32.partialorder %v2293, 8.507059e+37
    %v2295 = vand.u32 %v2282, 2147483648
    %v2296 = vor.u32 1.1754944e-38, %v2295
    %v2297 = vsel %vm2294, %v2296, %v2292
    %v2298 = vmul.f32 1.0, %v2297
    %v2299 = vrcp.pop %v2283
    %v2300 = vmul.f32 %v2283, %v2299
    %v2301 = vsub.f32 1.0, %v2300
    %v2302 = vmul.f32 %v2299, %v2301
    %v2303 = vadd.f32 %v2299, %v2302
    %vm2304 = vweird.f32 %v2283
    %vm2305 = vweird.f32 %v2299
    %vm2306 = vmor %vm2304, %vm2305
    %v2307 = vsel %vm2306, %v2299, %v2303
    %v2308 = vand.u32 2147483647, %v2283
    %vm2309 = vcmp.eq.f32.partialorder %v2308, 8.507059e+37
    %v2310 = vand.u32 %v2283, 2147483648
    %v2311 = vor.u32 1.1754944e-38, %v2310
    %v2312 = vsel %vm2309, %v2311, %v2307
    %v2313 = vmul.f32 1.0, %v2312
    %v2314 = vmul.f32 %v2313, 2.0
    %v2315 = vsub.f32 %v2314, 1.0
    %v2317 = vrot.slane %v2217, 6
    %v2319 = vmul.f32 %v2298, %v2317
    %v2320 = vmul.f32 %v2298, %v2315
    %2322 = vrot.lane.b32.xlu0 %v2320, 64
    %v2323 = vpop.permute.xlu0 %2322
    %v2325 = vadd.f32 %v2319, %v2323
    %v2326 = vtanh.pop %v2325
    %v2327 = vmul.f32 %v2313, %v2326
    %v2328 = vld [vmem:[%s9] sm:$0xff]
    %v2329 = vld [vmem:[%s9 + $0x8] sm:$0xff]
    %v2330 = vld [vmem:[%s9 + $0x10] sm:$0xff]
    %v2331 = vld [vmem:[%s9 + $0x18] sm:$0xff]
    %v2332 = vld [vmem:[%s9 + $0x20] sm:$0xff]
    %v2333 = vld [vmem:[%s9 + $0x28] sm:$0xff]
    %v2334 = vld [vmem:[%s9 + $0x30] sm:$0xff]
    %v2335 = vld [vmem:[%s9 + $0x38] sm:$0xff]
    %v2336 = vld [vmem:[%s10] sm:$0x1]
    %v2338 = vperm.slane %v2336, 0
    %v2341 = vrot.slane %v2327, 6
    %2342 = vrot.lane.b32.xlu0 %v2341, 64
    %v2343 = vpop.permute.xlu0 %2342
    %v2344 = vsel %vm275, %v2343, 0
    %2346 = vmatpush.msra.mxu0 0.0
    %2347 = vmatpush.msra.mxu0 0.0
    %2348 = vmatpush.msra.mxu0 0.0
    %2349 = vmatpush.msra.mxu0 0.0
    %2350 = vmatpush.msra.mxu0 0.0
    %2351 = vmatpush.msra.mxu0 0.0
    %2352 = vmatpush.msra.mxu0 0.0
    %2353 = vmatpush.msra.mxu0 0.0
    %2354 = vmatpush.msra.mxu0 %v2335
    %2355 = vmatpush.msra.mxu0 %v2334
    %2356 = vmatpush.msra.mxu0 %v2333
    %2357 = vmatpush.msra.mxu0 %v2332
    %2358 = vmatpush.msra.mxu0 %v2331
    %2359 = vmatpush.msra.mxu0 %v2330
    %2360 = vmatpush.msra.mxu0 %v2329
    %2361 = vmatpush.msra.mxu0 %v2328
    %2362 = vmatmul.f32.gmra.mxu0 %v2344
    %v2363 = vpop.f32.mrf.mxu0
    %v2364 = vadd.f32 %v2338, %v2363
    %2365 = vdwg.mxu0
    %vm2366 = vcmask 25600
    %2367 = vst.msk [vmem:[#allocation12] sm:$0x3] %vm2366, %v2364
    // Predicated region
    $region62: #{lstm_network_forward.1} parent=1 // pred_check
      _
    $region63: #{lstm_network_forward.1} parent=1 // pred_check_branch
      %2369 = sbr.rel (0) target = $region65
    $region64: #{lstm_network_forward.1} parent=1 // pred_region
      %2371 = vsyncadd [#allocation6], 0
      %s2373 = sshll.u32 [#allocation12], 4
      %s2374 = int_to_ptr.vmem [resolvable:$true] %s2373
      %s2375 = sshll.u32 %s11, 4
      %s2376 = int_to_ptr.hbm [resolvable:$true] %s2375
      %2378 = dma.vmem_to_hbm [thread:$0]  %s2374, 32, %s2376, [#allocation6]
    $region65: #{lstm_network_forward.1} parent=1 // pred_fallthru
      _
    // Predicated region
    $region66: #{lstm_network_forward.1} parent=1 // pred_check
      _
    $region67: #{lstm_network_forward.1} parent=1 // pred_check_branch
      %2380 = sbr.rel (0) target = $region69
    $region68: #{lstm_network_forward.1} parent=1 // pred_region
      %2382 = dma.done [#allocation6], 32
    $region69: #{lstm_network_forward.1} parent=1 // pred_fallthru
      _
    %2383 = vsyncpa [#allocation5], 1
    %2384 = vsyncpa [#allocation8], 1
    %2385 = vsyncpa [#allocation11], 1
    %2386 = vsyncpa [#allocation6], 1

</llo_original>
